<compile_context>
chip_gen: v7x
topology: tpu7x:2x2x1
jax: 0.10.0
libtpu: 0.0.40
codegen_flags: <defaults>
</compile_context>

<pallas_src>
import functools

import numpy as np
import jax
import jax.numpy as jnp
from jax.experimental import pallas as pl
from jax.experimental.pallas import tpu as pltpu


# ---------------------------------------------------------------------------
# DDPM schedule / synthetic eps-net configuration
# ---------------------------------------------------------------------------

_T = 20
_betas = np.linspace(1e-4, 0.02, _T, dtype=np.float64)
_alphas = 1.0 - _betas
_abar = np.cumprod(_alphas)
_T_STAR = 4          # forward-diffuse to t*, then run t* reverse steps
TEMB_DIM = 32


def _timestep_embedding(t, dim):
    half = dim // 2
    freqs = np.exp(-np.log(10000.0) * np.arange(half) / half)
    args = float(t) * freqs
    return np.concatenate([np.cos(args), np.sin(args)]).astype(np.float32)


def _make_valid_masks(H, W):
    """(9, H*W) f32 masks: 1 where the 3x3 tap's neighbor is in-bounds."""
    hh, ww = np.meshgrid(np.arange(H), np.arange(W), indexing="ij")
    masks = np.zeros((9, H * W), np.float32)
    k = 0
    for oy in (-1, 0, 1):
        for ox in (-1, 0, 1):
            m = ((hh + oy >= 0) & (hh + oy < H) &
                 (ww + ox >= 0) & (ww + ox < W))
            masks[k] = m.reshape(-1).astype(np.float32)
            k += 1
    return masks


def init_params(C, Hid):
    kW1, kW2, kWt = jax.random.split(jax.random.PRNGKey(42), 3)
    return {
        "W1": 0.10 * jax.random.normal(kW1, (9, C, Hid), jnp.float32),
        "b1": jnp.zeros((Hid,), jnp.float32),
        "W2": 0.05 * jax.random.normal(kW2, (9, Hid, C), jnp.float32),
        "b2": jnp.zeros((C,), jnp.float32),
        "Wt": 0.10 * jax.random.normal(kWt, (TEMB_DIM, Hid), jnp.float32),
        "bt": jnp.zeros((Hid,), jnp.float32),
    }


# ---------------------------------------------------------------------------
# The fused purifier kernel (one grid step = one batch element)
# ---------------------------------------------------------------------------

def purifier_kernel(x_ref, eps0_ref, z_ref, w1_ref, b1_ref, w2_ref, b2_ref,
                    valid_ref, o_ref, p1_ref, p2_ref,
                    *, H, W, fwd_a, fwd_b, rev_coeffs):
    """Refs:
      x_ref     (1, C, HW)        input pixels in [0, 1]
      eps0_ref  (1, C, HW)        forward-diffusion noise
      z_ref     (T*, 1, C, HW)    per-reverse-step noise (last slice unused)
      w1_ref    (Hid, 9*C)  bf16  conv1 weights, taps folded into K
      b1_ref    (T*, Hid, 1)      conv1 bias + time-embedding projection
      w2_ref    (C, 9*Hid)  bf16  conv2 weights
      b2_ref    (C, 1)            conv2 bias
      valid_ref (9, HW)           zero-padding validity masks per tap
      o_ref     (1, C, HW)        purified pixels
      p1_ref    (9*C, HW)   f32   VMEM scratch: im2col slab, layer 1
      p2_ref    (9*Hid, HW) f32   VMEM scratch: im2col slab, layer 2
    """
    HW = H * W

    def im2col(src, dst_ref):
        """dst[k*cin:(k+1)*cin, :] = tap-k shifted `src` with zero padding."""
        cin = src.shape[0]
        k = 0
        for oy in (-1, 0, 1):
            for ox in (-1, 0, 1):
                s = oy * W + ox
                shifted = src if s == 0 else pltpu.roll(
                    src, shift=(-s) % HW, axis=1)
                dst_ref[pl.ds(k * cin, cin), :] = (
                    shifted * valid_ref[k:k + 1, :])
                k += 1

    # (x - 0.5) * 2  then  x_t = sqrt(abar)*x0 + sqrt(1-abar)*eps
    x = fwd_a * (x_ref[0] * 2.0 - 1.0) + fwd_b * eps0_ref[0]     # (C, HW) f32

    # Reverse DDPM loop, fully resident in VMEM (statically unrolled).
    for step, (c0, c1, sigma) in enumerate(rev_coeffs):
        # ---- epsilon predictor: conv3x3 + SiLU -> conv3x3 -----------------
        im2col(x, p1_ref)
        h = jnp.dot(w1_ref[...], p1_ref[...].astype(jnp.bfloat16),
                    preferred_element_type=jnp.float32)           # (Hid, HW)
        h = h + b1_ref[step]                                      # (Hid, 1) bcast
        h = h * jax.nn.sigmoid(h)                                 # SiLU (EUP)

        im2col(h, p2_ref)
        eps = jnp.dot(w2_ref[...], p2_ref[...].astype(jnp.bfloat16),
                      preferred_element_type=jnp.float32)         # (C, HW)
        eps = eps + b2_ref[...]                                   # (C, 1) bcast

        # ---- one DDPM reverse step ----------------------------------------
        x = c0 * (x - c1 * eps)
        if sigma != 0.0:
            x = x + sigma * z_ref[step, 0]

    # (x_re + 1) * 0.5
    o_ref[0] = (x * 0.5 + 0.5).astype(o_ref.dtype)


# ---------------------------------------------------------------------------
# SDE_Adv_Model.forward (non-imagenet domain -> no bilinear resize branch)
# ---------------------------------------------------------------------------

def sde_adv_model_forward(x_nchw, params, rng):
    N, C, H, W = x_nchw.shape
    HW = H * W
    Hid = params["W1"].shape[-1]

    # NCHW -> (N, C, HW): spatial axis (multiple of 128) on lanes, no transpose.
    x = x_nchw.reshape(N, C, HW).astype(jnp.float32)

    # Forward-diffusion noise.
    rng, k_eps = jax.random.split(rng)
    eps0 = jax.random.normal(k_eps, (N, C, HW), jnp.float32)

    # Per-reverse-step scalars, noise, and time-conditioned conv1 bias.
    rev_coeffs, zs, b1_rows = [], [], []
    for t in reversed(range(_T_STAR)):
        alpha_t = float(_alphas[t])
        beta_t = float(_betas[t])
        abar_t = float(_abar[t])
        abar_prev = float(_abar[t - 1]) if t > 0 else 1.0
        c0 = float(1.0 / np.sqrt(alpha_t))
        c1 = float(beta_t / np.sqrt(1.0 - abar_t))
        sigma = (float(np.sqrt(beta_t * (1.0 - abar_prev) / (1.0 - abar_t)))
                 if t > 0 else 0.0)
        rev_coeffs.append((c0, c1, sigma))

        rng, kz = jax.random.split(rng)
        zs.append(jax.random.normal(kz, (N, C, HW), jnp.float32) if t > 0
                  else jnp.zeros((N, C, HW), jnp.float32))

        temb = jnp.asarray(_timestep_embedding(t, TEMB_DIM))
        tproj = temb @ params["Wt"] + params["bt"]
        b1_rows.append(params["b1"] + tproj)

    z = jnp.stack(zs, axis=0)                                   # (T*, N, C, HW)
    b1_eff = jnp.stack(b1_rows, 0).reshape(_T_STAR, Hid, 1).astype(jnp.float32)

    # Repack conv weights for a single K = 9*Cin contraction: (Cout, 9*Cin).
    w1t = jnp.transpose(params["W1"], (2, 0, 1)).reshape(Hid, 9 * C)
    w2t = jnp.transpose(params["W2"], (2, 0, 1)).reshape(C, 9 * Hid)
    w1t = w1t.astype(jnp.bfloat16)
    w2t = w2t.astype(jnp.bfloat16)
    b2 = params["b2"].reshape(C, 1).astype(jnp.float32)

    valid = jnp.asarray(_make_valid_masks(H, W))                # (9, HW)

    fwd_a = float(np.sqrt(_abar[_T_STAR - 1]))
    fwd_b = float(np.sqrt(1.0 - _abar[_T_STAR - 1]))

    kernel = functools.partial(
        purifier_kernel, H=H, W=W, fwd_a=fwd_a, fwd_b=fwd_b,
        rev_coeffs=tuple(rev_coeffs))

    out = pl.pallas_call(
        kernel,
        out_shape=jax.ShapeDtypeStruct((N, C, HW), jnp.float32),
        grid=(N,),
        in_specs=[
            pl.BlockSpec((1, C, HW), lambda n: (n, 0, 0)),              # x
            pl.BlockSpec((1, C, HW), lambda n: (n, 0, 0)),              # eps0
            pl.BlockSpec((_T_STAR, 1, C, HW), lambda n: (0, n, 0, 0)),  # z
            pl.BlockSpec((Hid, 9 * C), lambda n: (0, 0)),               # w1t
            pl.BlockSpec((_T_STAR, Hid, 1), lambda n: (0, 0, 0)),       # b1_eff
            pl.BlockSpec((C, 9 * Hid), lambda n: (0, 0)),               # w2t
            pl.BlockSpec((C, 1), lambda n: (0, 0)),                     # b2
            pl.BlockSpec((9, HW), lambda n: (0, 0)),                    # masks
        ],
        out_specs=pl.BlockSpec((1, C, HW), lambda n: (n, 0, 0)),
        scratch_shapes=[
            pltpu.VMEM((9 * C, HW), jnp.float32),    # im2col slab, layer 1
            pltpu.VMEM((9 * Hid, HW), jnp.float32),  # im2col slab, layer 2
        ],
        compiler_params=pltpu.CompilerParams(
            dimension_semantics=("parallel",)),
    )(x, eps0, z, w1t, b1_eff, w2t, b2, valid)

    return out.reshape(N, C, H, W)


if __name__ == "__main__":
    key = jax.random.PRNGKey(0)
    kx, krun = jax.random.split(key)

    N, C, H, W = 2, 4, 16, 16
    x = jax.random.uniform(kx, (N, C, H, W), jnp.float32)   # pixels in [0, 1]

    params = init_params(C=C, Hid=32)

    out = sde_adv_model_forward(x, params, krun)
    out = jax.block_until_ready(out)

    assert out.shape == (N, C, H, W)
    assert out.dtype == jnp.float32
    assert bool(jnp.all(jnp.isfinite(out)))

    print("KERNEL_OK")
</pallas_src>

<mosaic_0001>
module attributes {stable_mosaic.version = 11 : i64} {
  func.func @purifier_kernel(%arg0: i32, %arg1: memref<1x4x256xf32, #tpu.memory_space<vmem>>, %arg2: memref<1x4x256xf32, #tpu.memory_space<vmem>>, %arg3: memref<4x1x4x256xf32, #tpu.memory_space<vmem>>, %arg4: memref<32x36xbf16, #tpu.memory_space<vmem>>, %arg5: memref<4x32x1xf32, #tpu.memory_space<vmem>>, %arg6: memref<4x288xbf16, #tpu.memory_space<vmem>>, %arg7: memref<4x1xf32, #tpu.memory_space<vmem>>, %arg8: memref<9x256xf32, #tpu.memory_space<vmem>>, %arg9: memref<1x4x256xf32, #tpu.memory_space<vmem>>, %arg10: memref<36x256xf32, #tpu.memory_space<vmem>>, %arg11: memref<288x256xf32, #tpu.memory_space<vmem>>) attributes {dimension_semantics = [#tpu.dimension_semantics<parallel>], iteration_bounds = array<i64: 2>, scalar_prefetch = 0 : i64, scratch_operands = 2 : i64, tpu.core_type = #tpu.core_type<tc>, window_params = [{transform_indices = @transform_0, window_bounds = array<i64: 1, 4, 256>}, {transform_indices = @transform_1, window_bounds = array<i64: 1, 4, 256>}, {transform_indices = @transform_2, window_bounds = array<i64: 4, 1, 4, 256>}, {pipeline_mode = #tpu.pipeline_mode<synchronous>, transform_indices = @transform_3, window_bounds = array<i64: 32, 36>}, {pipeline_mode = #tpu.pipeline_mode<synchronous>, transform_indices = @transform_4, window_bounds = array<i64: 4, 32, 1>}, {pipeline_mode = #tpu.pipeline_mode<synchronous>, transform_indices = @transform_5, window_bounds = array<i64: 4, 288>}, {pipeline_mode = #tpu.pipeline_mode<synchronous>, transform_indices = @transform_6, window_bounds = array<i64: 4, 1>}, {pipeline_mode = #tpu.pipeline_mode<synchronous>, transform_indices = @transform_7, window_bounds = array<i64: 9, 256>}, {transform_indices = @transform_8, window_bounds = array<i64: 1, 4, 256>}]} {
    %c0 = arith.constant 0 : index
    %c0_0 = arith.constant 0 : index
    %c0_1 = arith.constant 0 : index
    %0 = vector.load %arg1[%c0, %c0_0, %c0_1] : memref<1x4x256xf32, #tpu.memory_space<vmem>>, vector<1x4x256xf32>
    %1 = vector.shape_cast %0 : vector<1x4x256xf32> to vector<4x256xf32>
    %cst = arith.constant 2.000000e+00 : f32
    %2 = vector.broadcast %cst : f32 to vector<4x256xf32>
    %3 = arith.mulf %1, %2 : vector<4x256xf32>
    %cst_2 = arith.constant 1.000000e+00 : f32
    %4 = vector.broadcast %cst_2 : f32 to vector<4x256xf32>
    %5 = arith.subf %3, %4 : vector<4x256xf32>
    %cst_3 = arith.constant 0.996659338 : f32
    %6 = vector.broadcast %cst_3 : f32 to vector<4x256xf32>
    %7 = arith.mulf %6, %5 : vector<4x256xf32>
    %c0_4 = arith.constant 0 : index
    %c0_5 = arith.constant 0 : index
    %c0_6 = arith.constant 0 : index
    %8 = vector.load %arg2[%c0_4, %c0_5, %c0_6] : memref<1x4x256xf32, #tpu.memory_space<vmem>>, vector<1x4x256xf32>
    %9 = vector.shape_cast %8 : vector<1x4x256xf32> to vector<4x256xf32>
    %cst_7 = arith.constant 0.0816713423 : f32
    %10 = vector.broadcast %cst_7 : f32 to vector<4x256xf32>
    %11 = arith.mulf %10, %9 : vector<4x256xf32>
    %12 = arith.addf %7, %11 : vector<4x256xf32>
    %c17_i32 = arith.constant 17 : i32
    %13 = tpu.dynamic_rotate %12 by %c17_i32 dim 1 : vector<4x256xf32>, i32 -> vector<4x256xf32>
    %c0_8 = arith.constant 0 : index
    %c0_9 = arith.constant 0 : index
    %14 = vector.load %arg8[%c0_8, %c0_9] : memref<9x256xf32, #tpu.memory_space<vmem>>, vector<1x256xf32>
    %15 = vector.broadcast %14 : vector<1x256xf32> to vector<4x256xf32>
    %16 = arith.mulf %13, %15 : vector<4x256xf32>
    %c0_10 = arith.constant 0 : index
    %c0_11 = arith.constant 0 : index
    %17 = vector.load %arg10[%c0_10, %c0_11] : memref<36x256xf32, #tpu.memory_space<vmem>>, vector<4x256xf32>
    tpu.vector_store %arg10[%c0_10, %c0_11], %16 {strides = array<i32>} : memref<36x256xf32, #tpu.memory_space<vmem>>, vector<4x256xf32>,
    %c16_i32 = arith.constant 16 : i32
    %18 = tpu.dynamic_rotate %12 by %c16_i32 dim 1 : vector<4x256xf32>, i32 -> vector<4x256xf32>
    %c1 = arith.constant 1 : index
    %c0_12 = arith.constant 0 : index
    %19 = vector.load %arg8[%c1, %c0_12] : memref<9x256xf32, #tpu.memory_space<vmem>>, vector<1x256xf32>
    %20 = vector.broadcast %19 : vector<1x256xf32> to vector<4x256xf32>
    %21 = arith.mulf %18, %20 : vector<4x256xf32>
    %c4 = arith.constant 4 : index
    %c0_13 = arith.constant 0 : index
    %22 = vector.load %arg10[%c4, %c0_13] : memref<36x256xf32, #tpu.memory_space<vmem>>, vector<4x256xf32>
    tpu.vector_store %arg10[%c4, %c0_13], %21 {strides = array<i32>} : memref<36x256xf32, #tpu.memory_space<vmem>>, vector<4x256xf32>,
    %c15_i32 = arith.constant 15 : i32
    %23 = tpu.dynamic_rotate %12 by %c15_i32 dim 1 : vector<4x256xf32>, i32 -> vector<4x256xf32>
    %c2 = arith.constant 2 : index
    %c0_14 = arith.constant 0 : index
    %24 = vector.load %arg8[%c2, %c0_14] : memref<9x256xf32, #tpu.memory_space<vmem>>, vector<1x256xf32>
    %25 = vector.broadcast %24 : vector<1x256xf32> to vector<4x256xf32>
    %26 = arith.mulf %23, %25 : vector<4x256xf32>
    %c8 = arith.constant 8 : index
    %c0_15 = arith.constant 0 : index
    %27 = vector.load %arg10[%c8, %c0_15] : memref<36x256xf32, #tpu.memory_space<vmem>>, vector<4x256xf32>
    tpu.vector_store %arg10[%c8, %c0_15], %26 {strides = array<i32>} : memref<36x256xf32, #tpu.memory_space<vmem>>, vector<4x256xf32>,
    %c1_i32 = arith.constant 1 : i32
    %28 = tpu.dynamic_rotate %12 by %c1_i32 dim 1 : vector<4x256xf32>, i32 -> vector<4x256xf32>
    %c3 = arith.constant 3 : index
    %c0_16 = arith.constant 0 : index
    %29 = vector.load %arg8[%c3, %c0_16] : memref<9x256xf32, #tpu.memory_space<vmem>>, vector<1x256xf32>
    %30 = vector.broadcast %29 : vector<1x256xf32> to vector<4x256xf32>
    %31 = arith.mulf %28, %30 : vector<4x256xf32>
    %c12 = arith.constant 12 : index
    %c0_17 = arith.constant 0 : index
    %32 = vector.load %arg10[%c12, %c0_17] : memref<36x256xf32, #tpu.memory_space<vmem>>, vector<4x256xf32>
    tpu.vector_store %arg10[%c12, %c0_17], %31 {strides = array<i32>} : memref<36x256xf32, #tpu.memory_space<vmem>>, vector<4x256xf32>,
    %c4_18 = arith.constant 4 : index
    %c0_19 = arith.constant 0 : index
    %33 = vector.load %arg8[%c4_18, %c0_19] : memref<9x256xf32, #tpu.memory_space<vmem>>, vector<1x256xf32>
    %34 = vector.broadcast %33 : vector<1x256xf32> to vector<4x256xf32>
    %35 = arith.mulf %12, %34 : vector<4x256xf32>
    %c16 = arith.constant 16 : index
    %c0_20 = arith.constant 0 : index
    %36 = vector.load %arg10[%c16, %c0_20] : memref<36x256xf32, #tpu.memory_space<vmem>>, vector<4x256xf32>
    tpu.vector_store %arg10[%c16, %c0_20], %35 {strides = array<i32>} : memref<36x256xf32, #tpu.memory_space<vmem>>, vector<4x256xf32>,
    %c255_i32 = arith.constant 255 : i32
    %37 = tpu.dynamic_rotate %12 by %c255_i32 dim 1 : vector<4x256xf32>, i32 -> vector<4x256xf32>
    %c5 = arith.constant 5 : index
    %c0_21 = arith.constant 0 : index
    %38 = vector.load %arg8[%c5, %c0_21] : memref<9x256xf32, #tpu.memory_space<vmem>>, vector<1x256xf32>
    %39 = vector.broadcast %38 : vector<1x256xf32> to vector<4x256xf32>
    %40 = arith.mulf %37, %39 : vector<4x256xf32>
    %c20 = arith.constant 20 : index
    %c0_22 = arith.constant 0 : index
    %41 = vector.load %arg10[%c20, %c0_22] : memref<36x256xf32, #tpu.memory_space<vmem>>, vector<4x256xf32>
    tpu.vector_store %arg10[%c20, %c0_22], %40 {strides = array<i32>} : memref<36x256xf32, #tpu.memory_space<vmem>>, vector<4x256xf32>,
    %c241_i32 = arith.constant 241 : i32
    %42 = tpu.dynamic_rotate %12 by %c241_i32 dim 1 : vector<4x256xf32>, i32 -> vector<4x256xf32>
    %c6 = arith.constant 6 : index
    %c0_23 = arith.constant 0 : index
    %43 = vector.load %arg8[%c6, %c0_23] : memref<9x256xf32, #tpu.memory_space<vmem>>, vector<1x256xf32>
    %44 = vector.broadcast %43 : vector<1x256xf32> to vector<4x256xf32>
    %45 = arith.mulf %42, %44 : vector<4x256xf32>
    %c24 = arith.constant 24 : index
    %c0_24 = arith.constant 0 : index
    %46 = vector.load %arg10[%c24, %c0_24] : memref<36x256xf32, #tpu.memory_space<vmem>>, vector<4x256xf32>
    tpu.vector_store %arg10[%c24, %c0_24], %45 {strides = array<i32>} : memref<36x256xf32, #tpu.memory_space<vmem>>, vector<4x256xf32>,
    %c240_i32 = arith.constant 240 : i32
    %47 = tpu.dynamic_rotate %12 by %c240_i32 dim 1 : vector<4x256xf32>, i32 -> vector<4x256xf32>
    %c7 = arith.constant 7 : index
    %c0_25 = arith.constant 0 : index
    %48 = vector.load %arg8[%c7, %c0_25] : memref<9x256xf32, #tpu.memory_space<vmem>>, vector<1x256xf32>
    %49 = vector.broadcast %48 : vector<1x256xf32> to vector<4x256xf32>
    %50 = arith.mulf %47, %49 : vector<4x256xf32>
    %c28 = arith.constant 28 : index
    %c0_26 = arith.constant 0 : index
    %51 = vector.load %arg10[%c28, %c0_26] : memref<36x256xf32, #tpu.memory_space<vmem>>, vector<4x256xf32>
    tpu.vector_store %arg10[%c28, %c0_26], %50 {strides = array<i32>} : memref<36x256xf32, #tpu.memory_space<vmem>>, vector<4x256xf32>,
    %c239_i32 = arith.constant 239 : i32
    %52 = tpu.dynamic_rotate %12 by %c239_i32 dim 1 : vector<4x256xf32>, i32 -> vector<4x256xf32>
    %c8_27 = arith.constant 8 : index
    %c0_28 = arith.constant 0 : index
    %53 = vector.load %arg8[%c8_27, %c0_28] : memref<9x256xf32, #tpu.memory_space<vmem>>, vector<1x256xf32>
    %54 = vector.broadcast %53 : vector<1x256xf32> to vector<4x256xf32>
    %55 = arith.mulf %52, %54 : vector<4x256xf32>
    %c32 = arith.constant 32 : index
    %c0_29 = arith.constant 0 : index
    %56 = vector.load %arg10[%c32, %c0_29] : memref<36x256xf32, #tpu.memory_space<vmem>>, vector<4x256xf32>
    tpu.vector_store %arg10[%c32, %c0_29], %55 {strides = array<i32>} : memref<36x256xf32, #tpu.memory_space<vmem>>, vector<4x256xf32>,
    %c0_30 = arith.constant 0 : index
    %c0_31 = arith.constant 0 : index
    %57 = vector.load %arg4[%c0_30, %c0_31] : memref<32x36xbf16, #tpu.memory_space<vmem>>, vector<32x36xbf16>
    %c0_32 = arith.constant 0 : index
    %c0_33 = arith.constant 0 : index
    %58 = vector.load %arg10[%c0_32, %c0_33] : memref<36x256xf32, #tpu.memory_space<vmem>>, vector<36x256xf32>
    %59 = arith.truncf %58 : vector<36x256xf32> to vector<36x256xbf16>
    %cst_34 = arith.constant dense<0.000000e+00> : vector<32x256xf32>
    %60 = tpu.matmul %57, %59, %cst_34 {dimension_numbers = #tpu.dot_dimension_numbers<[1], [0], [0], [1], [0, 0, 1, 1], [], []>} : vector<32x36xbf16>, vector<36x256xbf16>, vector<32x256xf32> -> vector<32x256xf32>
    %c0_35 = arith.constant 0 : index
    %c0_36 = arith.constant 0 : index
    %c0_37 = arith.constant 0 : index
    %61 = vector.load %arg5[%c0_35, %c0_36, %c0_37] : memref<4x32x1xf32, #tpu.memory_space<vmem>>, vector<1x32x1xf32>
    %62 = vector.shape_cast %61 : vector<1x32x1xf32> to vector<32x1xf32>
    %63 = vector.broadcast %62 : vector<32x1xf32> to vector<32x256xf32>
    %64 = arith.addf %60, %63 : vector<32x256xf32>
    %65 = arith.negf %64 : vector<32x256xf32>
    %66 = math.exp %65 : vector<32x256xf32>
    %cst_38 = arith.constant 1.000000e+00 : f32
    %67 = vector.broadcast %cst_38 : f32 to vector<32x256xf32>
    %68 = arith.addf %67, %66 : vector<32x256xf32>
    %69 = arith.divf %67, %68 : vector<32x256xf32>
    %70 = arith.mulf %64, %69 : vector<32x256xf32>
    %c17_i32_39 = arith.constant 17 : i32
    %71 = tpu.dynamic_rotate %70 by %c17_i32_39 dim 1 : vector<32x256xf32>, i32 -> vector<32x256xf32>
    %c0_40 = arith.constant 0 : index
    %c0_41 = arith.constant 0 : index
    %72 = vector.load %arg8[%c0_40, %c0_41] : memref<9x256xf32, #tpu.memory_space<vmem>>, vector<1x256xf32>
    %73 = vector.broadcast %72 : vector<1x256xf32> to vector<32x256xf32>
    %74 = arith.mulf %71, %73 : vector<32x256xf32>
    %c0_42 = arith.constant 0 : index
    %c0_43 = arith.constant 0 : index
    %75 = vector.load %arg11[%c0_42, %c0_43] : memref<288x256xf32, #tpu.memory_space<vmem>>, vector<32x256xf32>
    tpu.vector_store %arg11[%c0_42, %c0_43], %74 {strides = array<i32>} : memref<288x256xf32, #tpu.memory_space<vmem>>, vector<32x256xf32>,
    %c16_i32_44 = arith.constant 16 : i32
    %76 = tpu.dynamic_rotate %70 by %c16_i32_44 dim 1 : vector<32x256xf32>, i32 -> vector<32x256xf32>
    %c1_45 = arith.constant 1 : index
    %c0_46 = arith.constant 0 : index
    %77 = vector.load %arg8[%c1_45, %c0_46] : memref<9x256xf32, #tpu.memory_space<vmem>>, vector<1x256xf32>
    %78 = vector.broadcast %77 : vector<1x256xf32> to vector<32x256xf32>
    %79 = arith.mulf %76, %78 : vector<32x256xf32>
    %c32_47 = arith.constant 32 : index
    %c0_48 = arith.constant 0 : index
    %80 = vector.load %arg11[%c32_47, %c0_48] : memref<288x256xf32, #tpu.memory_space<vmem>>, vector<32x256xf32>
    tpu.vector_store %arg11[%c32_47, %c0_48], %79 {strides = array<i32>} : memref<288x256xf32, #tpu.memory_space<vmem>>, vector<32x256xf32>,
    %c15_i32_49 = arith.constant 15 : i32
    %81 = tpu.dynamic_rotate %70 by %c15_i32_49 dim 1 : vector<32x256xf32>, i32 -> vector<32x256xf32>
    %c2_50 = arith.constant 2 : index
    %c0_51 = arith.constant 0 : index
    %82 = vector.load %arg8[%c2_50, %c0_51] : memref<9x256xf32, #tpu.memory_space<vmem>>, vector<1x256xf32>
    %83 = vector.broadcast %82 : vector<1x256xf32> to vector<32x256xf32>
    %84 = arith.mulf %81, %83 : vector<32x256xf32>
    %c64 = arith.constant 64 : index
    %c0_52 = arith.constant 0 : index
    %85 = vector.load %arg11[%c64, %c0_52] : memref<288x256xf32, #tpu.memory_space<vmem>>, vector<32x256xf32>
    tpu.vector_store %arg11[%c64, %c0_52], %84 {strides = array<i32>} : memref<288x256xf32, #tpu.memory_space<vmem>>, vector<32x256xf32>,
    %c1_i32_53 = arith.constant 1 : i32
    %86 = tpu.dynamic_rotate %70 by %c1_i32_53 dim 1 : vector<32x256xf32>, i32 -> vector<32x256xf32>
    %c3_54 = arith.constant 3 : index
    %c0_55 = arith.constant 0 : index
    %87 = vector.load %arg8[%c3_54, %c0_55] : memref<9x256xf32, #tpu.memory_space<vmem>>, vector<1x256xf32>
    %88 = vector.broadcast %87 : vector<1x256xf32> to vector<32x256xf32>
    %89 = arith.mulf %86, %88 : vector<32x256xf32>
    %c96 = arith.constant 96 : index
    %c0_56 = arith.constant 0 : index
    %90 = vector.load %arg11[%c96, %c0_56] : memref<288x256xf32, #tpu.memory_space<vmem>>, vector<32x256xf32>
    tpu.vector_store %arg11[%c96, %c0_56], %89 {strides = array<i32>} : memref<288x256xf32, #tpu.memory_space<vmem>>, vector<32x256xf32>,
    %c4_57 = arith.constant 4 : index
    %c0_58 = arith.constant 0 : index
    %91 = vector.load %arg8[%c4_57, %c0_58] : memref<9x256xf32, #tpu.memory_space<vmem>>, vector<1x256xf32>
    %92 = vector.broadcast %91 : vector<1x256xf32> to vector<32x256xf32>
    %93 = arith.mulf %70, %92 : vector<32x256xf32>
    %c128 = arith.constant 128 : index
    %c0_59 = arith.constant 0 : index
    %94 = vector.load %arg11[%c128, %c0_59] : memref<288x256xf32, #tpu.memory_space<vmem>>, vector<32x256xf32>
    tpu.vector_store %arg11[%c128, %c0_59], %93 {strides = array<i32>} : memref<288x256xf32, #tpu.memory_space<vmem>>, vector<32x256xf32>,
    %c255_i32_60 = arith.constant 255 : i32
    %95 = tpu.dynamic_rotate %70 by %c255_i32_60 dim 1 : vector<32x256xf32>, i32 -> vector<32x256xf32>
    %c5_61 = arith.constant 5 : index
    %c0_62 = arith.constant 0 : index
    %96 = vector.load %arg8[%c5_61, %c0_62] : memref<9x256xf32, #tpu.memory_space<vmem>>, vector<1x256xf32>
    %97 = vector.broadcast %96 : vector<1x256xf32> to vector<32x256xf32>
    %98 = arith.mulf %95, %97 : vector<32x256xf32>
    %c160 = arith.constant 160 : index
    %c0_63 = arith.constant 0 : index
    %99 = vector.load %arg11[%c160, %c0_63] : memref<288x256xf32, #tpu.memory_space<vmem>>, vector<32x256xf32>
    tpu.vector_store %arg11[%c160, %c0_63], %98 {strides = array<i32>} : memref<288x256xf32, #tpu.memory_space<vmem>>, vector<32x256xf32>,
    %c241_i32_64 = arith.constant 241 : i32
    %100 = tpu.dynamic_rotate %70 by %c241_i32_64 dim 1 : vector<32x256xf32>, i32 -> vector<32x256xf32>
    %c6_65 = arith.constant 6 : index
    %c0_66 = arith.constant 0 : index
    %101 = vector.load %arg8[%c6_65, %c0_66] : memref<9x256xf32, #tpu.memory_space<vmem>>, vector<1x256xf32>
    %102 = vector.broadcast %101 : vector<1x256xf32> to vector<32x256xf32>
    %103 = arith.mulf %100, %102 : vector<32x256xf32>
    %c192 = arith.constant 192 : index
    %c0_67 = arith.constant 0 : index
    %104 = vector.load %arg11[%c192, %c0_67] : memref<288x256xf32, #tpu.memory_space<vmem>>, vector<32x256xf32>
    tpu.vector_store %arg11[%c192, %c0_67], %103 {strides = array<i32>} : memref<288x256xf32, #tpu.memory_space<vmem>>, vector<32x256xf32>,
    %c240_i32_68 = arith.constant 240 : i32
    %105 = tpu.dynamic_rotate %70 by %c240_i32_68 dim 1 : vector<32x256xf32>, i32 -> vector<32x256xf32>
    %c7_69 = arith.constant 7 : index
    %c0_70 = arith.constant 0 : index
    %106 = vector.load %arg8[%c7_69, %c0_70] : memref<9x256xf32, #tpu.memory_space<vmem>>, vector<1x256xf32>
    %107 = vector.broadcast %106 : vector<1x256xf32> to vector<32x256xf32>
    %108 = arith.mulf %105, %107 : vector<32x256xf32>
    %c224 = arith.constant 224 : index
    %c0_71 = arith.constant 0 : index
    %109 = vector.load %arg11[%c224, %c0_71] : memref<288x256xf32, #tpu.memory_space<vmem>>, vector<32x256xf32>
    tpu.vector_store %arg11[%c224, %c0_71], %108 {strides = array<i32>} : memref<288x256xf32, #tpu.memory_space<vmem>>, vector<32x256xf32>,
    %c239_i32_72 = arith.constant 239 : i32
    %110 = tpu.dynamic_rotate %70 by %c239_i32_72 dim 1 : vector<32x256xf32>, i32 -> vector<32x256xf32>
    %c8_73 = arith.constant 8 : index
    %c0_74 = arith.constant 0 : index
    %111 = vector.load %arg8[%c8_73, %c0_74] : memref<9x256xf32, #tpu.memory_space<vmem>>, vector<1x256xf32>
    %112 = vector.broadcast %111 : vector<1x256xf32> to vector<32x256xf32>
    %113 = arith.mulf %110, %112 : vector<32x256xf32>
    %c256 = arith.constant 256 : index
    %c0_75 = arith.constant 0 : index
    %114 = vector.load %arg11[%c256, %c0_75] : memref<288x256xf32, #tpu.memory_space<vmem>>, vector<32x256xf32>
    tpu.vector_store %arg11[%c256, %c0_75], %113 {strides = array<i32>} : memref<288x256xf32, #tpu.memory_space<vmem>>, vector<32x256xf32>,
    %c0_76 = arith.constant 0 : index
    %c0_77 = arith.constant 0 : index
    %115 = vector.load %arg6[%c0_76, %c0_77] : memref<4x288xbf16, #tpu.memory_space<vmem>>, vector<4x288xbf16>
    %c0_78 = arith.constant 0 : index
    %c0_79 = arith.constant 0 : index
    %116 = vector.load %arg11[%c0_78, %c0_79] : memref<288x256xf32, #tpu.memory_space<vmem>>, vector<288x256xf32>
    %117 = arith.truncf %116 : vector<288x256xf32> to vector<288x256xbf16>
    %cst_80 = arith.constant dense<0.000000e+00> : vector<4x256xf32>
    %118 = tpu.matmul %115, %117, %cst_80 {dimension_numbers = #tpu.dot_dimension_numbers<[1], [0], [0], [1], [0, 0, 1, 1], [], []>} : vector<4x288xbf16>, vector<288x256xbf16>, vector<4x256xf32> -> vector<4x256xf32>
    %c0_81 = arith.constant 0 : index
    %c0_82 = arith.constant 0 : index
    %119 = vector.load %arg7[%c0_81, %c0_82] : memref<4x1xf32, #tpu.memory_space<vmem>>, vector<4x1xf32>
    %120 = vector.broadcast %119 : vector<4x1xf32> to vector<4x256xf32>
    %121 = arith.addf %118, %120 : vector<4x256xf32>
    %cst_83 = arith.constant 0.0396969765 : f32
    %122 = vector.broadcast %cst_83 : f32 to vector<4x256xf32>
    %123 = arith.mulf %122, %121 : vector<4x256xf32>
    %124 = arith.subf %12, %123 : vector<4x256xf32>
    %cst_84 = arith.constant 1.00162506 : f32
    %125 = vector.broadcast %cst_84 : f32 to vector<4x256xf32>
    %126 = arith.mulf %125, %124 : vector<4x256xf32>
    %c0_85 = arith.constant 0 : index
    %c0_86 = arith.constant 0 : index
    %c0_87 = arith.constant 0 : index
    %c0_88 = arith.constant 0 : index
    %127 = vector.load %arg3[%c0_85, %c0_86, %c0_87, %c0_88] : memref<4x1x4x256xf32, #tpu.memory_space<vmem>>, vector<1x1x4x256xf32>
    %128 = vector.shape_cast %127 : vector<1x1x4x256xf32> to vector<4x256xf32>
    %cst_89 = arith.constant 0.0408861227 : f32
    %129 = vector.broadcast %cst_89 : f32 to vector<4x256xf32>
    %130 = arith.mulf %129, %128 : vector<4x256xf32>
    %131 = arith.addf %126, %130 : vector<4x256xf32>
    %c17_i32_90 = arith.constant 17 : i32
    %132 = tpu.dynamic_rotate %131 by %c17_i32_90 dim 1 : vector<4x256xf32>, i32 -> vector<4x256xf32>
    %c0_91 = arith.constant 0 : index
    %c0_92 = arith.constant 0 : index
    %133 = vector.load %arg8[%c0_91, %c0_92] : memref<9x256xf32, #tpu.memory_space<vmem>>, vector<1x256xf32>
    %134 = vector.broadcast %133 : vector<1x256xf32> to vector<4x256xf32>
    %135 = arith.mulf %132, %134 : vector<4x256xf32>
    %c0_93 = arith.constant 0 : index
    %c0_94 = arith.constant 0 : index
    %136 = vector.load %arg10[%c0_93, %c0_94] : memref<36x256xf32, #tpu.memory_space<vmem>>, vector<4x256xf32>
    tpu.vector_store %arg10[%c0_93, %c0_94], %135 {strides = array<i32>} : memref<36x256xf32, #tpu.memory_space<vmem>>, vector<4x256xf32>,
    %c16_i32_95 = arith.constant 16 : i32
    %137 = tpu.dynamic_rotate %131 by %c16_i32_95 dim 1 : vector<4x256xf32>, i32 -> vector<4x256xf32>
    %c1_96 = arith.constant 1 : index
    %c0_97 = arith.constant 0 : index
    %138 = vector.load %arg8[%c1_96, %c0_97] : memref<9x256xf32, #tpu.memory_space<vmem>>, vector<1x256xf32>
    %139 = vector.broadcast %138 : vector<1x256xf32> to vector<4x256xf32>
    %140 = arith.mulf %137, %139 : vector<4x256xf32>
    %c4_98 = arith.constant 4 : index
    %c0_99 = arith.constant 0 : index
    %141 = vector.load %arg10[%c4_98, %c0_99] : memref<36x256xf32, #tpu.memory_space<vmem>>, vector<4x256xf32>
    tpu.vector_store %arg10[%c4_98, %c0_99], %140 {strides = array<i32>} : memref<36x256xf32, #tpu.memory_space<vmem>>, vector<4x256xf32>,
    %c15_i32_100 = arith.constant 15 : i32
    %142 = tpu.dynamic_rotate %131 by %c15_i32_100 dim 1 : vector<4x256xf32>, i32 -> vector<4x256xf32>
    %c2_101 = arith.constant 2 : index
    %c0_102 = arith.constant 0 : index
    %143 = vector.load %arg8[%c2_101, %c0_102] : memref<9x256xf32, #tpu.memory_space<vmem>>, vector<1x256xf32>
    %144 = vector.broadcast %143 : vector<1x256xf32> to vector<4x256xf32>
    %145 = arith.mulf %142, %144 : vector<4x256xf32>
    %c8_103 = arith.constant 8 : index
    %c0_104 = arith.constant 0 : index
    %146 = vector.load %arg10[%c8_103, %c0_104] : memref<36x256xf32, #tpu.memory_space<vmem>>, vector<4x256xf32>
    tpu.vector_store %arg10[%c8_103, %c0_104], %145 {strides = array<i32>} : memref<36x256xf32, #tpu.memory_space<vmem>>, vector<4x256xf32>,
    %c1_i32_105 = arith.constant 1 : i32
    %147 = tpu.dynamic_rotate %131 by %c1_i32_105 dim 1 : vector<4x256xf32>, i32 -> vector<4x256xf32>
    %c3_106 = arith.constant 3 : index
    %c0_107 = arith.constant 0 : index
    %148 = vector.load %arg8[%c3_106, %c0_107] : memref<9x256xf32, #tpu.memory_space<vmem>>, vector<1x256xf32>
    %149 = vector.broadcast %148 : vector<1x256xf32> to vector<4x256xf32>
    %150 = arith.mulf %147, %149 : vector<4x256xf32>
    %c12_108 = arith.constant 12 : index
    %c0_109 = arith.constant 0 : index
    %151 = vector.load %arg10[%c12_108, %c0_109] : memref<36x256xf32, #tpu.memory_space<vmem>>, vector<4x256xf32>
    tpu.vector_store %arg10[%c12_108, %c0_109], %150 {strides = array<i32>} : memref<36x256xf32, #tpu.memory_space<vmem>>, vector<4x256xf32>,
    %c4_110 = arith.constant 4 : index
    %c0_111 = arith.constant 0 : index
    %152 = vector.load %arg8[%c4_110, %c0_111] : memref<9x256xf32, #tpu.memory_space<vmem>>, vector<1x256xf32>
    %153 = vector.broadcast %152 : vector<1x256xf32> to vector<4x256xf32>
    %154 = arith.mulf %131, %153 : vector<4x256xf32>
    %c16_112 = arith.constant 16 : index
    %c0_113 = arith.constant 0 : index
    %155 = vector.load %arg10[%c16_112, %c0_113] : memref<36x256xf32, #tpu.memory_space<vmem>>, vector<4x256xf32>
    tpu.vector_store %arg10[%c16_112, %c0_113], %154 {strides = array<i32>} : memref<36x256xf32, #tpu.memory_space<vmem>>, vector<4x256xf32>,
    %c255_i32_114 = arith.constant 255 : i32
    %156 = tpu.dynamic_rotate %131 by %c255_i32_114 dim 1 : vector<4x256xf32>, i32 -> vector<4x256xf32>
    %c5_115 = arith.constant 5 : index
    %c0_116 = arith.constant 0 : index
    %157 = vector.load %arg8[%c5_115, %c0_116] : memref<9x256xf32, #tpu.memory_space<vmem>>, vector<1x256xf32>
    %158 = vector.broadcast %157 : vector<1x256xf32> to vector<4x256xf32>
    %159 = arith.mulf %156, %158 : vector<4x256xf32>
    %c20_117 = arith.constant 20 : index
    %c0_118 = arith.constant 0 : index
    %160 = vector.load %arg10[%c20_117, %c0_118] : memref<36x256xf32, #tpu.memory_space<vmem>>, vector<4x256xf32>
    tpu.vector_store %arg10[%c20_117, %c0_118], %159 {strides = array<i32>} : memref<36x256xf32, #tpu.memory_space<vmem>>, vector<4x256xf32>,
    %c241_i32_119 = arith.constant 241 : i32
    %161 = tpu.dynamic_rotate %131 by %c241_i32_119 dim 1 : vector<4x256xf32>, i32 -> vector<4x256xf32>
    %c6_120 = arith.constant 6 : index
    %c0_121 = arith.constant 0 : index
    %162 = vector.load %arg8[%c6_120, %c0_121] : memref<9x256xf32, #tpu.memory_space<vmem>>, vector<1x256xf32>
    %163 = vector.broadcast %162 : vector<1x256xf32> to vector<4x256xf32>
    %164 = arith.mulf %161, %163 : vector<4x256xf32>
    %c24_122 = arith.constant 24 : index
    %c0_123 = arith.constant 0 : index
    %165 = vector.load %arg10[%c24_122, %c0_123] : memref<36x256xf32, #tpu.memory_space<vmem>>, vector<4x256xf32>
    tpu.vector_store %arg10[%c24_122, %c0_123], %164 {strides = array<i32>} : memref<36x256xf32, #tpu.memory_space<vmem>>, vector<4x256xf32>,
    %c240_i32_124 = arith.constant 240 : i32
    %166 = tpu.dynamic_rotate %131 by %c240_i32_124 dim 1 : vector<4x256xf32>, i32 -> vector<4x256xf32>
    %c7_125 = arith.constant 7 : index
    %c0_126 = arith.constant 0 : index
    %167 = vector.load %arg8[%c7_125, %c0_126] : memref<9x256xf32, #tpu.memory_space<vmem>>, vector<1x256xf32>
    %168 = vector.broadcast %167 : vector<1x256xf32> to vector<4x256xf32>
    %169 = arith.mulf %166, %168 : vector<4x256xf32>
    %c28_127 = arith.constant 28 : index
    %c0_128 = arith.constant 0 : index
    %170 = vector.load %arg10[%c28_127, %c0_128] : memref<36x256xf32, #tpu.memory_space<vmem>>, vector<4x256xf32>
    tpu.vector_store %arg10[%c28_127, %c0_128], %169 {strides = array<i32>} : memref<36x256xf32, #tpu.memory_space<vmem>>, vector<4x256xf32>,
    %c239_i32_129 = arith.constant 239 : i32
    %171 = tpu.dynamic_rotate %131 by %c239_i32_129 dim 1 : vector<4x256xf32>, i32 -> vector<4x256xf32>
    %c8_130 = arith.constant 8 : index
    %c0_131 = arith.constant 0 : index
    %172 = vector.load %arg8[%c8_130, %c0_131] : memref<9x256xf32, #tpu.memory_space<vmem>>, vector<1x256xf32>
    %173 = vector.broadcast %172 : vector<1x256xf32> to vector<4x256xf32>
    %174 = arith.mulf %171, %173 : vector<4x256xf32>
    %c32_132 = arith.constant 32 : index
    %c0_133 = arith.constant 0 : index
    %175 = vector.load %arg10[%c32_132, %c0_133] : memref<36x256xf32, #tpu.memory_space<vmem>>, vector<4x256xf32>
    tpu.vector_store %arg10[%c32_132, %c0_133], %174 {strides = array<i32>} : memref<36x256xf32, #tpu.memory_space<vmem>>, vector<4x256xf32>,
    %c0_134 = arith.constant 0 : index
    %c0_135 = arith.constant 0 : index
    %176 = vector.load %arg4[%c0_134, %c0_135] : memref<32x36xbf16, #tpu.memory_space<vmem>>, vector<32x36xbf16>
    %c0_136 = arith.constant 0 : index
    %c0_137 = arith.constant 0 : index
    %177 = vector.load %arg10[%c0_136, %c0_137] : memref<36x256xf32, #tpu.memory_space<vmem>>, vector<36x256xf32>
    %178 = arith.truncf %177 : vector<36x256xf32> to vector<36x256xbf16>
    %cst_138 = arith.constant dense<0.000000e+00> : vector<32x256xf32>
    %179 = tpu.matmul %176, %178, %cst_138 {dimension_numbers = #tpu.dot_dimension_numbers<[1], [0], [0], [1], [0, 0, 1, 1], [], []>} : vector<32x36xbf16>, vector<36x256xbf16>, vector<32x256xf32> -> vector<32x256xf32>
    %c1_139 = arith.constant 1 : index
    %c0_140 = arith.constant 0 : index
    %c0_141 = arith.constant 0 : index
    %180 = vector.load %arg5[%c1_139, %c0_140, %c0_141] : memref<4x32x1xf32, #tpu.memory_space<vmem>>, vector<1x32x1xf32>
    %181 = vector.shape_cast %180 : vector<1x32x1xf32> to vector<32x1xf32>
    %182 = vector.broadcast %181 : vector<32x1xf32> to vector<32x256xf32>
    %183 = arith.addf %179, %182 : vector<32x256xf32>
    %184 = arith.negf %183 : vector<32x256xf32>
    %185 = math.exp %184 : vector<32x256xf32>
    %cst_142 = arith.constant 1.000000e+00 : f32
    %186 = vector.broadcast %cst_142 : f32 to vector<32x256xf32>
    %187 = arith.addf %186, %185 : vector<32x256xf32>
    %188 = arith.divf %186, %187 : vector<32x256xf32>
    %189 = arith.mulf %183, %188 : vector<32x256xf32>
    %c17_i32_143 = arith.constant 17 : i32
    %190 = tpu.dynamic_rotate %189 by %c17_i32_143 dim 1 : vector<32x256xf32>, i32 -> vector<32x256xf32>
    %c0_144 = arith.constant 0 : index
    %c0_145 = arith.constant 0 : index
    %191 = vector.load %arg8[%c0_144, %c0_145] : memref<9x256xf32, #tpu.memory_space<vmem>>, vector<1x256xf32>
    %192 = vector.broadcast %191 : vector<1x256xf32> to vector<32x256xf32>
    %193 = arith.mulf %190, %192 : vector<32x256xf32>
    %c0_146 = arith.constant 0 : index
    %c0_147 = arith.constant 0 : index
    %194 = vector.load %arg11[%c0_146, %c0_147] : memref<288x256xf32, #tpu.memory_space<vmem>>, vector<32x256xf32>
    tpu.vector_store %arg11[%c0_146, %c0_147], %193 {strides = array<i32>} : memref<288x256xf32, #tpu.memory_space<vmem>>, vector<32x256xf32>,
    %c16_i32_148 = arith.constant 16 : i32
    %195 = tpu.dynamic_rotate %189 by %c16_i32_148 dim 1 : vector<32x256xf32>, i32 -> vector<32x256xf32>
    %c1_149 = arith.constant 1 : index
    %c0_150 = arith.constant 0 : index
    %196 = vector.load %arg8[%c1_149, %c0_150] : memref<9x256xf32, #tpu.memory_space<vmem>>, vector<1x256xf32>
    %197 = vector.broadcast %196 : vector<1x256xf32> to vector<32x256xf32>
    %198 = arith.mulf %195, %197 : vector<32x256xf32>
    %c32_151 = arith.constant 32 : index
    %c0_152 = arith.constant 0 : index
    %199 = vector.load %arg11[%c32_151, %c0_152] : memref<288x256xf32, #tpu.memory_space<vmem>>, vector<32x256xf32>
    tpu.vector_store %arg11[%c32_151, %c0_152], %198 {strides = array<i32>} : memref<288x256xf32, #tpu.memory_space<vmem>>, vector<32x256xf32>,
    %c15_i32_153 = arith.constant 15 : i32
    %200 = tpu.dynamic_rotate %189 by %c15_i32_153 dim 1 : vector<32x256xf32>, i32 -> vector<32x256xf32>
    %c2_154 = arith.constant 2 : index
    %c0_155 = arith.constant 0 : index
    %201 = vector.load %arg8[%c2_154, %c0_155] : memref<9x256xf32, #tpu.memory_space<vmem>>, vector<1x256xf32>
    %202 = vector.broadcast %201 : vector<1x256xf32> to vector<32x256xf32>
    %203 = arith.mulf %200, %202 : vector<32x256xf32>
    %c64_156 = arith.constant 64 : index
    %c0_157 = arith.constant 0 : index
    %204 = vector.load %arg11[%c64_156, %c0_157] : memref<288x256xf32, #tpu.memory_space<vmem>>, vector<32x256xf32>
    tpu.vector_store %arg11[%c64_156, %c0_157], %203 {strides = array<i32>} : memref<288x256xf32, #tpu.memory_space<vmem>>, vector<32x256xf32>,
    %c1_i32_158 = arith.constant 1 : i32
    %205 = tpu.dynamic_rotate %189 by %c1_i32_158 dim 1 : vector<32x256xf32>, i32 -> vector<32x256xf32>
    %c3_159 = arith.constant 3 : index
    %c0_160 = arith.constant 0 : index
    %206 = vector.load %arg8[%c3_159, %c0_160] : memref<9x256xf32, #tpu.memory_space<vmem>>, vector<1x256xf32>
    %207 = vector.broadcast %206 : vector<1x256xf32> to vector<32x256xf32>
    %208 = arith.mulf %205, %207 : vector<32x256xf32>
    %c96_161 = arith.constant 96 : index
    %c0_162 = arith.constant 0 : index
    %209 = vector.load %arg11[%c96_161, %c0_162] : memref<288x256xf32, #tpu.memory_space<vmem>>, vector<32x256xf32>
    tpu.vector_store %arg11[%c96_161, %c0_162], %208 {strides = array<i32>} : memref<288x256xf32, #tpu.memory_space<vmem>>, vector<32x256xf32>,
    %c4_163 = arith.constant 4 : index
    %c0_164 = arith.constant 0 : index
    %210 = vector.load %arg8[%c4_163, %c0_164] : memref<9x256xf32, #tpu.memory_space<vmem>>, vector<1x256xf32>
    %211 = vector.broadcast %210 : vector<1x256xf32> to vector<32x256xf32>
    %212 = arith.mulf %189, %211 : vector<32x256xf32>
    %c128_165 = arith.constant 128 : index
    %c0_166 = arith.constant 0 : index
    %213 = vector.load %arg11[%c128_165, %c0_166] : memref<288x256xf32, #tpu.memory_space<vmem>>, vector<32x256xf32>
    tpu.vector_store %arg11[%c128_165, %c0_166], %212 {strides = array<i32>} : memref<288x256xf32, #tpu.memory_space<vmem>>, vector<32x256xf32>,
    %c255_i32_167 = arith.constant 255 : i32
    %214 = tpu.dynamic_rotate %189 by %c255_i32_167 dim 1 : vector<32x256xf32>, i32 -> vector<32x256xf32>
    %c5_168 = arith.constant 5 : index
    %c0_169 = arith.constant 0 : index
    %215 = vector.load %arg8[%c5_168, %c0_169] : memref<9x256xf32, #tpu.memory_space<vmem>>, vector<1x256xf32>
    %216 = vector.broadcast %215 : vector<1x256xf32> to vector<32x256xf32>
    %217 = arith.mulf %214, %216 : vector<32x256xf32>
    %c160_170 = arith.constant 160 : index
    %c0_171 = arith.constant 0 : index
    %218 = vector.load %arg11[%c160_170, %c0_171] : memref<288x256xf32, #tpu.memory_space<vmem>>, vector<32x256xf32>
    tpu.vector_store %arg11[%c160_170, %c0_171], %217 {strides = array<i32>} : memref<288x256xf32, #tpu.memory_space<vmem>>, vector<32x256xf32>,
    %c241_i32_172 = arith.constant 241 : i32
    %219 = tpu.dynamic_rotate %189 by %c241_i32_172 dim 1 : vector<32x256xf32>, i32 -> vector<32x256xf32>
    %c6_173 = arith.constant 6 : index
    %c0_174 = arith.constant 0 : index
    %220 = vector.load %arg8[%c6_173, %c0_174] : memref<9x256xf32, #tpu.memory_space<vmem>>, vector<1x256xf32>
    %221 = vector.broadcast %220 : vector<1x256xf32> to vector<32x256xf32>
    %222 = arith.mulf %219, %221 : vector<32x256xf32>
    %c192_175 = arith.constant 192 : index
    %c0_176 = arith.constant 0 : index
    %223 = vector.load %arg11[%c192_175, %c0_176] : memref<288x256xf32, #tpu.memory_space<vmem>>, vector<32x256xf32>
    tpu.vector_store %arg11[%c192_175, %c0_176], %222 {strides = array<i32>} : memref<288x256xf32, #tpu.memory_space<vmem>>, vector<32x256xf32>,
    %c240_i32_177 = arith.constant 240 : i32
    %224 = tpu.dynamic_rotate %189 by %c240_i32_177 dim 1 : vector<32x256xf32>, i32 -> vector<32x256xf32>
    %c7_178 = arith.constant 7 : index
    %c0_179 = arith.constant 0 : index
    %225 = vector.load %arg8[%c7_178, %c0_179] : memref<9x256xf32, #tpu.memory_space<vmem>>, vector<1x256xf32>
    %226 = vector.broadcast %225 : vector<1x256xf32> to vector<32x256xf32>
    %227 = arith.mulf %224, %226 : vector<32x256xf32>
    %c224_180 = arith.constant 224 : index
    %c0_181 = arith.constant 0 : index
    %228 = vector.load %arg11[%c224_180, %c0_181] : memref<288x256xf32, #tpu.memory_space<vmem>>, vector<32x256xf32>
    tpu.vector_store %arg11[%c224_180, %c0_181], %227 {strides = array<i32>} : memref<288x256xf32, #tpu.memory_space<vmem>>, vector<32x256xf32>,
    %c239_i32_182 = arith.constant 239 : i32
    %229 = tpu.dynamic_rotate %189 by %c239_i32_182 dim 1 : vector<32x256xf32>, i32 -> vector<32x256xf32>
    %c8_183 = arith.constant 8 : index
    %c0_184 = arith.constant 0 : index
    %230 = vector.load %arg8[%c8_183, %c0_184] : memref<9x256xf32, #tpu.memory_space<vmem>>, vector<1x256xf32>
    %231 = vector.broadcast %230 : vector<1x256xf32> to vector<32x256xf32>
    %232 = arith.mulf %229, %231 : vector<32x256xf32>
    %c256_185 = arith.constant 256 : index
    %c0_186 = arith.constant 0 : index
    %233 = vector.load %arg11[%c256_185, %c0_186] : memref<288x256xf32, #tpu.memory_space<vmem>>, vector<32x256xf32>
    tpu.vector_store %arg11[%c256_185, %c0_186], %232 {strides = array<i32>} : memref<288x256xf32, #tpu.memory_space<vmem>>, vector<32x256xf32>,
    %c0_187 = arith.constant 0 : index
    %c0_188 = arith.constant 0 : index
    %234 = vector.load %arg6[%c0_187, %c0_188] : memref<4x288xbf16, #tpu.memory_space<vmem>>, vector<4x288xbf16>
    %c0_189 = arith.constant 0 : index
    %c0_190 = arith.constant 0 : index
    %235 = vector.load %arg11[%c0_189, %c0_190] : memref<288x256xf32, #tpu.memory_space<vmem>>, vector<288x256xf32>
    %236 = arith.truncf %235 : vector<288x256xf32> to vector<288x256xbf16>
    %cst_191 = arith.constant dense<0.000000e+00> : vector<4x256xf32>
    %237 = tpu.matmul %234, %236, %cst_191 {dimension_numbers = #tpu.dot_dimension_numbers<[1], [0], [0], [1], [0, 0, 1, 1], [], []>} : vector<4x288xbf16>, vector<288x256xbf16>, vector<4x256xf32> -> vector<4x256xf32>
    %c0_192 = arith.constant 0 : index
    %c0_193 = arith.constant 0 : index
    %238 = vector.load %arg7[%c0_192, %c0_193] : memref<4x1xf32, #tpu.memory_space<vmem>>, vector<4x1xf32>
    %239 = vector.broadcast %238 : vector<4x1xf32> to vector<4x256xf32>
    %240 = arith.addf %237, %239 : vector<4x256xf32>
    %cst_194 = arith.constant 0.0374240167 : f32
    %241 = vector.broadcast %cst_194 : f32 to vector<4x256xf32>
    %242 = arith.mulf %241, %240 : vector<4x256xf32>
    %243 = arith.subf %131, %242 : vector<4x256xf32>
    %cst_195 = arith.constant 1.00109923 : f32
    %244 = vector.broadcast %cst_195 : f32 to vector<4x256xf32>
    %245 = arith.mulf %244, %243 : vector<4x256xf32>
    %c1_196 = arith.constant 1 : index
    %c0_197 = arith.constant 0 : index
    %c0_198 = arith.constant 0 : index
    %c0_199 = arith.constant 0 : index
    %246 = vector.load %arg3[%c1_196, %c0_197, %c0_198, %c0_199] : memref<4x1x4x256xf32, #tpu.memory_space<vmem>>, vector<1x1x4x256xf32>
    %247 = vector.shape_cast %246 : vector<1x1x4x256xf32> to vector<4x256xf32>
    %cst_200 = arith.constant 0.0282121748 : f32
    %248 = vector.broadcast %cst_200 : f32 to vector<4x256xf32>
    %249 = arith.mulf %248, %247 : vector<4x256xf32>
    %250 = arith.addf %245, %249 : vector<4x256xf32>
    %c17_i32_201 = arith.constant 17 : i32
    %251 = tpu.dynamic_rotate %250 by %c17_i32_201 dim 1 : vector<4x256xf32>, i32 -> vector<4x256xf32>
    %c0_202 = arith.constant 0 : index
    %c0_203 = arith.constant 0 : index
    %252 = vector.load %arg8[%c0_202, %c0_203] : memref<9x256xf32, #tpu.memory_space<vmem>>, vector<1x256xf32>
    %253 = vector.broadcast %252 : vector<1x256xf32> to vector<4x256xf32>
    %254 = arith.mulf %251, %253 : vector<4x256xf32>
    %c0_204 = arith.constant 0 : index
    %c0_205 = arith.constant 0 : index
    %255 = vector.load %arg10[%c0_204, %c0_205] : memref<36x256xf32, #tpu.memory_space<vmem>>, vector<4x256xf32>
    tpu.vector_store %arg10[%c0_204, %c0_205], %254 {strides = array<i32>} : memref<36x256xf32, #tpu.memory_space<vmem>>, vector<4x256xf32>,
    %c16_i32_206 = arith.constant 16 : i32
    %256 = tpu.dynamic_rotate %250 by %c16_i32_206 dim 1 : vector<4x256xf32>, i32 -> vector<4x256xf32>
    %c1_207 = arith.constant 1 : index
    %c0_208 = arith.constant 0 : index
    %257 = vector.load %arg8[%c1_207, %c0_208] : memref<9x256xf32, #tpu.memory_space<vmem>>, vector<1x256xf32>
    %258 = vector.broadcast %257 : vector<1x256xf32> to vector<4x256xf32>
    %259 = arith.mulf %256, %258 : vector<4x256xf32>
    %c4_209 = arith.constant 4 : index
    %c0_210 = arith.constant 0 : index
    %260 = vector.load %arg10[%c4_209, %c0_210] : memref<36x256xf32, #tpu.memory_space<vmem>>, vector<4x256xf32>
    tpu.vector_store %arg10[%c4_209, %c0_210], %259 {strides = array<i32>} : memref<36x256xf32, #tpu.memory_space<vmem>>, vector<4x256xf32>,
    %c15_i32_211 = arith.constant 15 : i32
    %261 = tpu.dynamic_rotate %250 by %c15_i32_211 dim 1 : vector<4x256xf32>, i32 -> vector<4x256xf32>
    %c2_212 = arith.constant 2 : index
    %c0_213 = arith.constant 0 : index
    %262 = vector.load %arg8[%c2_212, %c0_213] : memref<9x256xf32, #tpu.memory_space<vmem>>, vector<1x256xf32>
    %263 = vector.broadcast %262 : vector<1x256xf32> to vector<4x256xf32>
    %264 = arith.mulf %261, %263 : vector<4x256xf32>
    %c8_214 = arith.constant 8 : index
    %c0_215 = arith.constant 0 : index
    %265 = vector.load %arg10[%c8_214, %c0_215] : memref<36x256xf32, #tpu.memory_space<vmem>>, vector<4x256xf32>
    tpu.vector_store %arg10[%c8_214, %c0_215], %264 {strides = array<i32>} : memref<36x256xf32, #tpu.memory_space<vmem>>, vector<4x256xf32>,
    %c1_i32_216 = arith.constant 1 : i32
    %266 = tpu.dynamic_rotate %250 by %c1_i32_216 dim 1 : vector<4x256xf32>, i32 -> vector<4x256xf32>
    %c3_217 = arith.constant 3 : index
    %c0_218 = arith.constant 0 : index
    %267 = vector.load %arg8[%c3_217, %c0_218] : memref<9x256xf32, #tpu.memory_space<vmem>>, vector<1x256xf32>
    %268 = vector.broadcast %267 : vector<1x256xf32> to vector<4x256xf32>
    %269 = arith.mulf %266, %268 : vector<4x256xf32>
    %c12_219 = arith.constant 12 : index
    %c0_220 = arith.constant 0 : index
    %270 = vector.load %arg10[%c12_219, %c0_220] : memref<36x256xf32, #tpu.memory_space<vmem>>, vector<4x256xf32>
    tpu.vector_store %arg10[%c12_219, %c0_220], %269 {strides = array<i32>} : memref<36x256xf32, #tpu.memory_space<vmem>>, vector<4x256xf32>,
    %c4_221 = arith.constant 4 : index
    %c0_222 = arith.constant 0 : index
    %271 = vector.load %arg8[%c4_221, %c0_222] : memref<9x256xf32, #tpu.memory_space<vmem>>, vector<1x256xf32>
    %272 = vector.broadcast %271 : vector<1x256xf32> to vector<4x256xf32>
    %273 = arith.mulf %250, %272 : vector<4x256xf32>
    %c16_223 = arith.constant 16 : index
    %c0_224 = arith.constant 0 : index
    %274 = vector.load %arg10[%c16_223, %c0_224] : memref<36x256xf32, #tpu.memory_space<vmem>>, vector<4x256xf32>
    tpu.vector_store %arg10[%c16_223, %c0_224], %273 {strides = array<i32>} : memref<36x256xf32, #tpu.memory_space<vmem>>, vector<4x256xf32>,
    %c255_i32_225 = arith.constant 255 : i32
    %275 = tpu.dynamic_rotate %250 by %c255_i32_225 dim 1 : vector<4x256xf32>, i32 -> vector<4x256xf32>
    %c5_226 = arith.constant 5 : index
    %c0_227 = arith.constant 0 : index
    %276 = vector.load %arg8[%c5_226, %c0_227] : memref<9x256xf32, #tpu.memory_space<vmem>>, vector<1x256xf32>
    %277 = vector.broadcast %276 : vector<1x256xf32> to vector<4x256xf32>
    %278 = arith.mulf %275, %277 : vector<4x256xf32>
    %c20_228 = arith.constant 20 : index
    %c0_229 = arith.constant 0 : index
    %279 = vector.load %arg10[%c20_228, %c0_229] : memref<36x256xf32, #tpu.memory_space<vmem>>, vector<4x256xf32>
    tpu.vector_store %arg10[%c20_228, %c0_229], %278 {strides = array<i32>} : memref<36x256xf32, #tpu.memory_space<vmem>>, vector<4x256xf32>,
    %c241_i32_230 = arith.constant 241 : i32
    %280 = tpu.dynamic_rotate %250 by %c241_i32_230 dim 1 : vector<4x256xf32>, i32 -> vector<4x256xf32>
    %c6_231 = arith.constant 6 : index
    %c0_232 = arith.constant 0 : index
    %281 = vector.load %arg8[%c6_231, %c0_232] : memref<9x256xf32, #tpu.memory_space<vmem>>, vector<1x256xf32>
    %282 = vector.broadcast %281 : vector<1x256xf32> to vector<4x256xf32>
    %283 = arith.mulf %280, %282 : vector<4x256xf32>
    %c24_233 = arith.constant 24 : index
    %c0_234 = arith.constant 0 : index
    %284 = vector.load %arg10[%c24_233, %c0_234] : memref<36x256xf32, #tpu.memory_space<vmem>>, vector<4x256xf32>
    tpu.vector_store %arg10[%c24_233, %c0_234], %283 {strides = array<i32>} : memref<36x256xf32, #tpu.memory_space<vmem>>, vector<4x256xf32>,
    %c240_i32_235 = arith.constant 240 : i32
    %285 = tpu.dynamic_rotate %250 by %c240_i32_235 dim 1 : vector<4x256xf32>, i32 -> vector<4x256xf32>
    %c7_236 = arith.constant 7 : index
    %c0_237 = arith.constant 0 : index
    %286 = vector.load %arg8[%c7_236, %c0_237] : memref<9x256xf32, #tpu.memory_space<vmem>>, vector<1x256xf32>
    %287 = vector.broadcast %286 : vector<1x256xf32> to vector<4x256xf32>
    %288 = arith.mulf %285, %287 : vector<4x256xf32>
    %c28_238 = arith.constant 28 : index
    %c0_239 = arith.constant 0 : index
    %289 = vector.load %arg10[%c28_238, %c0_239] : memref<36x256xf32, #tpu.memory_space<vmem>>, vector<4x256xf32>
    tpu.vector_store %arg10[%c28_238, %c0_239], %288 {strides = array<i32>} : memref<36x256xf32, #tpu.memory_space<vmem>>, vector<4x256xf32>,
    %c239_i32_240 = arith.constant 239 : i32
    %290 = tpu.dynamic_rotate %250 by %c239_i32_240 dim 1 : vector<4x256xf32>, i32 -> vector<4x256xf32>
    %c8_241 = arith.constant 8 : index
    %c0_242 = arith.constant 0 : index
    %291 = vector.load %arg8[%c8_241, %c0_242] : memref<9x256xf32, #tpu.memory_space<vmem>>, vector<1x256xf32>
    %292 = vector.broadcast %291 : vector<1x256xf32> to vector<4x256xf32>
    %293 = arith.mulf %290, %292 : vector<4x256xf32>
    %c32_243 = arith.constant 32 : index
    %c0_244 = arith.constant 0 : index
    %294 = vector.load %arg10[%c32_243, %c0_244] : memref<36x256xf32, #tpu.memory_space<vmem>>, vector<4x256xf32>
    tpu.vector_store %arg10[%c32_243, %c0_244], %293 {strides = array<i32>} : memref<36x256xf32, #tpu.memory_space<vmem>>, vector<4x256xf32>,
    %c0_245 = arith.constant 0 : index
    %c0_246 = arith.constant 0 : index
    %295 = vector.load %arg4[%c0_245, %c0_246] : memref<32x36xbf16, #tpu.memory_space<vmem>>, vector<32x36xbf16>
    %c0_247 = arith.constant 0 : index
    %c0_248 = arith.constant 0 : index
    %296 = vector.load %arg10[%c0_247, %c0_248] : memref<36x256xf32, #tpu.memory_space<vmem>>, vector<36x256xf32>
    %297 = arith.truncf %296 : vector<36x256xf32> to vector<36x256xbf16>
    %cst_249 = arith.constant dense<0.000000e+00> : vector<32x256xf32>
    %298 = tpu.matmul %295, %297, %cst_249 {dimension_numbers = #tpu.dot_dimension_numbers<[1], [0], [0], [1], [0, 0, 1, 1], [], []>} : vector<32x36xbf16>, vector<36x256xbf16>, vector<32x256xf32> -> vector<32x256xf32>
    %c2_250 = arith.constant 2 : index
    %c0_251 = arith.constant 0 : index
    %c0_252 = arith.constant 0 : index
    %299 = vector.load %arg5[%c2_250, %c0_251, %c0_252] : memref<4x32x1xf32, #tpu.memory_space<vmem>>, vector<1x32x1xf32>
    %300 = vector.shape_cast %299 : vector<1x32x1xf32> to vector<32x1xf32>
    %301 = vector.broadcast %300 : vector<32x1xf32> to vector<32x256xf32>
    %302 = arith.addf %298, %301 : vector<32x256xf32>
    %303 = arith.negf %302 : vector<32x256xf32>
    %304 = math.exp %303 : vector<32x256xf32>
    %cst_253 = arith.constant 1.000000e+00 : f32
    %305 = vector.broadcast %cst_253 : f32 to vector<32x256xf32>
    %306 = arith.addf %305, %304 : vector<32x256xf32>
    %307 = arith.divf %305, %306 : vector<32x256xf32>
    %308 = arith.mulf %302, %307 : vector<32x256xf32>
    %c17_i32_254 = arith.constant 17 : i32
    %309 = tpu.dynamic_rotate %308 by %c17_i32_254 dim 1 : vector<32x256xf32>, i32 -> vector<32x256xf32>
    %c0_255 = arith.constant 0 : index
    %c0_256 = arith.constant 0 : index
    %310 = vector.load %arg8[%c0_255, %c0_256] : memref<9x256xf32, #tpu.memory_space<vmem>>, vector<1x256xf32>
    %311 = vector.broadcast %310 : vector<1x256xf32> to vector<32x256xf32>
    %312 = arith.mulf %309, %311 : vector<32x256xf32>
    %c0_257 = arith.constant 0 : index
    %c0_258 = arith.constant 0 : index
    %313 = vector.load %arg11[%c0_257, %c0_258] : memref<288x256xf32, #tpu.memory_space<vmem>>, vector<32x256xf32>
    tpu.vector_store %arg11[%c0_257, %c0_258], %312 {strides = array<i32>} : memref<288x256xf32, #tpu.memory_space<vmem>>, vector<32x256xf32>,
    %c16_i32_259 = arith.constant 16 : i32
    %314 = tpu.dynamic_rotate %308 by %c16_i32_259 dim 1 : vector<32x256xf32>, i32 -> vector<32x256xf32>
    %c1_260 = arith.constant 1 : index
    %c0_261 = arith.constant 0 : index
    %315 = vector.load %arg8[%c1_260, %c0_261] : memref<9x256xf32, #tpu.memory_space<vmem>>, vector<1x256xf32>
    %316 = vector.broadcast %315 : vector<1x256xf32> to vector<32x256xf32>
    %317 = arith.mulf %314, %316 : vector<32x256xf32>
    %c32_262 = arith.constant 32 : index
    %c0_263 = arith.constant 0 : index
    %318 = vector.load %arg11[%c32_262, %c0_263] : memref<288x256xf32, #tpu.memory_space<vmem>>, vector<32x256xf32>
    tpu.vector_store %arg11[%c32_262, %c0_263], %317 {strides = array<i32>} : memref<288x256xf32, #tpu.memory_space<vmem>>, vector<32x256xf32>,
    %c15_i32_264 = arith.constant 15 : i32
    %319 = tpu.dynamic_rotate %308 by %c15_i32_264 dim 1 : vector<32x256xf32>, i32 -> vector<32x256xf32>
    %c2_265 = arith.constant 2 : index
    %c0_266 = arith.constant 0 : index
    %320 = vector.load %arg8[%c2_265, %c0_266] : memref<9x256xf32, #tpu.memory_space<vmem>>, vector<1x256xf32>
    %321 = vector.broadcast %320 : vector<1x256xf32> to vector<32x256xf32>
    %322 = arith.mulf %319, %321 : vector<32x256xf32>
    %c64_267 = arith.constant 64 : index
    %c0_268 = arith.constant 0 : index
    %323 = vector.load %arg11[%c64_267, %c0_268] : memref<288x256xf32, #tpu.memory_space<vmem>>, vector<32x256xf32>
    tpu.vector_store %arg11[%c64_267, %c0_268], %322 {strides = array<i32>} : memref<288x256xf32, #tpu.memory_space<vmem>>, vector<32x256xf32>,
    %c1_i32_269 = arith.constant 1 : i32
    %324 = tpu.dynamic_rotate %308 by %c1_i32_269 dim 1 : vector<32x256xf32>, i32 -> vector<32x256xf32>
    %c3_270 = arith.constant 3 : index
    %c0_271 = arith.constant 0 : index
    %325 = vector.load %arg8[%c3_270, %c0_271] : memref<9x256xf32, #tpu.memory_space<vmem>>, vector<1x256xf32>
    %326 = vector.broadcast %325 : vector<1x256xf32> to vector<32x256xf32>
    %327 = arith.mulf %324, %326 : vector<32x256xf32>
    %c96_272 = arith.constant 96 : index
    %c0_273 = arith.constant 0 : index
    %328 = vector.load %arg11[%c96_272, %c0_273] : memref<288x256xf32, #tpu.memory_space<vmem>>, vector<32x256xf32>
    tpu.vector_store %arg11[%c96_272, %c0_273], %327 {strides = array<i32>} : memref<288x256xf32, #tpu.memory_space<vmem>>, vector<32x256xf32>,
    %c4_274 = arith.constant 4 : index
    %c0_275 = arith.constant 0 : index
    %329 = vector.load %arg8[%c4_274, %c0_275] : memref<9x256xf32, #tpu.memory_space<vmem>>, vector<1x256xf32>
    %330 = vector.broadcast %329 : vector<1x256xf32> to vector<32x256xf32>
    %331 = arith.mulf %308, %330 : vector<32x256xf32>
    %c128_276 = arith.constant 128 : index
    %c0_277 = arith.constant 0 : index
    %332 = vector.load %arg11[%c128_276, %c0_277] : memref<288x256xf32, #tpu.memory_space<vmem>>, vector<32x256xf32>
    tpu.vector_store %arg11[%c128_276, %c0_277], %331 {strides = array<i32>} : memref<288x256xf32, #tpu.memory_space<vmem>>, vector<32x256xf32>,
    %c255_i32_278 = arith.constant 255 : i32
    %333 = tpu.dynamic_rotate %308 by %c255_i32_278 dim 1 : vector<32x256xf32>, i32 -> vector<32x256xf32>
    %c5_279 = arith.constant 5 : index
    %c0_280 = arith.constant 0 : index
    %334 = vector.load %arg8[%c5_279, %c0_280] : memref<9x256xf32, #tpu.memory_space<vmem>>, vector<1x256xf32>
    %335 = vector.broadcast %334 : vector<1x256xf32> to vector<32x256xf32>
    %336 = arith.mulf %333, %335 : vector<32x256xf32>
    %c160_281 = arith.constant 160 : index
    %c0_282 = arith.constant 0 : index
    %337 = vector.load %arg11[%c160_281, %c0_282] : memref<288x256xf32, #tpu.memory_space<vmem>>, vector<32x256xf32>
    tpu.vector_store %arg11[%c160_281, %c0_282], %336 {strides = array<i32>} : memref<288x256xf32, #tpu.memory_space<vmem>>, vector<32x256xf32>,
    %c241_i32_283 = arith.constant 241 : i32
    %338 = tpu.dynamic_rotate %308 by %c241_i32_283 dim 1 : vector<32x256xf32>, i32 -> vector<32x256xf32>
    %c6_284 = arith.constant 6 : index
    %c0_285 = arith.constant 0 : index
    %339 = vector.load %arg8[%c6_284, %c0_285] : memref<9x256xf32, #tpu.memory_space<vmem>>, vector<1x256xf32>
    %340 = vector.broadcast %339 : vector<1x256xf32> to vector<32x256xf32>
    %341 = arith.mulf %338, %340 : vector<32x256xf32>
    %c192_286 = arith.constant 192 : index
    %c0_287 = arith.constant 0 : index
    %342 = vector.load %arg11[%c192_286, %c0_287] : memref<288x256xf32, #tpu.memory_space<vmem>>, vector<32x256xf32>
    tpu.vector_store %arg11[%c192_286, %c0_287], %341 {strides = array<i32>} : memref<288x256xf32, #tpu.memory_space<vmem>>, vector<32x256xf32>,
    %c240_i32_288 = arith.constant 240 : i32
    %343 = tpu.dynamic_rotate %308 by %c240_i32_288 dim 1 : vector<32x256xf32>, i32 -> vector<32x256xf32>
    %c7_289 = arith.constant 7 : index
    %c0_290 = arith.constant 0 : index
    %344 = vector.load %arg8[%c7_289, %c0_290] : memref<9x256xf32, #tpu.memory_space<vmem>>, vector<1x256xf32>
    %345 = vector.broadcast %344 : vector<1x256xf32> to vector<32x256xf32>
    %346 = arith.mulf %343, %345 : vector<32x256xf32>
    %c224_291 = arith.constant 224 : index
    %c0_292 = arith.constant 0 : index
    %347 = vector.load %arg11[%c224_291, %c0_292] : memref<288x256xf32, #tpu.memory_space<vmem>>, vector<32x256xf32>
    tpu.vector_store %arg11[%c224_291, %c0_292], %346 {strides = array<i32>} : memref<288x256xf32, #tpu.memory_space<vmem>>, vector<32x256xf32>,
    %c239_i32_293 = arith.constant 239 : i32
    %348 = tpu.dynamic_rotate %308 by %c239_i32_293 dim 1 : vector<32x256xf32>, i32 -> vector<32x256xf32>
    %c8_294 = arith.constant 8 : index
    %c0_295 = arith.constant 0 : index
    %349 = vector.load %arg8[%c8_294, %c0_295] : memref<9x256xf32, #tpu.memory_space<vmem>>, vector<1x256xf32>
    %350 = vector.broadcast %349 : vector<1x256xf32> to vector<32x256xf32>
    %351 = arith.mulf %348, %350 : vector<32x256xf32>
    %c256_296 = arith.constant 256 : index
    %c0_297 = arith.constant 0 : index
    %352 = vector.load %arg11[%c256_296, %c0_297] : memref<288x256xf32, #tpu.memory_space<vmem>>, vector<32x256xf32>
    tpu.vector_store %arg11[%c256_296, %c0_297], %351 {strides = array<i32>} : memref<288x256xf32, #tpu.memory_space<vmem>>, vector<32x256xf32>,
    %c0_298 = arith.constant 0 : index
    %c0_299 = arith.constant 0 : index
    %353 = vector.load %arg6[%c0_298, %c0_299] : memref<4x288xbf16, #tpu.memory_space<vmem>>, vector<4x288xbf16>
    %c0_300 = arith.constant 0 : index
    %c0_301 = arith.constant 0 : index
    %354 = vector.load %arg11[%c0_300, %c0_301] : memref<288x256xf32, #tpu.memory_space<vmem>>, vector<288x256xf32>
    %355 = arith.truncf %354 : vector<288x256xf32> to vector<288x256xbf16>
    %cst_302 = arith.constant dense<0.000000e+00> : vector<4x256xf32>
    %356 = tpu.matmul %353, %355, %cst_302 {dimension_numbers = #tpu.dot_dimension_numbers<[1], [0], [0], [1], [0, 0, 1, 1], [], []>} : vector<4x288xbf16>, vector<288x256xbf16>, vector<4x256xf32> -> vector<4x256xf32>
    %c0_303 = arith.constant 0 : index
    %c0_304 = arith.constant 0 : index
    %357 = vector.load %arg7[%c0_303, %c0_304] : memref<4x1xf32, #tpu.memory_space<vmem>>, vector<4x1xf32>
    %358 = vector.broadcast %357 : vector<4x1xf32> to vector<4x256xf32>
    %359 = arith.addf %356, %358 : vector<4x256xf32>
    %cst_305 = arith.constant 0.0324881896 : f32
    %360 = vector.broadcast %cst_305 : f32 to vector<4x256xf32>
    %361 = arith.mulf %360, %359 : vector<4x256xf32>
    %362 = arith.subf %250, %361 : vector<4x256xf32>
    %cst_306 = arith.constant 1.00057423 : f32
    %363 = vector.broadcast %cst_306 : f32 to vector<4x256xf32>
    %364 = arith.mulf %363, %362 : vector<4x256xf32>
    %c2_307 = arith.constant 2 : index
    %c0_308 = arith.constant 0 : index
    %c0_309 = arith.constant 0 : index
    %c0_310 = arith.constant 0 : index
    %365 = vector.load %arg3[%c2_307, %c0_308, %c0_309, %c0_310] : memref<4x1x4x256xf32, #tpu.memory_space<vmem>>, vector<1x1x4x256xf32>
    %366 = vector.shape_cast %365 : vector<1x1x4x256xf32> to vector<4x256xf32>
    %cst_311 = arith.constant 0.0095912246 : f32
    %367 = vector.broadcast %cst_311 : f32 to vector<4x256xf32>
    %368 = arith.mulf %367, %366 : vector<4x256xf32>
    %369 = arith.addf %364, %368 : vector<4x256xf32>
    %c17_i32_312 = arith.constant 17 : i32
    %370 = tpu.dynamic_rotate %369 by %c17_i32_312 dim 1 : vector<4x256xf32>, i32 -> vector<4x256xf32>
    %c0_313 = arith.constant 0 : index
    %c0_314 = arith.constant 0 : index
    %371 = vector.load %arg8[%c0_313, %c0_314] : memref<9x256xf32, #tpu.memory_space<vmem>>, vector<1x256xf32>
    %372 = vector.broadcast %371 : vector<1x256xf32> to vector<4x256xf32>
    %373 = arith.mulf %370, %372 : vector<4x256xf32>
    %c0_315 = arith.constant 0 : index
    %c0_316 = arith.constant 0 : index
    %374 = vector.load %arg10[%c0_315, %c0_316] : memref<36x256xf32, #tpu.memory_space<vmem>>, vector<4x256xf32>
    tpu.vector_store %arg10[%c0_315, %c0_316], %373 {strides = array<i32>} : memref<36x256xf32, #tpu.memory_space<vmem>>, vector<4x256xf32>,
    %c16_i32_317 = arith.constant 16 : i32
    %375 = tpu.dynamic_rotate %369 by %c16_i32_317 dim 1 : vector<4x256xf32>, i32 -> vector<4x256xf32>
    %c1_318 = arith.constant 1 : index
    %c0_319 = arith.constant 0 : index
    %376 = vector.load %arg8[%c1_318, %c0_319] : memref<9x256xf32, #tpu.memory_space<vmem>>, vector<1x256xf32>
    %377 = vector.broadcast %376 : vector<1x256xf32> to vector<4x256xf32>
    %378 = arith.mulf %375, %377 : vector<4x256xf32>
    %c4_320 = arith.constant 4 : index
    %c0_321 = arith.constant 0 : index
    %379 = vector.load %arg10[%c4_320, %c0_321] : memref<36x256xf32, #tpu.memory_space<vmem>>, vector<4x256xf32>
    tpu.vector_store %arg10[%c4_320, %c0_321], %378 {strides = array<i32>} : memref<36x256xf32, #tpu.memory_space<vmem>>, vector<4x256xf32>,
    %c15_i32_322 = arith.constant 15 : i32
    %380 = tpu.dynamic_rotate %369 by %c15_i32_322 dim 1 : vector<4x256xf32>, i32 -> vector<4x256xf32>
    %c2_323 = arith.constant 2 : index
    %c0_324 = arith.constant 0 : index
    %381 = vector.load %arg8[%c2_323, %c0_324] : memref<9x256xf32, #tpu.memory_space<vmem>>, vector<1x256xf32>
    %382 = vector.broadcast %381 : vector<1x256xf32> to vector<4x256xf32>
    %383 = arith.mulf %380, %382 : vector<4x256xf32>
    %c8_325 = arith.constant 8 : index
    %c0_326 = arith.constant 0 : index
    %384 = vector.load %arg10[%c8_325, %c0_326] : memref<36x256xf32, #tpu.memory_space<vmem>>, vector<4x256xf32>
    tpu.vector_store %arg10[%c8_325, %c0_326], %383 {strides = array<i32>} : memref<36x256xf32, #tpu.memory_space<vmem>>, vector<4x256xf32>,
    %c1_i32_327 = arith.constant 1 : i32
    %385 = tpu.dynamic_rotate %369 by %c1_i32_327 dim 1 : vector<4x256xf32>, i32 -> vector<4x256xf32>
    %c3_328 = arith.constant 3 : index
    %c0_329 = arith.constant 0 : index
    %386 = vector.load %arg8[%c3_328, %c0_329] : memref<9x256xf32, #tpu.memory_space<vmem>>, vector<1x256xf32>
    %387 = vector.broadcast %386 : vector<1x256xf32> to vector<4x256xf32>
    %388 = arith.mulf %385, %387 : vector<4x256xf32>
    %c12_330 = arith.constant 12 : index
    %c0_331 = arith.constant 0 : index
    %389 = vector.load %arg10[%c12_330, %c0_331] : memref<36x256xf32, #tpu.memory_space<vmem>>, vector<4x256xf32>
    tpu.vector_store %arg10[%c12_330, %c0_331], %388 {strides = array<i32>} : memref<36x256xf32, #tpu.memory_space<vmem>>, vector<4x256xf32>,
    %c4_332 = arith.constant 4 : index
    %c0_333 = arith.constant 0 : index
    %390 = vector.load %arg8[%c4_332, %c0_333] : memref<9x256xf32, #tpu.memory_space<vmem>>, vector<1x256xf32>
    %391 = vector.broadcast %390 : vector<1x256xf32> to vector<4x256xf32>
    %392 = arith.mulf %369, %391 : vector<4x256xf32>
    %c16_334 = arith.constant 16 : index
    %c0_335 = arith.constant 0 : index
    %393 = vector.load %arg10[%c16_334, %c0_335] : memref<36x256xf32, #tpu.memory_space<vmem>>, vector<4x256xf32>
    tpu.vector_store %arg10[%c16_334, %c0_335], %392 {strides = array<i32>} : memref<36x256xf32, #tpu.memory_space<vmem>>, vector<4x256xf32>,
    %c255_i32_336 = arith.constant 255 : i32
    %394 = tpu.dynamic_rotate %369 by %c255_i32_336 dim 1 : vector<4x256xf32>, i32 -> vector<4x256xf32>
    %c5_337 = arith.constant 5 : index
    %c0_338 = arith.constant 0 : index
    %395 = vector.load %arg8[%c5_337, %c0_338] : memref<9x256xf32, #tpu.memory_space<vmem>>, vector<1x256xf32>
    %396 = vector.broadcast %395 : vector<1x256xf32> to vector<4x256xf32>
    %397 = arith.mulf %394, %396 : vector<4x256xf32>
    %c20_339 = arith.constant 20 : index
    %c0_340 = arith.constant 0 : index
    %398 = vector.load %arg10[%c20_339, %c0_340] : memref<36x256xf32, #tpu.memory_space<vmem>>, vector<4x256xf32>
    tpu.vector_store %arg10[%c20_339, %c0_340], %397 {strides = array<i32>} : memref<36x256xf32, #tpu.memory_space<vmem>>, vector<4x256xf32>,
    %c241_i32_341 = arith.constant 241 : i32
    %399 = tpu.dynamic_rotate %369 by %c241_i32_341 dim 1 : vector<4x256xf32>, i32 -> vector<4x256xf32>
    %c6_342 = arith.constant 6 : index
    %c0_343 = arith.constant 0 : index
    %400 = vector.load %arg8[%c6_342, %c0_343] : memref<9x256xf32, #tpu.memory_space<vmem>>, vector<1x256xf32>
    %401 = vector.broadcast %400 : vector<1x256xf32> to vector<4x256xf32>
    %402 = arith.mulf %399, %401 : vector<4x256xf32>
    %c24_344 = arith.constant 24 : index
    %c0_345 = arith.constant 0 : index
    %403 = vector.load %arg10[%c24_344, %c0_345] : memref<36x256xf32, #tpu.memory_space<vmem>>, vector<4x256xf32>
    tpu.vector_store %arg10[%c24_344, %c0_345], %402 {strides = array<i32>} : memref<36x256xf32, #tpu.memory_space<vmem>>, vector<4x256xf32>,
    %c240_i32_346 = arith.constant 240 : i32
    %404 = tpu.dynamic_rotate %369 by %c240_i32_346 dim 1 : vector<4x256xf32>, i32 -> vector<4x256xf32>
    %c7_347 = arith.constant 7 : index
    %c0_348 = arith.constant 0 : index
    %405 = vector.load %arg8[%c7_347, %c0_348] : memref<9x256xf32, #tpu.memory_space<vmem>>, vector<1x256xf32>
    %406 = vector.broadcast %405 : vector<1x256xf32> to vector<4x256xf32>
    %407 = arith.mulf %404, %406 : vector<4x256xf32>
    %c28_349 = arith.constant 28 : index
    %c0_350 = arith.constant 0 : index
    %408 = vector.load %arg10[%c28_349, %c0_350] : memref<36x256xf32, #tpu.memory_space<vmem>>, vector<4x256xf32>
    tpu.vector_store %arg10[%c28_349, %c0_350], %407 {strides = array<i32>} : memref<36x256xf32, #tpu.memory_space<vmem>>, vector<4x256xf32>,
    %c239_i32_351 = arith.constant 239 : i32
    %409 = tpu.dynamic_rotate %369 by %c239_i32_351 dim 1 : vector<4x256xf32>, i32 -> vector<4x256xf32>
    %c8_352 = arith.constant 8 : index
    %c0_353 = arith.constant 0 : index
    %410 = vector.load %arg8[%c8_352, %c0_353] : memref<9x256xf32, #tpu.memory_space<vmem>>, vector<1x256xf32>
    %411 = vector.broadcast %410 : vector<1x256xf32> to vector<4x256xf32>
    %412 = arith.mulf %409, %411 : vector<4x256xf32>
    %c32_354 = arith.constant 32 : index
    %c0_355 = arith.constant 0 : index
    %413 = vector.load %arg10[%c32_354, %c0_355] : memref<36x256xf32, #tpu.memory_space<vmem>>, vector<4x256xf32>
    tpu.vector_store %arg10[%c32_354, %c0_355], %412 {strides = array<i32>} : memref<36x256xf32, #tpu.memory_space<vmem>>, vector<4x256xf32>,
    %c0_356 = arith.constant 0 : index
    %c0_357 = arith.constant 0 : index
    %414 = vector.load %arg4[%c0_356, %c0_357] : memref<32x36xbf16, #tpu.memory_space<vmem>>, vector<32x36xbf16>
    %c0_358 = arith.constant 0 : index
    %c0_359 = arith.constant 0 : index
    %415 = vector.load %arg10[%c0_358, %c0_359] : memref<36x256xf32, #tpu.memory_space<vmem>>, vector<36x256xf32>
    %416 = arith.truncf %415 : vector<36x256xf32> to vector<36x256xbf16>
    %cst_360 = arith.constant dense<0.000000e+00> : vector<32x256xf32>
    %417 = tpu.matmul %414, %416, %cst_360 {dimension_numbers = #tpu.dot_dimension_numbers<[1], [0], [0], [1], [0, 0, 1, 1], [], []>} : vector<32x36xbf16>, vector<36x256xbf16>, vector<32x256xf32> -> vector<32x256xf32>
    %c3_361 = arith.constant 3 : index
    %c0_362 = arith.constant 0 : index
    %c0_363 = arith.constant 0 : index
    %418 = vector.load %arg5[%c3_361, %c0_362, %c0_363] : memref<4x32x1xf32, #tpu.memory_space<vmem>>, vector<1x32x1xf32>
    %419 = vector.shape_cast %418 : vector<1x32x1xf32> to vector<32x1xf32>
    %420 = vector.broadcast %419 : vector<32x1xf32> to vector<32x256xf32>
    %421 = arith.addf %417, %420 : vector<32x256xf32>
    %422 = arith.negf %421 : vector<32x256xf32>
    %423 = math.exp %422 : vector<32x256xf32>
    %cst_364 = arith.constant 1.000000e+00 : f32
    %424 = vector.broadcast %cst_364 : f32 to vector<32x256xf32>
    %425 = arith.addf %424, %423 : vector<32x256xf32>
    %426 = arith.divf %424, %425 : vector<32x256xf32>
    %427 = arith.mulf %421, %426 : vector<32x256xf32>
    %c17_i32_365 = arith.constant 17 : i32
    %428 = tpu.dynamic_rotate %427 by %c17_i32_365 dim 1 : vector<32x256xf32>, i32 -> vector<32x256xf32>
    %c0_366 = arith.constant 0 : index
    %c0_367 = arith.constant 0 : index
    %429 = vector.load %arg8[%c0_366, %c0_367] : memref<9x256xf32, #tpu.memory_space<vmem>>, vector<1x256xf32>
    %430 = vector.broadcast %429 : vector<1x256xf32> to vector<32x256xf32>
    %431 = arith.mulf %428, %430 : vector<32x256xf32>
    %c0_368 = arith.constant 0 : index
    %c0_369 = arith.constant 0 : index
    %432 = vector.load %arg11[%c0_368, %c0_369] : memref<288x256xf32, #tpu.memory_space<vmem>>, vector<32x256xf32>
    tpu.vector_store %arg11[%c0_368, %c0_369], %431 {strides = array<i32>} : memref<288x256xf32, #tpu.memory_space<vmem>>, vector<32x256xf32>,
    %c16_i32_370 = arith.constant 16 : i32
    %433 = tpu.dynamic_rotate %427 by %c16_i32_370 dim 1 : vector<32x256xf32>, i32 -> vector<32x256xf32>
    %c1_371 = arith.constant 1 : index
    %c0_372 = arith.constant 0 : index
    %434 = vector.load %arg8[%c1_371, %c0_372] : memref<9x256xf32, #tpu.memory_space<vmem>>, vector<1x256xf32>
    %435 = vector.broadcast %434 : vector<1x256xf32> to vector<32x256xf32>
    %436 = arith.mulf %433, %435 : vector<32x256xf32>
    %c32_373 = arith.constant 32 : index
    %c0_374 = arith.constant 0 : index
    %437 = vector.load %arg11[%c32_373, %c0_374] : memref<288x256xf32, #tpu.memory_space<vmem>>, vector<32x256xf32>
    tpu.vector_store %arg11[%c32_373, %c0_374], %436 {strides = array<i32>} : memref<288x256xf32, #tpu.memory_space<vmem>>, vector<32x256xf32>,
    %c15_i32_375 = arith.constant 15 : i32
    %438 = tpu.dynamic_rotate %427 by %c15_i32_375 dim 1 : vector<32x256xf32>, i32 -> vector<32x256xf32>
    %c2_376 = arith.constant 2 : index
    %c0_377 = arith.constant 0 : index
    %439 = vector.load %arg8[%c2_376, %c0_377] : memref<9x256xf32, #tpu.memory_space<vmem>>, vector<1x256xf32>
    %440 = vector.broadcast %439 : vector<1x256xf32> to vector<32x256xf32>
    %441 = arith.mulf %438, %440 : vector<32x256xf32>
    %c64_378 = arith.constant 64 : index
    %c0_379 = arith.constant 0 : index
    %442 = vector.load %arg11[%c64_378, %c0_379] : memref<288x256xf32, #tpu.memory_space<vmem>>, vector<32x256xf32>
    tpu.vector_store %arg11[%c64_378, %c0_379], %441 {strides = array<i32>} : memref<288x256xf32, #tpu.memory_space<vmem>>, vector<32x256xf32>,
    %c1_i32_380 = arith.constant 1 : i32
    %443 = tpu.dynamic_rotate %427 by %c1_i32_380 dim 1 : vector<32x256xf32>, i32 -> vector<32x256xf32>
    %c3_381 = arith.constant 3 : index
    %c0_382 = arith.constant 0 : index
    %444 = vector.load %arg8[%c3_381, %c0_382] : memref<9x256xf32, #tpu.memory_space<vmem>>, vector<1x256xf32>
    %445 = vector.broadcast %444 : vector<1x256xf32> to vector<32x256xf32>
    %446 = arith.mulf %443, %445 : vector<32x256xf32>
    %c96_383 = arith.constant 96 : index
    %c0_384 = arith.constant 0 : index
    %447 = vector.load %arg11[%c96_383, %c0_384] : memref<288x256xf32, #tpu.memory_space<vmem>>, vector<32x256xf32>
    tpu.vector_store %arg11[%c96_383, %c0_384], %446 {strides = array<i32>} : memref<288x256xf32, #tpu.memory_space<vmem>>, vector<32x256xf32>,
    %c4_385 = arith.constant 4 : index
    %c0_386 = arith.constant 0 : index
    %448 = vector.load %arg8[%c4_385, %c0_386] : memref<9x256xf32, #tpu.memory_space<vmem>>, vector<1x256xf32>
    %449 = vector.broadcast %448 : vector<1x256xf32> to vector<32x256xf32>
    %450 = arith.mulf %427, %449 : vector<32x256xf32>
    %c128_387 = arith.constant 128 : index
    %c0_388 = arith.constant 0 : index
    %451 = vector.load %arg11[%c128_387, %c0_388] : memref<288x256xf32, #tpu.memory_space<vmem>>, vector<32x256xf32>
    tpu.vector_store %arg11[%c128_387, %c0_388], %450 {strides = array<i32>} : memref<288x256xf32, #tpu.memory_space<vmem>>, vector<32x256xf32>,
    %c255_i32_389 = arith.constant 255 : i32
    %452 = tpu.dynamic_rotate %427 by %c255_i32_389 dim 1 : vector<32x256xf32>, i32 -> vector<32x256xf32>
    %c5_390 = arith.constant 5 : index
    %c0_391 = arith.constant 0 : index
    %453 = vector.load %arg8[%c5_390, %c0_391] : memref<9x256xf32, #tpu.memory_space<vmem>>, vector<1x256xf32>
    %454 = vector.broadcast %453 : vector<1x256xf32> to vector<32x256xf32>
    %455 = arith.mulf %452, %454 : vector<32x256xf32>
    %c160_392 = arith.constant 160 : index
    %c0_393 = arith.constant 0 : index
    %456 = vector.load %arg11[%c160_392, %c0_393] : memref<288x256xf32, #tpu.memory_space<vmem>>, vector<32x256xf32>
    tpu.vector_store %arg11[%c160_392, %c0_393], %455 {strides = array<i32>} : memref<288x256xf32, #tpu.memory_space<vmem>>, vector<32x256xf32>,
    %c241_i32_394 = arith.constant 241 : i32
    %457 = tpu.dynamic_rotate %427 by %c241_i32_394 dim 1 : vector<32x256xf32>, i32 -> vector<32x256xf32>
    %c6_395 = arith.constant 6 : index
    %c0_396 = arith.constant 0 : index
    %458 = vector.load %arg8[%c6_395, %c0_396] : memref<9x256xf32, #tpu.memory_space<vmem>>, vector<1x256xf32>
    %459 = vector.broadcast %458 : vector<1x256xf32> to vector<32x256xf32>
    %460 = arith.mulf %457, %459 : vector<32x256xf32>
    %c192_397 = arith.constant 192 : index
    %c0_398 = arith.constant 0 : index
    %461 = vector.load %arg11[%c192_397, %c0_398] : memref<288x256xf32, #tpu.memory_space<vmem>>, vector<32x256xf32>
    tpu.vector_store %arg11[%c192_397, %c0_398], %460 {strides = array<i32>} : memref<288x256xf32, #tpu.memory_space<vmem>>, vector<32x256xf32>,
    %c240_i32_399 = arith.constant 240 : i32
    %462 = tpu.dynamic_rotate %427 by %c240_i32_399 dim 1 : vector<32x256xf32>, i32 -> vector<32x256xf32>
    %c7_400 = arith.constant 7 : index
    %c0_401 = arith.constant 0 : index
    %463 = vector.load %arg8[%c7_400, %c0_401] : memref<9x256xf32, #tpu.memory_space<vmem>>, vector<1x256xf32>
    %464 = vector.broadcast %463 : vector<1x256xf32> to vector<32x256xf32>
    %465 = arith.mulf %462, %464 : vector<32x256xf32>
    %c224_402 = arith.constant 224 : index
    %c0_403 = arith.constant 0 : index
    %466 = vector.load %arg11[%c224_402, %c0_403] : memref<288x256xf32, #tpu.memory_space<vmem>>, vector<32x256xf32>
    tpu.vector_store %arg11[%c224_402, %c0_403], %465 {strides = array<i32>} : memref<288x256xf32, #tpu.memory_space<vmem>>, vector<32x256xf32>,
    %c239_i32_404 = arith.constant 239 : i32
    %467 = tpu.dynamic_rotate %427 by %c239_i32_404 dim 1 : vector<32x256xf32>, i32 -> vector<32x256xf32>
    %c8_405 = arith.constant 8 : index
    %c0_406 = arith.constant 0 : index
    %468 = vector.load %arg8[%c8_405, %c0_406] : memref<9x256xf32, #tpu.memory_space<vmem>>, vector<1x256xf32>
    %469 = vector.broadcast %468 : vector<1x256xf32> to vector<32x256xf32>
    %470 = arith.mulf %467, %469 : vector<32x256xf32>
    %c256_407 = arith.constant 256 : index
    %c0_408 = arith.constant 0 : index
    %471 = vector.load %arg11[%c256_407, %c0_408] : memref<288x256xf32, #tpu.memory_space<vmem>>, vector<32x256xf32>
    tpu.vector_store %arg11[%c256_407, %c0_408], %470 {strides = array<i32>} : memref<288x256xf32, #tpu.memory_space<vmem>>, vector<32x256xf32>,
    %c0_409 = arith.constant 0 : index
    %c0_410 = arith.constant 0 : index
    %472 = vector.load %arg6[%c0_409, %c0_410] : memref<4x288xbf16, #tpu.memory_space<vmem>>, vector<4x288xbf16>
    %c0_411 = arith.constant 0 : index
    %c0_412 = arith.constant 0 : index
    %473 = vector.load %arg11[%c0_411, %c0_412] : memref<288x256xf32, #tpu.memory_space<vmem>>, vector<288x256xf32>
    %474 = arith.truncf %473 : vector<288x256xf32> to vector<288x256xbf16>
    %cst_413 = arith.constant dense<0.000000e+00> : vector<4x256xf32>
    %475 = tpu.matmul %472, %474, %cst_413 {dimension_numbers = #tpu.dot_dimension_numbers<[1], [0], [0], [1], [0, 0, 1, 1], [], []>} : vector<4x288xbf16>, vector<288x256xbf16>, vector<4x256xf32> -> vector<4x256xf32>
    %c0_414 = arith.constant 0 : index
    %c0_415 = arith.constant 0 : index
    %476 = vector.load %arg7[%c0_414, %c0_415] : memref<4x1xf32, #tpu.memory_space<vmem>>, vector<4x1xf32>
    %477 = vector.broadcast %476 : vector<4x1xf32> to vector<4x256xf32>
    %478 = arith.addf %475, %477 : vector<4x256xf32>
    %cst_416 = arith.constant 0.00999999977 : f32
    %479 = vector.broadcast %cst_416 : f32 to vector<4x256xf32>
    %480 = arith.mulf %479, %478 : vector<4x256xf32>
    %481 = arith.subf %369, %480 : vector<4x256xf32>
    %cst_417 = arith.constant 1.000050e+00 : f32
    %482 = vector.broadcast %cst_417 : f32 to vector<4x256xf32>
    %483 = arith.mulf %482, %481 : vector<4x256xf32>
    %cst_418 = arith.constant 5.000000e-01 : f32
    %484 = vector.broadcast %cst_418 : f32 to vector<4x256xf32>
    %485 = arith.mulf %483, %484 : vector<4x256xf32>
    %cst_419 = arith.constant 5.000000e-01 : f32
    %486 = vector.broadcast %cst_419 : f32 to vector<4x256xf32>
    %487 = arith.addf %485, %486 : vector<4x256xf32>
    %c0_420 = arith.constant 0 : index
    %c0_421 = arith.constant 0 : index
    %c0_422 = arith.constant 0 : index
    %488 = vector.load %arg9[%c0_420, %c0_421, %c0_422] : memref<1x4x256xf32, #tpu.memory_space<vmem>>, vector<1x4x256xf32>
    %489 = vector.shape_cast %488 : vector<1x4x256xf32> to vector<4x256xf32>
    %490 = vector.shape_cast %487 : vector<4x256xf32> to vector<1x4x256xf32>
    tpu.vector_store %arg9[%c0_420, %c0_421, %c0_422], %490 {strides = array<i32>} : memref<1x4x256xf32, #tpu.memory_space<vmem>>, vector<1x4x256xf32>,
    return
  }
  func.func @transform_0(%arg0: i32) -> (i32, i32, i32) {
    %c0_i32 = arith.constant 0 : i32
    %c0_i32_0 = arith.constant 0 : i32
    %c0_i32_1 = arith.constant 0 : i32
    return %arg0, %c0_i32, %c0_i32_0 : i32, i32, i32
  }
  func.func @transform_1(%arg0: i32) -> (i32, i32, i32) {
    %c0_i32 = arith.constant 0 : i32
    %c0_i32_0 = arith.constant 0 : i32
    %c0_i32_1 = arith.constant 0 : i32
    return %arg0, %c0_i32, %c0_i32_0 : i32, i32, i32
  }
  func.func @transform_2(%arg0: i32) -> (i32, i32, i32, i32) {
    %c0_i32 = arith.constant 0 : i32
    %c0_i32_0 = arith.constant 0 : i32
    %c0_i32_1 = arith.constant 0 : i32
    %c0_i32_2 = arith.constant 0 : i32
    return %c0_i32, %arg0, %c0_i32_0, %c0_i32_1 : i32, i32, i32, i32
  }
  func.func @transform_3(%arg0: i32) -> (i32, i32) {
    %c0_i32 = arith.constant 0 : i32
    %c0_i32_0 = arith.constant 0 : i32
    %c0_i32_1 = arith.constant 0 : i32
    return %c0_i32, %c0_i32_0 : i32, i32
  }
  func.func @transform_4(%arg0: i32) -> (i32, i32, i32) {
    %c0_i32 = arith.constant 0 : i32
    %c0_i32_0 = arith.constant 0 : i32
    %c0_i32_1 = arith.constant 0 : i32
    %c0_i32_2 = arith.constant 0 : i32
    return %c0_i32, %c0_i32_0, %c0_i32_1 : i32, i32, i32
  }
  func.func @transform_5(%arg0: i32) -> (i32, i32) {
    %c0_i32 = arith.constant 0 : i32
    %c0_i32_0 = arith.constant 0 : i32
    %c0_i32_1 = arith.constant 0 : i32
    return %c0_i32, %c0_i32_0 : i32, i32
  }
  func.func @transform_6(%arg0: i32) -> (i32, i32) {
    %c0_i32 = arith.constant 0 : i32
    %c0_i32_0 = arith.constant 0 : i32
    %c0_i32_1 = arith.constant 0 : i32
    return %c0_i32, %c0_i32_0 : i32, i32
  }
  func.func @transform_7(%arg0: i32) -> (i32, i32) {
    %c0_i32 = arith.constant 0 : i32
    %c0_i32_0 = arith.constant 0 : i32
    %c0_i32_1 = arith.constant 0 : i32
    return %c0_i32, %c0_i32_0 : i32, i32
  }
  func.func @transform_8(%arg0: i32) -> (i32, i32, i32) {
    %c0_i32 = arith.constant 0 : i32
    %c0_i32_0 = arith.constant 0 : i32
    %c0_i32_1 = arith.constant 0 : i32
    return %arg0, %c0_i32, %c0_i32_0 : i32, i32, i32
  }
}

</mosaic_0001>

<llo_original>
// kernel: tpu_custom_call.1
$region0: #{tpu_custom_call.1}
  #allocation0 [shape = 'u32[]', space=smem, size = 0x4, offset = 0x4, fixed_abs, tag = 'smem constant byte address 0x4 - core index']
  #allocation1 [shape = 'u32[144,128]{1,0:T(1,128)}', space=vmem, size = 0x12000, scoped, tag = 'internal scratch']
  #allocation2 [shape = 'f32[36,256]{1,0:T(8,128)}', space=vmem, size = 0xa000, scoped, tag = 'scratch operand']
  #allocation3 [shape = 'f32[288,256]{1,0:T(8,128)}', space=vmem, size = 0x48000, scoped, tag = 'scratch operand']
  %s0 = inlined_call_operand.vmem [shape: f32[2,4,256], index: 0, kind: input, shape index: {}]
  %s1 = inlined_call_operand.vmem [shape: f32[2,4,256], index: 1, kind: input, shape index: {}]
  %s2 = inlined_call_operand.vmem [shape: f32[4,2,4,256], index: 2, kind: input, shape index: {}]
  %s3 = inlined_call_operand.vmem [shape: bf16[32,36], index: 3, kind: input, shape index: {}]
  %s4 = inlined_call_operand.vmem [shape: f32[4,32,1], index: 4, kind: input, shape index: {}]
  %s5 = inlined_call_operand.vmem [shape: bf16[4,288], index: 5, kind: input, shape index: {}]
  %s6 = inlined_call_operand.vmem [shape: f32[4,1], index: 6, kind: input, shape index: {}]
  %s7 = inlined_call_operand.vmem [shape: f32[9,256], index: 7, kind: input, shape index: {}]
  %s8 = inlined_call_operand.hbm [shape: f32[2,4,256], index: 8, kind: output, shape index: {}]
  %s9 = sld [smem:[#allocation0]]
  $region103: #{tpu_custom_call.1} parent=0
    _
  %s11 = ssub.s32 1, %s9
  %s12 = scalar_select 0, %s11, %s9
  $region1: #{tpu_custom_call.1} parent=0
    #allocation4 [shape = 'u8[32768]{0}', space=vmem, size = 0x8000, scoped, tag = 'input window, operand 2']
    #allocation5 [shape = 'u8[8192]{0}', space=vmem, size = 0x2000, scoped, tag = 'output window, operand 0']
    #allocation6 [shape = 's32[2]{0}', space=sflag, size = 0x8, scoped, tag = 'scoped memory for tpu_custom_call.1']
    %13 = vsyncpa [#allocation6], 0
    %s14 = scalar_lea.sflag [#allocation6], 1
    %15 = vsyncpa %s14, 0
    loop: start=0, step=1, limit=4
    $region2: #{tpu_custom_call.1} parent=1 // loop_pre_header
      _
    $region3: #{tpu_custom_call.1} parent=1 // loop_header
      %s17 = sphi 0, %s21
      %p18 = scmp.ge.s32.totalorder %s17, 4
      %s27 = sphi 0, %s29
      %s30 = sphi 0, %s27
      %s31 = sphi 0, %s30
      %s47 = sphi 0, %s31
      %s53 = sphi 0, %s55
      %s56 = sphi 0, %s53
      %s57 = sphi 0, %s56
      %s73 = sphi 0, %s57
      %s79 = sphi 0, %s81
      %s82 = sphi 0, %s79
      %s83 = sphi 0, %s82
      %s99 = sphi 0, %s83
      %s103 = sphi 0, %s103
      %s105 = sphi 0, %s103
      %s106 = sphi 0, %s105
      %s120 = sphi 0, %s106
      %s124 = sphi 0, %s124
      %s126 = sphi 0, %s124
      %s127 = sphi 0, %s126
      %s141 = sphi 0, %s127
      %s145 = sphi 0, %s145
      %s147 = sphi 0, %s145
      %s148 = sphi 0, %s147
      %s162 = sphi 0, %s148
      %s166 = sphi 0, %s166
      %s168 = sphi 0, %s166
      %s169 = sphi 0, %s168
      %s183 = sphi 0, %s169
      %s187 = sphi 0, %s187
      %s189 = sphi 0, %s187
      %s190 = sphi 0, %s189
      %s204 = sphi 0, %s190
      %s210 = sphi 0, %s212
      %s213 = sphi 0, %s210
      %s214 = sphi 0, %s213
      %s230 = sphi 0, %s214
    $region4: #{tpu_custom_call.1} parent=1 // loop_header_branch
      %20 = sbr.rel (%p18) target = $region8
    $region5: #{tpu_custom_call.1} parent=1 // loop_body
      %s22 = ssub.s32 %s17, 1
      %s23 = ssub.s32 %s17, 2
      %s24 = sadd.s32 %s17, 1
      %s25 = ssub.s32 %s17, %s24
      %p26 = scmp.eq.s32.totalorder %s25, 0
      %s28 = sadd.s32 %s27, 1
      %s29 = scalar_select %p26, %s27, %s28
      %p32 = pneg %p26
      %p33 = scmp.eq.s32.totalorder %s17, 1
      %p34 = por %p32, %p33
      %p35 = scmp.ne.s32.totalorder %s27, %s30
      %p36 = scmp.eq.s32.totalorder %s17, 0
      %p37 = por %p35, %p36
      %p38 = scmp.ne.s32.totalorder %s27, %s30
      %p39 = scmp.eq.s32.totalorder %s22, 1
      %p40 = por %p38, %p39
      %p41 = scmp.ne.s32.totalorder %s30, %s31
      %p42 = scmp.eq.s32.totalorder %s22, 0
      %p43 = por %p41, %p42
      %p44 = scmp.ne.s32.totalorder %s30, %s31
      %p45 = scmp.eq.s32.totalorder %s23, 1
      %p46 = por %p44, %p45
      %p48 = scmp.ne.s32.totalorder %s31, %s47
      %p49 = scmp.eq.s32.totalorder %s23, 0
      %p50 = por %p48, %p49
      %s51 = ssub.s32 %s17, %s24
      %p52 = scmp.eq.s32.totalorder %s51, 0
      %s54 = sadd.s32 %s53, 1
      %s55 = scalar_select %p52, %s53, %s54
      %p58 = pneg %p52
      %p59 = scmp.eq.s32.totalorder %s17, 1
      %p60 = por %p58, %p59
      %p61 = scmp.ne.s32.totalorder %s53, %s56
      %p62 = scmp.eq.s32.totalorder %s17, 0
      %p63 = por %p61, %p62
      %p64 = scmp.ne.s32.totalorder %s53, %s56
      %p65 = scmp.eq.s32.totalorder %s22, 1
      %p66 = por %p64, %p65
      %p67 = scmp.ne.s32.totalorder %s56, %s57
      %p68 = scmp.eq.s32.totalorder %s22, 0
      %p69 = por %p67, %p68
      %p70 = scmp.ne.s32.totalorder %s56, %s57
      %p71 = scmp.eq.s32.totalorder %s23, 1
      %p72 = por %p70, %p71
      %p74 = scmp.ne.s32.totalorder %s57, %s73
      %p75 = scmp.eq.s32.totalorder %s23, 0
      %p76 = por %p74, %p75
      %s77 = ssub.s32 %s17, %s24
      %p78 = scmp.eq.s32.totalorder %s77, 0
      %s80 = sadd.s32 %s79, 1
      %s81 = scalar_select %p78, %s79, %s80
      %p84 = pneg %p78
      %p85 = scmp.eq.s32.totalorder %s17, 1
      %p86 = por %p84, %p85
      %p87 = scmp.ne.s32.totalorder %s79, %s82
      %p88 = scmp.eq.s32.totalorder %s17, 0
      %p89 = por %p87, %p88
      %p90 = scmp.ne.s32.totalorder %s79, %s82
      %p91 = scmp.eq.s32.totalorder %s22, 1
      %p92 = por %p90, %p91
      %p93 = scmp.ne.s32.totalorder %s82, %s83
      %p94 = scmp.eq.s32.totalorder %s22, 0
      %p95 = por %p93, %p94
      %p96 = scmp.ne.s32.totalorder %s82, %s83
      %p97 = scmp.eq.s32.totalorder %s23, 1
      %p98 = por %p96, %p97
      %p100 = scmp.ne.s32.totalorder %s83, %s99
      %p101 = scmp.eq.s32.totalorder %s23, 0
      %p102 = por %p100, %p101
      %s104 = sadd.s32 %s103, 1
      %p107 = scmp.eq.s32.totalorder %s17, 1
      %p108 = scmp.ne.s32.totalorder %s103, %s105
      %p109 = scmp.eq.s32.totalorder %s17, 0
      %p110 = por %p108, %p109
      %p111 = scmp.ne.s32.totalorder %s103, %s105
      %p112 = scmp.eq.s32.totalorder %s22, 1
      %p113 = por %p111, %p112
      %p114 = scmp.ne.s32.totalorder %s105, %s106
      %p115 = scmp.eq.s32.totalorder %s22, 0
      %p116 = por %p114, %p115
      %p117 = scmp.ne.s32.totalorder %s105, %s106
      %p118 = scmp.eq.s32.totalorder %s23, 1
      %p119 = por %p117, %p118
      %p121 = scmp.ne.s32.totalorder %s106, %s120
      %p122 = scmp.eq.s32.totalorder %s23, 0
      %p123 = por %p121, %p122
      %s125 = sadd.s32 %s124, 1
      %p128 = scmp.eq.s32.totalorder %s17, 1
      %p129 = scmp.ne.s32.totalorder %s124, %s126
      %p130 = scmp.eq.s32.totalorder %s17, 0
      %p131 = por %p129, %p130
      %p132 = scmp.ne.s32.totalorder %s124, %s126
      %p133 = scmp.eq.s32.totalorder %s22, 1
      %p134 = por %p132, %p133
      %p135 = scmp.ne.s32.totalorder %s126, %s127
      %p136 = scmp.eq.s32.totalorder %s22, 0
      %p137 = por %p135, %p136
      %p138 = scmp.ne.s32.totalorder %s126, %s127
      %p139 = scmp.eq.s32.totalorder %s23, 1
      %p140 = por %p138, %p139
      %p142 = scmp.ne.s32.totalorder %s127, %s141
      %p143 = scmp.eq.s32.totalorder %s23, 0
      %p144 = por %p142, %p143
      %s146 = sadd.s32 %s145, 1
      %p149 = scmp.eq.s32.totalorder %s17, 1
      %p150 = scmp.ne.s32.totalorder %s145, %s147
      %p151 = scmp.eq.s32.totalorder %s17, 0
      %p152 = por %p150, %p151
      %p153 = scmp.ne.s32.totalorder %s145, %s147
      %p154 = scmp.eq.s32.totalorder %s22, 1
      %p155 = por %p153, %p154
      %p156 = scmp.ne.s32.totalorder %s147, %s148
      %p157 = scmp.eq.s32.totalorder %s22, 0
      %p158 = por %p156, %p157
      %p159 = scmp.ne.s32.totalorder %s147, %s148
      %p160 = scmp.eq.s32.totalorder %s23, 1
      %p161 = por %p159, %p160
      %p163 = scmp.ne.s32.totalorder %s148, %s162
      %p164 = scmp.eq.s32.totalorder %s23, 0
      %p165 = por %p163, %p164
      %s167 = sadd.s32 %s166, 1
      %p170 = scmp.eq.s32.totalorder %s17, 1
      %p171 = scmp.ne.s32.totalorder %s166, %s168
      %p172 = scmp.eq.s32.totalorder %s17, 0
      %p173 = por %p171, %p172
      %p174 = scmp.ne.s32.totalorder %s166, %s168
      %p175 = scmp.eq.s32.totalorder %s22, 1
      %p176 = por %p174, %p175
      %p177 = scmp.ne.s32.totalorder %s168, %s169
      %p178 = scmp.eq.s32.totalorder %s22, 0
      %p179 = por %p177, %p178
      %p180 = scmp.ne.s32.totalorder %s168, %s169
      %p181 = scmp.eq.s32.totalorder %s23, 1
      %p182 = por %p180, %p181
      %p184 = scmp.ne.s32.totalorder %s169, %s183
      %p185 = scmp.eq.s32.totalorder %s23, 0
      %p186 = por %p184, %p185
      %s188 = sadd.s32 %s187, 1
      %p191 = scmp.eq.s32.totalorder %s17, 1
      %p192 = scmp.ne.s32.totalorder %s187, %s189
      %p193 = scmp.eq.s32.totalorder %s17, 0
      %p194 = por %p192, %p193
      %p195 = scmp.ne.s32.totalorder %s187, %s189
      %p196 = scmp.eq.s32.totalorder %s22, 1
      %p197 = por %p195, %p196
      %p198 = scmp.ne.s32.totalorder %s189, %s190
      %p199 = scmp.eq.s32.totalorder %s22, 0
      %p200 = por %p198, %p199
      %p201 = scmp.ne.s32.totalorder %s189, %s190
      %p202 = scmp.eq.s32.totalorder %s23, 1
      %p203 = por %p201, %p202
      %p205 = scmp.ne.s32.totalorder %s190, %s204
      %p206 = scmp.eq.s32.totalorder %s23, 0
      %p207 = por %p205, %p206
      %s208 = ssub.s32 %s17, %s24
      %p209 = scmp.eq.s32.totalorder %s208, 0
      %s211 = sadd.s32 %s210, 1
      %s212 = scalar_select %p209, %s210, %s211
      %p215 = pneg %p209
      %p216 = scmp.eq.s32.totalorder %s17, 1
      %p217 = por %p215, %p216
      %p218 = scmp.ne.s32.totalorder %s210, %s213
      %p219 = scmp.eq.s32.totalorder %s17, 0
      %p220 = por %p218, %p219
      %p221 = scmp.ne.s32.totalorder %s210, %s213
      %p222 = scmp.eq.s32.totalorder %s22, 1
      %p223 = por %p221, %p222
      %p224 = scmp.ne.s32.totalorder %s213, %s214
      %p225 = scmp.eq.s32.totalorder %s22, 0
      %p226 = por %p224, %p225
      %p227 = scmp.ne.s32.totalorder %s213, %s214
      %p228 = scmp.eq.s32.totalorder %s23, 1
      %p229 = por %p227, %p228
      %p231 = scmp.ne.s32.totalorder %s214, %s230
      %p232 = scmp.eq.s32.totalorder %s23, 0
      %p233 = por %p231, %p232
      %p234 = scmp.le.s32.totalorder 1, %s17
      %p235 = scmp.lt.s32.totalorder %s17, 3
      %p236 = pnand %p234, %p235
      %p237 = pneg %p236
      // Predicated region
      $region9: #{tpu_custom_call.1} parent=5 // pred_check
        _
      $region10: #{tpu_custom_call.1} parent=5 // pred_check_branch
        %239 = sbr.rel (%p236) target = $region12
      $region11: #{tpu_custom_call.1} parent=5 // pred_region
        %s240 = ssub.s32 %s17, 1
        // Predicated region
        $region13: #{tpu_custom_call.1} parent=11 // pred_check
          %p241 = pneg %p116
        $region14: #{tpu_custom_call.1} parent=11 // pred_check_branch
          %243 = sbr.rel (%p241) target = $region16
        $region15: #{tpu_custom_call.1} parent=11 // pred_region
          _
        $region16: #{tpu_custom_call.1} parent=11 // pred_fallthru
          _
        // Predicated region
        $region17: #{tpu_custom_call.1} parent=11 // pred_check
          %p244 = pneg %p137
        $region18: #{tpu_custom_call.1} parent=11 // pred_check_branch
          %246 = sbr.rel (%p244) target = $region20
        $region19: #{tpu_custom_call.1} parent=11 // pred_region
          _
        $region20: #{tpu_custom_call.1} parent=11 // pred_fallthru
          _
        // Predicated region
        $region21: #{tpu_custom_call.1} parent=11 // pred_check
          %p247 = pneg %p158
        $region22: #{tpu_custom_call.1} parent=11 // pred_check_branch
          %249 = sbr.rel (%p247) target = $region24
        $region23: #{tpu_custom_call.1} parent=11 // pred_region
          _
        $region24: #{tpu_custom_call.1} parent=11 // pred_fallthru
          _
        // Predicated region
        $region25: #{tpu_custom_call.1} parent=11 // pred_check
          %p250 = pneg %p179
        $region26: #{tpu_custom_call.1} parent=11 // pred_check_branch
          %252 = sbr.rel (%p250) target = $region28
        $region27: #{tpu_custom_call.1} parent=11 // pred_region
          _
        $region28: #{tpu_custom_call.1} parent=11 // pred_fallthru
          _
        // Predicated region
        $region29: #{tpu_custom_call.1} parent=11 // pred_check
          %p253 = pneg %p200
        $region30: #{tpu_custom_call.1} parent=11 // pred_check_branch
          %255 = sbr.rel (%p253) target = $region32
        $region31: #{tpu_custom_call.1} parent=11 // pred_region
          _
        $region32: #{tpu_custom_call.1} parent=11 // pred_fallthru
          _
      $region12: #{tpu_custom_call.1} parent=5 // pred_fallthru
        _
      %p256 = scmp.lt.s32.totalorder %s17, 2
      // Predicated region
      $region33: #{tpu_custom_call.1} parent=5 // pred_check
        %p257 = pneg %p256
      $region34: #{tpu_custom_call.1} parent=5 // pred_check_branch
        %259 = sbr.rel (%p257) target = $region36
      $region35: #{tpu_custom_call.1} parent=5 // pred_region
        // Predicated region
        $region37: #{tpu_custom_call.1} parent=35 // pred_check
          %p260 = pneg %p37
        $region38: #{tpu_custom_call.1} parent=35 // pred_check_branch
          %262 = sbr.rel (%p260) target = $region40
        $region39: #{tpu_custom_call.1} parent=35 // pred_region
          %p263 = scmp.lt.s32.totalorder %s17, 1
          %s264 = scalar_select %p263, %s17, 1
          %s265 = smul.addr %s264, 2
          %s266 = smul.addr %s265, 4
          %s267 = scalar_lea.vmem %s0, %s266
        $region40: #{tpu_custom_call.1} parent=35 // pred_fallthru
          _
        // Predicated region
        $region41: #{tpu_custom_call.1} parent=35 // pred_check
          %p268 = pneg %p63
        $region42: #{tpu_custom_call.1} parent=35 // pred_check_branch
          %270 = sbr.rel (%p268) target = $region44
        $region43: #{tpu_custom_call.1} parent=35 // pred_region
          %p271 = scmp.lt.s32.totalorder %s17, 1
          %s272 = scalar_select %p271, %s17, 1
          %s273 = smul.addr %s272, 2
          %s274 = smul.addr %s273, 4
          %s275 = scalar_lea.vmem %s1, %s274
        $region44: #{tpu_custom_call.1} parent=35 // pred_fallthru
          _
        // Predicated region
        $region45: #{tpu_custom_call.1} parent=35 // pred_check
          %p276 = pneg %p89
        $region46: #{tpu_custom_call.1} parent=35 // pred_check_branch
          %278 = sbr.rel (%p276) target = $region48
        $region47: #{tpu_custom_call.1} parent=35 // pred_region
          %s279 = sand.u32 %s79, 1
          %s280 = sand.u32 %s79, 1
          %s281 = smul.addr %s280, 32
          %s282 = scalar_lea.vmem [#allocation4], %s281
          %s283 = smul.addr %s17, 2
          %s284 = smul.addr %s283, 4
          %s285 = scalar_lea.vmem %s2, %s284
          // Predicated region
          $region49: #{tpu_custom_call.1} parent=47 // pred_check
            _
          $region50: #{tpu_custom_call.1} parent=47 // pred_check_branch
            %287 = sbr.rel (0) target = $region52
          $region51: #{tpu_custom_call.1} parent=47 // pred_region
            // Predicated region
            $region53: #{tpu_custom_call.1} parent=51 // pred_check
              _
            $region54: #{tpu_custom_call.1} parent=51 // pred_check_branch
              %289 = sbr.rel (0) target = $region56
            $region55: #{tpu_custom_call.1} parent=51 // pred_region
              // Predicated region
              $region68: #{tpu_custom_call.1} parent=55 // pred_check
                _
              $region69: #{tpu_custom_call.1} parent=55 // pred_check_branch
                %310 = sbr.rel (0) target = $region71
              $region70: #{tpu_custom_call.1} parent=55 // pred_region
                loop: start=0, step=1, limit=1
                $region72: #{tpu_custom_call.1} parent=70 // loop_pre_header
                  _
                $region73: #{tpu_custom_call.1} parent=70 // loop_header
                  %s312 = sphi 0, %s316
                  %p313 = scmp.ge.s32.totalorder %s312, 1
                  %s317 = sphi %s285, %s285
                  %s318 = sphi %s282, %s282
                $region74: #{tpu_custom_call.1} parent=70 // loop_header_branch
                  %315 = sbr.rel (%p313) target = $region78
                $region75: #{tpu_custom_call.1} parent=70 // loop_body
                  %v319 = vld [vmem:[%s317] sm:$0xff]
                  %320 = vst [vmem:[%s318] sm:$0xff] %v319
                  %v321 = vld [vmem:[%s317 + $0x10] sm:$0xff]
                  %322 = vst [vmem:[%s318 + $0x8] sm:$0xff] %v321
                  %v323 = vld [vmem:[%s317 + $0x20] sm:$0xff]
                  %324 = vst [vmem:[%s318 + $0x10] sm:$0xff] %v323
                  %v325 = vld [vmem:[%s317 + $0x30] sm:$0xff]
                  %326 = vst [vmem:[%s318 + $0x18] sm:$0xff] %v325
                $region76: #{tpu_custom_call.1} parent=70 // loop_footer
                  %s316 = sadd.s32 1, %s312
                $region77: #{tpu_custom_call.1} parent=70 // loop_footer_branch
                  %311 = sbr.rel target = $region73
                $region78: #{tpu_custom_call.1} parent=70 // loop_exit
                  _
              $region71: #{tpu_custom_call.1} parent=55 // pred_fallthru
                _
              // Predicated region
              $region79: #{tpu_custom_call.1} parent=55 // pred_check
                _
              $region80: #{tpu_custom_call.1} parent=55 // pred_check_branch
                %328 = sbr.rel target = $region82
              $region81: #{tpu_custom_call.1} parent=55 // pred_region
                _
              $region82: #{tpu_custom_call.1} parent=55 // pred_fallthru
                _
            $region56: #{tpu_custom_call.1} parent=51 // pred_fallthru
              _
            // Predicated region
            $region57: #{tpu_custom_call.1} parent=51 // pred_check
              _
            $region58: #{tpu_custom_call.1} parent=51 // pred_check_branch
              %291 = sbr.rel target = $region60
            $region59: #{tpu_custom_call.1} parent=51 // pred_region
              loop: start=0, step=1, limit=1
              $region61: #{tpu_custom_call.1} parent=59 // loop_pre_header
                _
              $region62: #{tpu_custom_call.1} parent=59 // loop_header
                %s294 = sphi 0, %s298
                %p295 = scmp.ge.s32.totalorder %s294, 1
                %s299 = sphi %s285, %s285
                %s300 = sphi %s282, %s282
              $region63: #{tpu_custom_call.1} parent=59 // loop_header_branch
                %297 = sbr.rel (%p295) target = $region67
              $region64: #{tpu_custom_call.1} parent=59 // loop_body
                %v301 = vld [vmem:[%s299] sm:$0xff]
                %302 = vst [vmem:[%s300] sm:$0xff] %v301
                %v303 = vld [vmem:[%s299 + $0x10] sm:$0xff]
                %304 = vst [vmem:[%s300 + $0x8] sm:$0xff] %v303
                %v305 = vld [vmem:[%s299 + $0x20] sm:$0xff]
                %306 = vst [vmem:[%s300 + $0x10] sm:$0xff] %v305
                %v307 = vld [vmem:[%s299 + $0x30] sm:$0xff]
                %308 = vst [vmem:[%s300 + $0x18] sm:$0xff] %v307
              $region65: #{tpu_custom_call.1} parent=59 // loop_footer
                %s298 = sadd.s32 1, %s294
              $region66: #{tpu_custom_call.1} parent=59 // loop_footer_branch
                %293 = sbr.rel target = $region62
              $region67: #{tpu_custom_call.1} parent=59 // loop_exit
                _
            $region60: #{tpu_custom_call.1} parent=51 // pred_fallthru
              _
          $region52: #{tpu_custom_call.1} parent=47 // pred_fallthru
            _
          %329 = vnop
        $region48: #{tpu_custom_call.1} parent=35 // pred_fallthru
          _
      $region36: #{tpu_custom_call.1} parent=5 // pred_fallthru
        _
      %p330 = scmp.le.s32.totalorder 1, %s17
      %p331 = scmp.lt.s32.totalorder %s17, 3
      %p332 = pnand %p330, %p331
      %p333 = pneg %p332
      // Predicated region
      $region83: #{tpu_custom_call.1} parent=5 // pred_check
        _
      $region84: #{tpu_custom_call.1} parent=5 // pred_check_branch
        %335 = sbr.rel (%p332) target = $region86
      $region85: #{tpu_custom_call.1} parent=5 // pred_region
        %s336 = ssub.s32 %s17, 1
        %s337 = sand.u32 %s82, 1
        %s338 = sand.u32 %s82, 1
        %s339 = smul.addr %s338, 32
        %s340 = scalar_lea.vmem [#allocation4], %s339
        // Predicated region
        $region87: #{tpu_custom_call.1} parent=85 // pred_check
          %p341 = pneg %p95
        $region88: #{tpu_custom_call.1} parent=85 // pred_check_branch
          %343 = sbr.rel (%p341) target = $region90
        $region89: #{tpu_custom_call.1} parent=85 // pred_region
          _
        $region90: #{tpu_custom_call.1} parent=85 // pred_fallthru
          _
        %p344 = scmp.lt.s32.totalorder %s22, 1
        %s345 = scalar_select %p344, %s22, 1
        %s346 = smul.addr %s345, 2
        %s347 = smul.addr %s346, 4
        %s348 = scalar_lea.vmem %s0, %s347
        %p349 = pneg %p43
        %p350 = pneg %p40
        %p351 = scmp.lt.s32.totalorder %s22, 1
        %s352 = scalar_select %p351, %s22, 1
        %s353 = smul.addr %s352, 2
        %s354 = smul.addr %s353, 4
        %s355 = scalar_lea.vmem %s1, %s354
        %p356 = pneg %p69
        %p357 = pneg %p66
        %s358 = sand.u32 %s82, 1
        %s359 = sand.u32 %s82, 1
        %s360 = smul.addr %s359, 32
        %s361 = scalar_lea.vmem [#allocation4], %s360
        %p362 = pneg %p95
        %p363 = pneg %p92
        %p364 = pneg %p116
        %p365 = pneg %p113
        %p366 = pneg %p137
        %p367 = pneg %p134
        %p368 = pneg %p158
        %p369 = pneg %p155
        %p370 = pneg %p179
        %p371 = pneg %p176
        %p372 = pneg %p200
        %p373 = pneg %p197
        %p374 = pneg %p226
        %p375 = pneg %p223
        %s376 = sand.u32 %s213, 1
        %s377 = scalar_lea.sflag [#allocation6], %s376
        %s378 = sand.u32 %s213, 1
        %s379 = smul.addr %s378, 8
        %s380 = scalar_lea.vmem [#allocation5], %s379
        %p381 = scmp.lt.s32.totalorder %s22, 1
        %s382 = scalar_select %p381, %s22, 1
        %s383 = smul.addr %s382, 2
        %s384 = smul.addr %s383, 4
        %s385 = scalar_lea.vmem %s0, %s384
        %p386 = scmp.lt.s32.totalorder %s22, 1
        %s387 = scalar_select %p386, %s22, 1
        %s388 = smul.addr %s387, 2
        %s389 = smul.addr %s388, 4
        %s390 = scalar_lea.vmem %s1, %s389
        %v392 = vld [vmem:[%s385] sm:$0xff]
        %v393 = vmul.f32 %v392, 2.0
        %v394 = vsub.f32 %v393, 1.0
        %v395 = vmul.f32 %v394, 0.99665934
        %v396 = vld [vmem:[%s390] sm:$0xff]
        %v397 = vmul.f32 %v396, 0.08167134
        %v398 = vadd.f32 %v395, %v397
        %v400 = vcombine.high %v398, %v398
        %402 = vrot.lane.b32.xlu0 %v398, 17
        %v403 = vpop.permute.xlu0 %402
        %404 = vrot.lane.b32.xlu0 %v400, 17
        %v405 = vpop.permute.xlu0 %404
        %v406 = vlaneseq
        %v407 = vand.u32 %v406, 127
        %vm408 = vcmp.lt.s32.totalorder %v407, 17
        %v409 = vsel %vm408, %v403, %v405
        %v410 = vsel %vm408, %v405, %v403
        %v411 = vld [vmem:[%s7] ss:$8 sm:$0x3]
        %v413 = vlaneseq
        %v414 = vshrl.u32 %v413, 7
        %v415 = vsub.s32 0, %v414
        %v416 = vrot.slane %v411, %v415
        %v417 = vlaneseq
        %v418 = vshrl.u32 %v417, 7
        %v419 = vsub.s32 1, %v418
        %v420 = vrot.slane %v411, %v419
        %v423 = vmul.f32 %v410, %v416
        %v424 = vmul.f32 %v409, %v420
        %425 = vst [vmem:[#allocation2] sm:$0xf] %v423
        %426 = vst [vmem:[#allocation2 + $0x8] sm:$0xf] %v424
        %427 = vrot.lane.b32.xlu0 %v398, 16
        %v428 = vpop.permute.xlu0 %427
        %429 = vrot.lane.b32.xlu0 %v400, 16
        %v430 = vpop.permute.xlu0 %429
        %vm431 = vcmp.lt.s32.totalorder %v407, 16
        %v432 = vsel %vm431, %v428, %v430
        %v433 = vsel %vm431, %v430, %v428
        %s434 = scalar_lea.vmem %s7, 1
        %v435 = vld [vmem:[%s434] ss:$8 sm:$0x3]
        %v437 = vlaneseq
        %v438 = vshrl.u32 %v437, 7
        %v439 = vsub.s32 0, %v438
        %v440 = vrot.slane %v435, %v439
        %v441 = vlaneseq
        %v442 = vshrl.u32 %v441, 7
        %v443 = vsub.s32 1, %v442
        %v444 = vrot.slane %v435, %v443
        %v447 = vmul.f32 %v433, %v440
        %v448 = vmul.f32 %v432, %v444
        %v451 = vrot.slane %v447, 4
        %v452 = vrot.slane %v448, 4
        %455 = vst [vmem:[#allocation2] sm:$0xf0] %v451
        %456 = vst [vmem:[#allocation2 + $0x8] sm:$0xf0] %v452
        %457 = vrot.lane.b32.xlu0 %v398, 15
        %v458 = vpop.permute.xlu0 %457
        %459 = vrot.lane.b32.xlu0 %v400, 15
        %v460 = vpop.permute.xlu0 %459
        %vm461 = vcmp.lt.s32.totalorder %v407, 15
        %v462 = vsel %vm461, %v458, %v460
        %v463 = vsel %vm461, %v460, %v458
        %s464 = scalar_lea.vmem %s7, 2
        %v465 = vld [vmem:[%s464] ss:$8 sm:$0x3]
        %v467 = vlaneseq
        %v468 = vshrl.u32 %v467, 7
        %v469 = vsub.s32 0, %v468
        %v470 = vrot.slane %v465, %v469
        %v471 = vlaneseq
        %v472 = vshrl.u32 %v471, 7
        %v473 = vsub.s32 1, %v472
        %v474 = vrot.slane %v465, %v473
        %v477 = vmul.f32 %v463, %v470
        %v478 = vmul.f32 %v462, %v474
        %479 = vst [vmem:[#allocation2 + $0x10] sm:$0xf] %v477
        %480 = vst [vmem:[#allocation2 + $0x18] sm:$0xf] %v478
        %481 = vrot.lane.b32.xlu0 %v398, 1
        %v482 = vpop.permute.xlu0 %481
        %483 = vrot.lane.b32.xlu0 %v400, 1
        %v484 = vpop.permute.xlu0 %483
        %vm485 = vcmp.lt.s32.totalorder %v407, 1
        %v486 = vsel %vm485, %v482, %v484
        %v487 = vsel %vm485, %v484, %v482
        %s488 = scalar_lea.vmem %s7, 3
        %v489 = vld [vmem:[%s488] ss:$8 sm:$0x3]
        %v491 = vlaneseq
        %v492 = vshrl.u32 %v491, 7
        %v493 = vsub.s32 0, %v492
        %v494 = vrot.slane %v489, %v493
        %v495 = vlaneseq
        %v496 = vshrl.u32 %v495, 7
        %v497 = vsub.s32 1, %v496
        %v498 = vrot.slane %v489, %v497
        %v501 = vmul.f32 %v487, %v494
        %v502 = vmul.f32 %v486, %v498
        %v505 = vrot.slane %v501, 4
        %v506 = vrot.slane %v502, 4
        %509 = vst [vmem:[#allocation2 + $0x10] sm:$0xf0] %v505
        %510 = vst [vmem:[#allocation2 + $0x18] sm:$0xf0] %v506
        %s511 = scalar_lea.vmem %s7, 4
        %v512 = vld [vmem:[%s511] ss:$8 sm:$0x3]
        %v514 = vlaneseq
        %v515 = vshrl.u32 %v514, 7
        %v516 = vsub.s32 0, %v515
        %v517 = vrot.slane %v512, %v516
        %v518 = vlaneseq
        %v519 = vshrl.u32 %v518, 7
        %v520 = vsub.s32 1, %v519
        %v521 = vrot.slane %v512, %v520
        %v522 = vcombine.low %v517, %v521
        %v524 = vmul.f32 %v398, %v522
        %v526 = vcombine.high %v524, %v524
        %528 = vst [vmem:[#allocation2 + $0x20] sm:$0xf] %v524
        %529 = vst [vmem:[#allocation2 + $0x28] sm:$0xf] %v526
        %530 = vrot.lane.b32.xlu0 %v398, 127
        %v531 = vpop.permute.xlu0 %530
        %532 = vrot.lane.b32.xlu0 %v400, 127
        %v533 = vpop.permute.xlu0 %532
        %vm534 = vcmp.lt.s32.totalorder %v407, 127
        %v535 = vsel %vm534, %v531, %v533
        %v536 = vsel %vm534, %v533, %v531
        %s537 = scalar_lea.vmem %s7, 5
        %v538 = vld [vmem:[%s537] ss:$8 sm:$0x3]
        %v540 = vlaneseq
        %v541 = vshrl.u32 %v540, 7
        %v542 = vsub.s32 0, %v541
        %v543 = vrot.slane %v538, %v542
        %v544 = vlaneseq
        %v545 = vshrl.u32 %v544, 7
        %v546 = vsub.s32 1, %v545
        %v547 = vrot.slane %v538, %v546
        %v550 = vmul.f32 %v535, %v543
        %v551 = vmul.f32 %v536, %v547
        %v554 = vrot.slane %v550, 4
        %v555 = vrot.slane %v551, 4
        %558 = vst [vmem:[#allocation2 + $0x20] sm:$0xf0] %v554
        %559 = vst [vmem:[#allocation2 + $0x28] sm:$0xf0] %v555
        %560 = vrot.lane.b32.xlu0 %v398, 113
        %v561 = vpop.permute.xlu0 %560
        %562 = vrot.lane.b32.xlu0 %v400, 113
        %v563 = vpop.permute.xlu0 %562
        %vm564 = vcmp.lt.s32.totalorder %v407, 113
        %v565 = vsel %vm564, %v561, %v563
        %v566 = vsel %vm564, %v563, %v561
        %s567 = scalar_lea.vmem %s7, 6
        %v568 = vld [vmem:[%s567] ss:$8 sm:$0x3]
        %v570 = vlaneseq
        %v571 = vshrl.u32 %v570, 7
        %v572 = vsub.s32 0, %v571
        %v573 = vrot.slane %v568, %v572
        %v574 = vlaneseq
        %v575 = vshrl.u32 %v574, 7
        %v576 = vsub.s32 1, %v575
        %v577 = vrot.slane %v568, %v576
        %v580 = vmul.f32 %v565, %v573
        %v581 = vmul.f32 %v566, %v577
        %582 = vst [vmem:[#allocation2 + $0x30] sm:$0xf] %v580
        %583 = vst [vmem:[#allocation2 + $0x38] sm:$0xf] %v581
        %584 = vrot.lane.b32.xlu0 %v398, 112
        %v585 = vpop.permute.xlu0 %584
        %586 = vrot.lane.b32.xlu0 %v400, 112
        %v587 = vpop.permute.xlu0 %586
        %vm588 = vcmp.lt.s32.totalorder %v407, 112
        %v589 = vsel %vm588, %v585, %v587
        %v590 = vsel %vm588, %v587, %v585
        %s591 = scalar_lea.vmem %s7, 7
        %v592 = vld [vmem:[%s591] ss:$8 sm:$0x3]
        %v594 = vlaneseq
        %v595 = vshrl.u32 %v594, 7
        %v596 = vsub.s32 0, %v595
        %v597 = vrot.slane %v592, %v596
        %v598 = vlaneseq
        %v599 = vshrl.u32 %v598, 7
        %v600 = vsub.s32 1, %v599
        %v601 = vrot.slane %v592, %v600
        %v604 = vmul.f32 %v589, %v597
        %v605 = vmul.f32 %v590, %v601
        %v608 = vrot.slane %v604, 4
        %v609 = vrot.slane %v605, 4
        %612 = vst [vmem:[#allocation2 + $0x30] sm:$0xf0] %v608
        %613 = vst [vmem:[#allocation2 + $0x38] sm:$0xf0] %v609
        %614 = vrot.lane.b32.xlu0 %v398, 111
        %v615 = vpop.permute.xlu0 %614
        %616 = vrot.lane.b32.xlu0 %v400, 111
        %v617 = vpop.permute.xlu0 %616
        %vm618 = vcmp.lt.s32.totalorder %v407, 111
        %v619 = vsel %vm618, %v615, %v617
        %v620 = vsel %vm618, %v617, %v615
        %s621 = scalar_lea.vmem %s7, 16
        %v622 = vld [vmem:[%s621] ss:$8 sm:$0x3]
        %v624 = vlaneseq
        %v625 = vshrl.u32 %v624, 7
        %v626 = vsub.s32 0, %v625
        %v627 = vrot.slane %v622, %v626
        %v628 = vlaneseq
        %v629 = vshrl.u32 %v628, 7
        %v630 = vsub.s32 1, %v629
        %v631 = vrot.slane %v622, %v630
        %v634 = vmul.f32 %v619, %v627
        %v635 = vmul.f32 %v620, %v631
        %636 = vst [vmem:[#allocation2 + $0x40] sm:$0xf] %v634
        %637 = vst [vmem:[#allocation2 + $0x48] sm:$0xf] %v635
        %v638 = vld [vmem:[%s3] sm:$0xf]
        %v639 = vld [vmem:[%s3 + $0x4] sm:$0xf]
        %v640 = vld [vmem:[%s3 + $0x8] sm:$0xf]
        %v641 = vld [vmem:[%s3 + $0xc] sm:$0xf]
        %v642 = vld [vmem:[#allocation2] sm:$0xff]
        %v643 = vld [vmem:[#allocation2 + $0x8] sm:$0xff]
        %v644 = vld [vmem:[#allocation2 + $0x10] sm:$0xff]
        %v645 = vld [vmem:[#allocation2 + $0x18] sm:$0xff]
        %v646 = vld [vmem:[#allocation2 + $0x20] sm:$0xff]
        %v647 = vld [vmem:[#allocation2 + $0x28] sm:$0xff]
        %v648 = vld [vmem:[#allocation2 + $0x30] sm:$0xff]
        %v649 = vld [vmem:[#allocation2 + $0x38] sm:$0xff]
        %v650 = vld [vmem:[#allocation2 + $0x40] sm:$0xf]
        %v651 = vld [vmem:[#allocation2 + $0x48] sm:$0xf]
        %v652 = vpack.c.bf16 %v644, %v642
        %v653 = vpack.c.bf16 %v645, %v643
        %v654 = vpack.c.bf16 %v648, %v646
        %v655 = vpack.c.bf16 %v649, %v647
        %v656 = vpack.c.bf16 %v650, %v650
        %v657 = vpack.c.bf16 %v651, %v651
        %v658 = vld [vmem:[%s4] sm:$0xff]
        %v659 = vld [vmem:[%s4 + $0x8] sm:$0xff]
        %v660 = vld [vmem:[%s4 + $0x10] sm:$0xff]
        %v661 = vld [vmem:[%s4 + $0x18] sm:$0xff]
        %663 = vset.pattern.permute.xlu0 0
        %664 = vperm.xlu0 %663, %v658
        %v665 = vpop.permute.xlu0 %664
        %668 = vset.pattern.permute.xlu0 0
        %669 = vperm.xlu0 %668, %v659
        %v670 = vpop.permute.xlu0 %669
        %673 = vset.pattern.permute.xlu0 0
        %674 = vperm.xlu0 %673, %v660
        %v675 = vpop.permute.xlu0 %674
        %678 = vset.pattern.permute.xlu0 0
        %679 = vperm.xlu0 %678, %v661
        %v680 = vpop.permute.xlu0 %679
        %v686 = vunpack.c.l.b16 %v638
        %v687 = vunpack.c.l.b16 %v639
        %v688 = vunpack.c.l.b16 %v640
        %v689 = vunpack.c.l.b16 %v641
        %v690 = vpack.c.b16 %v687, %v686
        %v691 = vpack.c.b16 %v689, %v688
        %vm692 = vcmask 293888
        %v694 = vsel %vm692, %v690, 0
        %v697 = vsel %vm692, %v691, 0
        %vm699 = vcmask 1041408
        %v701 = vsel %vm699, %v656, 0
        %v704 = vsel %vm699, %v657, 0
        %706 = vmatprep.subr.bf16.mxu0 %v653
        %707 = vmatpush1.bf16.msra.mxu0 %v652
        %708 = vmatprep.subr.bf16.mxu0 %v655
        %709 = vmatpush1.bf16.msra.mxu0 %v654
        %710 = vmatprep.subr.bf16.mxu0 %v704
        %711 = vmatpush1.bf16.msra.mxu0 %v701
        %712 = vmatprep.subr.bf16.mxu0 0
        %713 = vmatpush1.bf16.msra.mxu0 0
        %714 = vmatprep.subr.bf16.mxu0 0
        %715 = vmatpush1.bf16.msra.mxu0 0
        %716 = vmatprep.subr.bf16.mxu0 0
        %717 = vmatpush1.bf16.msra.mxu0 0
        %718 = vmatprep.subr.bf16.mxu0 0
        %719 = vmatpush1.bf16.msra.mxu0 0
        %720 = vmatprep.subr.bf16.mxu0 0
        %721 = vmatpush1.bf16.msra.mxu0 0
        %722 = vmatprep.subr.bf16.mxu0 0
        %723 = vmatpush1.bf16.msra.mxu0 0
        %724 = vmatprep.subr.bf16.mxu0 0
        %725 = vmatpush1.bf16.msra.mxu0 0
        %726 = vmatprep.subr.bf16.mxu0 0
        %727 = vmatpush1.bf16.msra.mxu0 0
        %728 = vmatprep.subr.bf16.mxu0 0
        %729 = vmatpush1.bf16.msra.mxu0 0
        %730 = vmatprep.subr.bf16.mxu0 0
        %731 = vmatpush1.bf16.msra.mxu0 0
        %732 = vmatprep.subr.bf16.mxu0 0
        %733 = vmatpush1.bf16.msra.mxu0 0
        %734 = vmatprep.subr.bf16.mxu0 0
        %735 = vmatpush1.bf16.msra.mxu0 0
        %736 = vmatprep.subr.bf16.mxu0 0
        %737 = vmatpush1.bf16.msra.mxu0 0
        %738 = vmatprep.mubr.bf16.mxu0 0
        %739 = vmatmul.mubr.bf16.gmra.mrb[0].mxu0 %v694
        %v740 = vpop.f32.mrb[0].mxu0
        %v741 = vadd.f32 %v665, %v740
        %v742 = vpop.f32.mrb[0].mxu0
        %v743 = vadd.f32 %v665, %v742
        %v744 = vpop.f32.mrb[0].mxu0
        %v745 = vadd.f32 %v670, %v744
        %v746 = vpop.f32.mrb[0].mxu0
        %v747 = vadd.f32 %v670, %v746
        %748 = vmatprep.mubr.bf16.mxu0 0
        %749 = vmatmul.mubr.bf16.gmra.mrb[0].mxu0 %v697
        %v750 = vpop.f32.mrb[0].mxu0
        %v751 = vadd.f32 %v675, %v750
        %v752 = vpop.f32.mrb[0].mxu0
        %v753 = vadd.f32 %v675, %v752
        %v754 = vpop.f32.mrb[0].mxu0
        %v755 = vadd.f32 %v680, %v754
        %v756 = vpop.f32.mrb[0].mxu0
        %v757 = vadd.f32 %v680, %v756
        %758 = vdwg.mxu0
        %v759 = vxor.u32 %v741, 2147483648
        %v760 = vxor.u32 %v743, 2147483648
        %v761 = vxor.u32 %v745, 2147483648
        %v762 = vxor.u32 %v747, 2147483648
        %v763 = vxor.u32 %v751, 2147483648
        %v764 = vxor.u32 %v753, 2147483648
        %v765 = vxor.u32 %v755, 2147483648
        %v766 = vxor.u32 %v757, 2147483648
        %v767 = vmul.f32 %v759, 1.442695
        %v768 = vpow.pop %v767
        %v769 = vmul.f32 %v760, 1.442695
        %v770 = vpow.pop %v769
        %v771 = vmul.f32 %v761, 1.442695
        %v772 = vpow.pop %v771
        %v773 = vmul.f32 %v762, 1.442695
        %v774 = vpow.pop %v773
        %v775 = vmul.f32 %v763, 1.442695
        %v776 = vpow.pop %v775
        %v777 = vmul.f32 %v764, 1.442695
        %v778 = vpow.pop %v777
        %v779 = vmul.f32 %v765, 1.442695
        %v780 = vpow.pop %v779
        %v781 = vmul.f32 %v766, 1.442695
        %v782 = vpow.pop %v781
        %v783 = vadd.f32 %v768, 1.0
        %v784 = vadd.f32 %v770, 1.0
        %v785 = vadd.f32 %v772, 1.0
        %v786 = vadd.f32 %v774, 1.0
        %v787 = vadd.f32 %v776, 1.0
        %v788 = vadd.f32 %v778, 1.0
        %v789 = vadd.f32 %v780, 1.0
        %v790 = vadd.f32 %v782, 1.0
        %v791 = vrcp.pop %v783
        %v792 = vmul.f32 1.0, %v791
        %v793 = vrcp.pop %v784
        %v794 = vmul.f32 1.0, %v793
        %v795 = vrcp.pop %v785
        %v796 = vmul.f32 1.0, %v795
        %v797 = vrcp.pop %v786
        %v798 = vmul.f32 1.0, %v797
        %v799 = vrcp.pop %v787
        %v800 = vmul.f32 1.0, %v799
        %v801 = vrcp.pop %v788
        %v802 = vmul.f32 1.0, %v801
        %v803 = vrcp.pop %v789
        %v804 = vmul.f32 1.0, %v803
        %v805 = vrcp.pop %v790
        %v806 = vmul.f32 1.0, %v805
        %v807 = vmul.f32 %v741, %v792
        %v808 = vmul.f32 %v743, %v794
        %v809 = vmul.f32 %v745, %v796
        %v810 = vmul.f32 %v747, %v798
        %v811 = vmul.f32 %v751, %v800
        %v812 = vmul.f32 %v753, %v802
        %v813 = vmul.f32 %v755, %v804
        %v814 = vmul.f32 %v757, %v806
        %815 = vrot.lane.b32.xlu0 %v807, 17
        %v816 = vpop.permute.xlu0 %815
        %817 = vrot.lane.b32.xlu0 %v809, 17
        %v818 = vpop.permute.xlu0 %817
        %819 = vrot.lane.b32.xlu0 %v811, 17
        %v820 = vpop.permute.xlu0 %819
        %821 = vrot.lane.b32.xlu0 %v813, 17
        %v822 = vpop.permute.xlu0 %821
        %823 = vrot.lane.b32.xlu0 %v808, 17
        %v824 = vpop.permute.xlu0 %823
        %825 = vrot.lane.b32.xlu0 %v810, 17
        %v826 = vpop.permute.xlu0 %825
        %827 = vrot.lane.b32.xlu0 %v812, 17
        %v828 = vpop.permute.xlu0 %827
        %829 = vrot.lane.b32.xlu0 %v814, 17
        %v830 = vpop.permute.xlu0 %829
        %v831 = vsel %vm408, %v816, %v824
        %v832 = vsel %vm408, %v818, %v826
        %v833 = vsel %vm408, %v820, %v828
        %v834 = vsel %vm408, %v822, %v830
        %v835 = vsel %vm408, %v824, %v816
        %v836 = vsel %vm408, %v826, %v818
        %v837 = vsel %vm408, %v828, %v820
        %v838 = vsel %vm408, %v830, %v822
        %v839 = vld [vmem:[%s7] ss:$8 sm:$0x3]
        %v841 = vlaneseq
        %v842 = vshrl.u32 %v841, 7
        %v843 = vsub.s32 0, %v842
        %v844 = vrot.slane %v839, %v843
        %v845 = vlaneseq
        %v846 = vshrl.u32 %v845, 7
        %v847 = vsub.s32 1, %v846
        %v848 = vrot.slane %v839, %v847
        %v851 = vmul.f32 %v835, %v844
        %v852 = vmul.f32 %v831, %v848
        %v853 = vmul.f32 %v836, %v844
        %v854 = vmul.f32 %v832, %v848
        %v855 = vmul.f32 %v837, %v844
        %v856 = vmul.f32 %v833, %v848
        %v857 = vmul.f32 %v838, %v844
        %v858 = vmul.f32 %v834, %v848
        %859 = vst [vmem:[#allocation3] sm:$0xff] %v851
        %860 = vst [vmem:[#allocation3 + $0x8] sm:$0xff] %v852
        %861 = vst [vmem:[#allocation3 + $0x10] sm:$0xff] %v853
        %862 = vst [vmem:[#allocation3 + $0x18] sm:$0xff] %v854
        %863 = vst [vmem:[#allocation3 + $0x20] sm:$0xff] %v855
        %864 = vst [vmem:[#allocation3 + $0x28] sm:$0xff] %v856
        %865 = vst [vmem:[#allocation3 + $0x30] sm:$0xff] %v857
        %866 = vst [vmem:[#allocation3 + $0x38] sm:$0xff] %v858
        %867 = vrot.lane.b32.xlu0 %v807, 16
        %v868 = vpop.permute.xlu0 %867
        %869 = vrot.lane.b32.xlu0 %v809, 16
        %v870 = vpop.permute.xlu0 %869
        %871 = vrot.lane.b32.xlu0 %v811, 16
        %v872 = vpop.permute.xlu0 %871
        %873 = vrot.lane.b32.xlu0 %v813, 16
        %v874 = vpop.permute.xlu0 %873
        %875 = vrot.lane.b32.xlu0 %v808, 16
        %v876 = vpop.permute.xlu0 %875
        %877 = vrot.lane.b32.xlu0 %v810, 16
        %v878 = vpop.permute.xlu0 %877
        %879 = vrot.lane.b32.xlu0 %v812, 16
        %v880 = vpop.permute.xlu0 %879
        %881 = vrot.lane.b32.xlu0 %v814, 16
        %v882 = vpop.permute.xlu0 %881
        %v883 = vsel %vm431, %v868, %v876
        %v884 = vsel %vm431, %v870, %v878
        %v885 = vsel %vm431, %v872, %v880
        %v886 = vsel %vm431, %v874, %v882
        %v887 = vsel %vm431, %v876, %v868
        %v888 = vsel %vm431, %v878, %v870
        %v889 = vsel %vm431, %v880, %v872
        %v890 = vsel %vm431, %v882, %v874
        %v891 = vld [vmem:[%s434] ss:$8 sm:$0x3]
        %v893 = vlaneseq
        %v894 = vshrl.u32 %v893, 7
        %v895 = vsub.s32 0, %v894
        %v896 = vrot.slane %v891, %v895
        %v897 = vlaneseq
        %v898 = vshrl.u32 %v897, 7
        %v899 = vsub.s32 1, %v898
        %v900 = vrot.slane %v891, %v899
        %v903 = vmul.f32 %v887, %v896
        %v904 = vmul.f32 %v883, %v900
        %v905 = vmul.f32 %v888, %v896
        %v906 = vmul.f32 %v884, %v900
        %v907 = vmul.f32 %v889, %v896
        %v908 = vmul.f32 %v885, %v900
        %v909 = vmul.f32 %v890, %v896
        %v910 = vmul.f32 %v886, %v900
        %911 = vst [vmem:[#allocation3 + $0x40] sm:$0xff] %v903
        %912 = vst [vmem:[#allocation3 + $0x48] sm:$0xff] %v904
        %913 = vst [vmem:[#allocation3 + $0x50] sm:$0xff] %v905
        %914 = vst [vmem:[#allocation3 + $0x58] sm:$0xff] %v906
        %915 = vst [vmem:[#allocation3 + $0x60] sm:$0xff] %v907
        %916 = vst [vmem:[#allocation3 + $0x68] sm:$0xff] %v908
        %917 = vst [vmem:[#allocation3 + $0x70] sm:$0xff] %v909
        %918 = vst [vmem:[#allocation3 + $0x78] sm:$0xff] %v910
        %919 = vrot.lane.b32.xlu0 %v807, 15
        %v920 = vpop.permute.xlu0 %919
        %921 = vrot.lane.b32.xlu0 %v809, 15
        %v922 = vpop.permute.xlu0 %921
        %923 = vrot.lane.b32.xlu0 %v811, 15
        %v924 = vpop.permute.xlu0 %923
        %925 = vrot.lane.b32.xlu0 %v813, 15
        %v926 = vpop.permute.xlu0 %925
        %927 = vrot.lane.b32.xlu0 %v808, 15
        %v928 = vpop.permute.xlu0 %927
        %929 = vrot.lane.b32.xlu0 %v810, 15
        %v930 = vpop.permute.xlu0 %929
        %931 = vrot.lane.b32.xlu0 %v812, 15
        %v932 = vpop.permute.xlu0 %931
        %933 = vrot.lane.b32.xlu0 %v814, 15
        %v934 = vpop.permute.xlu0 %933
        %v935 = vsel %vm461, %v920, %v928
        %v936 = vsel %vm461, %v922, %v930
        %v937 = vsel %vm461, %v924, %v932
        %v938 = vsel %vm461, %v926, %v934
        %v939 = vsel %vm461, %v928, %v920
        %v940 = vsel %vm461, %v930, %v922
        %v941 = vsel %vm461, %v932, %v924
        %v942 = vsel %vm461, %v934, %v926
        %v943 = vld [vmem:[%s464] ss:$8 sm:$0x3]
        %v945 = vlaneseq
        %v946 = vshrl.u32 %v945, 7
        %v947 = vsub.s32 0, %v946
        %v948 = vrot.slane %v943, %v947
        %v949 = vlaneseq
        %v950 = vshrl.u32 %v949, 7
        %v951 = vsub.s32 1, %v950
        %v952 = vrot.slane %v943, %v951
        %v955 = vmul.f32 %v939, %v948
        %v956 = vmul.f32 %v935, %v952
        %v957 = vmul.f32 %v940, %v948
        %v958 = vmul.f32 %v936, %v952
        %v959 = vmul.f32 %v941, %v948
        %v960 = vmul.f32 %v937, %v952
        %v961 = vmul.f32 %v942, %v948
        %v962 = vmul.f32 %v938, %v952
        %963 = vst [vmem:[#allocation3 + $0x80] sm:$0xff] %v955
        %964 = vst [vmem:[#allocation3 + $0x88] sm:$0xff] %v956
        %965 = vst [vmem:[#allocation3 + $0x90] sm:$0xff] %v957
        %966 = vst [vmem:[#allocation3 + $0x98] sm:$0xff] %v958
        %967 = vst [vmem:[#allocation3 + $0xa0] sm:$0xff] %v959
        %968 = vst [vmem:[#allocation3 + $0xa8] sm:$0xff] %v960
        %969 = vst [vmem:[#allocation3 + $0xb0] sm:$0xff] %v961
        %970 = vst [vmem:[#allocation3 + $0xb8] sm:$0xff] %v962
        %971 = vrot.lane.b32.xlu0 %v807, 1
        %v972 = vpop.permute.xlu0 %971
        %973 = vrot.lane.b32.xlu0 %v809, 1
        %v974 = vpop.permute.xlu0 %973
        %975 = vrot.lane.b32.xlu0 %v811, 1
        %v976 = vpop.permute.xlu0 %975
        %977 = vrot.lane.b32.xlu0 %v813, 1
        %v978 = vpop.permute.xlu0 %977
        %979 = vrot.lane.b32.xlu0 %v808, 1
        %v980 = vpop.permute.xlu0 %979
        %981 = vrot.lane.b32.xlu0 %v810, 1
        %v982 = vpop.permute.xlu0 %981
        %983 = vrot.lane.b32.xlu0 %v812, 1
        %v984 = vpop.permute.xlu0 %983
        %985 = vrot.lane.b32.xlu0 %v814, 1
        %v986 = vpop.permute.xlu0 %985
        %v987 = vsel %vm485, %v972, %v980
        %v988 = vsel %vm485, %v974, %v982
        %v989 = vsel %vm485, %v976, %v984
        %v990 = vsel %vm485, %v978, %v986
        %v991 = vsel %vm485, %v980, %v972
        %v992 = vsel %vm485, %v982, %v974
        %v993 = vsel %vm485, %v984, %v976
        %v994 = vsel %vm485, %v986, %v978
        %v995 = vld [vmem:[%s488] ss:$8 sm:$0x3]
        %v997 = vlaneseq
        %v998 = vshrl.u32 %v997, 7
        %v999 = vsub.s32 0, %v998
        %v1000 = vrot.slane %v995, %v999
        %v1001 = vlaneseq
        %v1002 = vshrl.u32 %v1001, 7
        %v1003 = vsub.s32 1, %v1002
        %v1004 = vrot.slane %v995, %v1003
        %v1007 = vmul.f32 %v991, %v1000
        %v1008 = vmul.f32 %v987, %v1004
        %v1009 = vmul.f32 %v992, %v1000
        %v1010 = vmul.f32 %v988, %v1004
        %v1011 = vmul.f32 %v993, %v1000
        %v1012 = vmul.f32 %v989, %v1004
        %v1013 = vmul.f32 %v994, %v1000
        %v1014 = vmul.f32 %v990, %v1004
        %1015 = vst [vmem:[#allocation3 + $0xc0] sm:$0xff] %v1007
        %1016 = vst [vmem:[#allocation3 + $0xc8] sm:$0xff] %v1008
        %1017 = vst [vmem:[#allocation3 + $0xd0] sm:$0xff] %v1009
        %1018 = vst [vmem:[#allocation3 + $0xd8] sm:$0xff] %v1010
        %1019 = vst [vmem:[#allocation3 + $0xe0] sm:$0xff] %v1011
        %1020 = vst [vmem:[#allocation3 + $0xe8] sm:$0xff] %v1012
        %1021 = vst [vmem:[#allocation3 + $0xf0] sm:$0xff] %v1013
        %1022 = vst [vmem:[#allocation3 + $0xf8] sm:$0xff] %v1014
        %v1023 = vld [vmem:[%s511] ss:$8 sm:$0x3]
        %v1025 = vlaneseq
        %v1026 = vshrl.u32 %v1025, 7
        %v1027 = vsub.s32 0, %v1026
        %v1028 = vrot.slane %v1023, %v1027
        %v1029 = vlaneseq
        %v1030 = vshrl.u32 %v1029, 7
        %v1031 = vsub.s32 1, %v1030
        %v1032 = vrot.slane %v1023, %v1031
        %v1035 = vmul.f32 %v807, %v1028
        %v1036 = vmul.f32 %v808, %v1032
        %v1037 = vmul.f32 %v809, %v1028
        %v1038 = vmul.f32 %v810, %v1032
        %v1039 = vmul.f32 %v811, %v1028
        %v1040 = vmul.f32 %v812, %v1032
        %v1041 = vmul.f32 %v813, %v1028
        %v1042 = vmul.f32 %v814, %v1032
        %1043 = vst [vmem:[#allocation3 + $0x100] sm:$0xff] %v1035
        %1044 = vst [vmem:[#allocation3 + $0x108] sm:$0xff] %v1036
        %1045 = vst [vmem:[#allocation3 + $0x110] sm:$0xff] %v1037
        %1046 = vst [vmem:[#allocation3 + $0x118] sm:$0xff] %v1038
        %1047 = vst [vmem:[#allocation3 + $0x120] sm:$0xff] %v1039
        %1048 = vst [vmem:[#allocation3 + $0x128] sm:$0xff] %v1040
        %1049 = vst [vmem:[#allocation3 + $0x130] sm:$0xff] %v1041
        %1050 = vst [vmem:[#allocation3 + $0x138] sm:$0xff] %v1042
        %1051 = vrot.lane.b32.xlu0 %v807, 127
        %v1052 = vpop.permute.xlu0 %1051
        %1053 = vrot.lane.b32.xlu0 %v809, 127
        %v1054 = vpop.permute.xlu0 %1053
        %1055 = vrot.lane.b32.xlu0 %v811, 127
        %v1056 = vpop.permute.xlu0 %1055
        %1057 = vrot.lane.b32.xlu0 %v813, 127
        %v1058 = vpop.permute.xlu0 %1057
        %1059 = vrot.lane.b32.xlu0 %v808, 127
        %v1060 = vpop.permute.xlu0 %1059
        %1061 = vrot.lane.b32.xlu0 %v810, 127
        %v1062 = vpop.permute.xlu0 %1061
        %1063 = vrot.lane.b32.xlu0 %v812, 127
        %v1064 = vpop.permute.xlu0 %1063
        %1065 = vrot.lane.b32.xlu0 %v814, 127
        %v1066 = vpop.permute.xlu0 %1065
        %v1067 = vsel %vm534, %v1052, %v1060
        %v1068 = vsel %vm534, %v1054, %v1062
        %v1069 = vsel %vm534, %v1056, %v1064
        %v1070 = vsel %vm534, %v1058, %v1066
        %v1071 = vsel %vm534, %v1060, %v1052
        %v1072 = vsel %vm534, %v1062, %v1054
        %v1073 = vsel %vm534, %v1064, %v1056
        %v1074 = vsel %vm534, %v1066, %v1058
        %v1075 = vld [vmem:[%s537] ss:$8 sm:$0x3]
        %v1077 = vlaneseq
        %v1078 = vshrl.u32 %v1077, 7
        %v1079 = vsub.s32 0, %v1078
        %v1080 = vrot.slane %v1075, %v1079
        %v1081 = vlaneseq
        %v1082 = vshrl.u32 %v1081, 7
        %v1083 = vsub.s32 1, %v1082
        %v1084 = vrot.slane %v1075, %v1083
        %v1087 = vmul.f32 %v1067, %v1080
        %v1088 = vmul.f32 %v1071, %v1084
        %v1089 = vmul.f32 %v1068, %v1080
        %v1090 = vmul.f32 %v1072, %v1084
        %v1091 = vmul.f32 %v1069, %v1080
        %v1092 = vmul.f32 %v1073, %v1084
        %v1093 = vmul.f32 %v1070, %v1080
        %v1094 = vmul.f32 %v1074, %v1084
        %1095 = vst [vmem:[#allocation3 + $0x140] sm:$0xff] %v1087
        %1096 = vst [vmem:[#allocation3 + $0x148] sm:$0xff] %v1088
        %1097 = vst [vmem:[#allocation3 + $0x150] sm:$0xff] %v1089
        %1098 = vst [vmem:[#allocation3 + $0x158] sm:$0xff] %v1090
        %1099 = vst [vmem:[#allocation3 + $0x160] sm:$0xff] %v1091
        %1100 = vst [vmem:[#allocation3 + $0x168] sm:$0xff] %v1092
        %1101 = vst [vmem:[#allocation3 + $0x170] sm:$0xff] %v1093
        %1102 = vst [vmem:[#allocation3 + $0x178] sm:$0xff] %v1094
        %1103 = vrot.lane.b32.xlu0 %v807, 113
        %v1104 = vpop.permute.xlu0 %1103
        %1105 = vrot.lane.b32.xlu0 %v809, 113
        %v1106 = vpop.permute.xlu0 %1105
        %1107 = vrot.lane.b32.xlu0 %v811, 113
        %v1108 = vpop.permute.xlu0 %1107
        %1109 = vrot.lane.b32.xlu0 %v813, 113
        %v1110 = vpop.permute.xlu0 %1109
        %1111 = vrot.lane.b32.xlu0 %v808, 113
        %v1112 = vpop.permute.xlu0 %1111
        %1113 = vrot.lane.b32.xlu0 %v810, 113
        %v1114 = vpop.permute.xlu0 %1113
        %1115 = vrot.lane.b32.xlu0 %v812, 113
        %v1116 = vpop.permute.xlu0 %1115
        %1117 = vrot.lane.b32.xlu0 %v814, 113
        %v1118 = vpop.permute.xlu0 %1117
        %v1119 = vsel %vm564, %v1104, %v1112
        %v1120 = vsel %vm564, %v1106, %v1114
        %v1121 = vsel %vm564, %v1108, %v1116
        %v1122 = vsel %vm564, %v1110, %v1118
        %v1123 = vsel %vm564, %v1112, %v1104
        %v1124 = vsel %vm564, %v1114, %v1106
        %v1125 = vsel %vm564, %v1116, %v1108
        %v1126 = vsel %vm564, %v1118, %v1110
        %v1127 = vld [vmem:[%s567] ss:$8 sm:$0x3]
        %v1129 = vlaneseq
        %v1130 = vshrl.u32 %v1129, 7
        %v1131 = vsub.s32 0, %v1130
        %v1132 = vrot.slane %v1127, %v1131
        %v1133 = vlaneseq
        %v1134 = vshrl.u32 %v1133, 7
        %v1135 = vsub.s32 1, %v1134
        %v1136 = vrot.slane %v1127, %v1135
        %v1139 = vmul.f32 %v1119, %v1132
        %v1140 = vmul.f32 %v1123, %v1136
        %v1141 = vmul.f32 %v1120, %v1132
        %v1142 = vmul.f32 %v1124, %v1136
        %v1143 = vmul.f32 %v1121, %v1132
        %v1144 = vmul.f32 %v1125, %v1136
        %v1145 = vmul.f32 %v1122, %v1132
        %v1146 = vmul.f32 %v1126, %v1136
        %1147 = vst [vmem:[#allocation3 + $0x180] sm:$0xff] %v1139
        %1148 = vst [vmem:[#allocation3 + $0x188] sm:$0xff] %v1140
        %1149 = vst [vmem:[#allocation3 + $0x190] sm:$0xff] %v1141
        %1150 = vst [vmem:[#allocation3 + $0x198] sm:$0xff] %v1142
        %1151 = vst [vmem:[#allocation3 + $0x1a0] sm:$0xff] %v1143
        %1152 = vst [vmem:[#allocation3 + $0x1a8] sm:$0xff] %v1144
        %1153 = vst [vmem:[#allocation3 + $0x1b0] sm:$0xff] %v1145
        %1154 = vst [vmem:[#allocation3 + $0x1b8] sm:$0xff] %v1146
        %1155 = vrot.lane.b32.xlu0 %v807, 112
        %v1156 = vpop.permute.xlu0 %1155
        %1157 = vrot.lane.b32.xlu0 %v809, 112
        %v1158 = vpop.permute.xlu0 %1157
        %1159 = vrot.lane.b32.xlu0 %v811, 112
        %v1160 = vpop.permute.xlu0 %1159
        %1161 = vrot.lane.b32.xlu0 %v813, 112
        %v1162 = vpop.permute.xlu0 %1161
        %1163 = vrot.lane.b32.xlu0 %v808, 112
        %v1164 = vpop.permute.xlu0 %1163
        %1165 = vrot.lane.b32.xlu0 %v810, 112
        %v1166 = vpop.permute.xlu0 %1165
        %1167 = vrot.lane.b32.xlu0 %v812, 112
        %v1168 = vpop.permute.xlu0 %1167
        %1169 = vrot.lane.b32.xlu0 %v814, 112
        %v1170 = vpop.permute.xlu0 %1169
        %v1171 = vsel %vm588, %v1156, %v1164
        %v1172 = vsel %vm588, %v1158, %v1166
        %v1173 = vsel %vm588, %v1160, %v1168
        %v1174 = vsel %vm588, %v1162, %v1170
        %v1175 = vsel %vm588, %v1164, %v1156
        %v1176 = vsel %vm588, %v1166, %v1158
        %v1177 = vsel %vm588, %v1168, %v1160
        %v1178 = vsel %vm588, %v1170, %v1162
        %v1179 = vld [vmem:[%s591] ss:$8 sm:$0x3]
        %v1181 = vlaneseq
        %v1182 = vshrl.u32 %v1181, 7
        %v1183 = vsub.s32 0, %v1182
        %v1184 = vrot.slane %v1179, %v1183
        %v1185 = vlaneseq
        %v1186 = vshrl.u32 %v1185, 7
        %v1187 = vsub.s32 1, %v1186
        %v1188 = vrot.slane %v1179, %v1187
        %v1191 = vmul.f32 %v1171, %v1184
        %v1192 = vmul.f32 %v1175, %v1188
        %v1193 = vmul.f32 %v1172, %v1184
        %v1194 = vmul.f32 %v1176, %v1188
        %v1195 = vmul.f32 %v1173, %v1184
        %v1196 = vmul.f32 %v1177, %v1188
        %v1197 = vmul.f32 %v1174, %v1184
        %v1198 = vmul.f32 %v1178, %v1188
        %1199 = vst [vmem:[#allocation3 + $0x1c0] sm:$0xff] %v1191
        %1200 = vst [vmem:[#allocation3 + $0x1c8] sm:$0xff] %v1192
        %1201 = vst [vmem:[#allocation3 + $0x1d0] sm:$0xff] %v1193
        %1202 = vst [vmem:[#allocation3 + $0x1d8] sm:$0xff] %v1194
        %1203 = vst [vmem:[#allocation3 + $0x1e0] sm:$0xff] %v1195
        %1204 = vst [vmem:[#allocation3 + $0x1e8] sm:$0xff] %v1196
        %1205 = vst [vmem:[#allocation3 + $0x1f0] sm:$0xff] %v1197
        %1206 = vst [vmem:[#allocation3 + $0x1f8] sm:$0xff] %v1198
        %1207 = vrot.lane.b32.xlu0 %v807, 111
        %v1208 = vpop.permute.xlu0 %1207
        %1209 = vrot.lane.b32.xlu0 %v809, 111
        %v1210 = vpop.permute.xlu0 %1209
        %1211 = vrot.lane.b32.xlu0 %v811, 111
        %v1212 = vpop.permute.xlu0 %1211
        %1213 = vrot.lane.b32.xlu0 %v813, 111
        %v1214 = vpop.permute.xlu0 %1213
        %1215 = vrot.lane.b32.xlu0 %v808, 111
        %v1216 = vpop.permute.xlu0 %1215
        %1217 = vrot.lane.b32.xlu0 %v810, 111
        %v1218 = vpop.permute.xlu0 %1217
        %1219 = vrot.lane.b32.xlu0 %v812, 111
        %v1220 = vpop.permute.xlu0 %1219
        %1221 = vrot.lane.b32.xlu0 %v814, 111
        %v1222 = vpop.permute.xlu0 %1221
        %v1223 = vsel %vm618, %v1208, %v1216
        %v1224 = vsel %vm618, %v1210, %v1218
        %v1225 = vsel %vm618, %v1212, %v1220
        %v1226 = vsel %vm618, %v1214, %v1222
        %v1227 = vsel %vm618, %v1216, %v1208
        %v1228 = vsel %vm618, %v1218, %v1210
        %v1229 = vsel %vm618, %v1220, %v1212
        %v1230 = vsel %vm618, %v1222, %v1214
        %v1231 = vld [vmem:[%s621] ss:$8 sm:$0x3]
        %v1233 = vlaneseq
        %v1234 = vshrl.u32 %v1233, 7
        %v1235 = vsub.s32 0, %v1234
        %v1236 = vrot.slane %v1231, %v1235
        %v1237 = vlaneseq
        %v1238 = vshrl.u32 %v1237, 7
        %v1239 = vsub.s32 1, %v1238
        %v1240 = vrot.slane %v1231, %v1239
        %v1243 = vmul.f32 %v1223, %v1236
        %v1244 = vmul.f32 %v1227, %v1240
        %v1245 = vmul.f32 %v1224, %v1236
        %v1246 = vmul.f32 %v1228, %v1240
        %v1247 = vmul.f32 %v1225, %v1236
        %v1248 = vmul.f32 %v1229, %v1240
        %v1249 = vmul.f32 %v1226, %v1236
        %v1250 = vmul.f32 %v1230, %v1240
        %1251 = vst [vmem:[#allocation3 + $0x200] sm:$0xff] %v1243
        %1252 = vst [vmem:[#allocation3 + $0x208] sm:$0xff] %v1244
        %1253 = vst [vmem:[#allocation3 + $0x210] sm:$0xff] %v1245
        %1254 = vst [vmem:[#allocation3 + $0x218] sm:$0xff] %v1246
        %1255 = vst [vmem:[#allocation3 + $0x220] sm:$0xff] %v1247
        %1256 = vst [vmem:[#allocation3 + $0x228] sm:$0xff] %v1248
        %1257 = vst [vmem:[#allocation3 + $0x230] sm:$0xff] %v1249
        %1258 = vst [vmem:[#allocation3 + $0x238] sm:$0xff] %v1250
        %v1259 = vld [vmem:[%s5] sm:$0x3f]
        %v1260 = vld [vmem:[#allocation3] sm:$0xff]
        %v1261 = vld [vmem:[#allocation3 + $0x8] sm:$0xff]
        %v1262 = vld [vmem:[#allocation3 + $0x10] sm:$0xff]
        %v1263 = vld [vmem:[#allocation3 + $0x18] sm:$0xff]
        %v1264 = vld [vmem:[#allocation3 + $0x20] sm:$0xff]
        %v1265 = vld [vmem:[#allocation3 + $0x28] sm:$0xff]
        %v1266 = vld [vmem:[#allocation3 + $0x30] sm:$0xff]
        %v1267 = vld [vmem:[#allocation3 + $0x38] sm:$0xff]
        %v1268 = vld [vmem:[#allocation3 + $0x40] sm:$0xff]
        %v1269 = vld [vmem:[#allocation3 + $0x48] sm:$0xff]
        %v1270 = vld [vmem:[#allocation3 + $0x50] sm:$0xff]
        %v1271 = vld [vmem:[#allocation3 + $0x58] sm:$0xff]
        %v1272 = vld [vmem:[#allocation3 + $0x60] sm:$0xff]
        %v1273 = vld [vmem:[#allocation3 + $0x68] sm:$0xff]
        %v1274 = vld [vmem:[#allocation3 + $0x70] sm:$0xff]
        %v1275 = vld [vmem:[#allocation3 + $0x78] sm:$0xff]
        %v1276 = vld [vmem:[#allocation3 + $0x80] sm:$0xff]
        %v1277 = vld [vmem:[#allocation3 + $0x88] sm:$0xff]
        %v1278 = vld [vmem:[#allocation3 + $0x90] sm:$0xff]
        %v1279 = vld [vmem:[#allocation3 + $0x98] sm:$0xff]
        %v1280 = vld [vmem:[#allocation3 + $0xa0] sm:$0xff]
        %v1281 = vld [vmem:[#allocation3 + $0xa8] sm:$0xff]
        %v1282 = vld [vmem:[#allocation3 + $0xb0] sm:$0xff]
        %v1283 = vld [vmem:[#allocation3 + $0xb8] sm:$0xff]
        %v1284 = vld [vmem:[#allocation3 + $0xc0] sm:$0xff]
        %v1285 = vld [vmem:[#allocation3 + $0xc8] sm:$0xff]
        %v1286 = vld [vmem:[#allocation3 + $0xd0] sm:$0xff]
        %v1287 = vld [vmem:[#allocation3 + $0xd8] sm:$0xff]
        %v1288 = vld [vmem:[#allocation3 + $0xe0] sm:$0xff]
        %v1289 = vld [vmem:[#allocation3 + $0xe8] sm:$0xff]
        %v1290 = vld [vmem:[#allocation3 + $0xf0] sm:$0xff]
        %v1291 = vld [vmem:[#allocation3 + $0xf8] sm:$0xff]
        %v1292 = vld [vmem:[#allocation3 + $0x100] sm:$0xff]
        %v1293 = vld [vmem:[#allocation3 + $0x108] sm:$0xff]
        %v1294 = vld [vmem:[#allocation3 + $0x110] sm:$0xff]
        %v1295 = vld [vmem:[#allocation3 + $0x118] sm:$0xff]
        %v1296 = vld [vmem:[#allocation3 + $0x120] sm:$0xff]
        %v1297 = vld [vmem:[#allocation3 + $0x128] sm:$0xff]
        %v1298 = vld [vmem:[#allocation3 + $0x130] sm:$0xff]
        %v1299 = vld [vmem:[#allocation3 + $0x138] sm:$0xff]
        %v1300 = vld [vmem:[#allocation3 + $0x140] sm:$0xff]
        %v1301 = vld [vmem:[#allocation3 + $0x148] sm:$0xff]
        %v1302 = vld [vmem:[#allocation3 + $0x150] sm:$0xff]
        %v1303 = vld [vmem:[#allocation3 + $0x158] sm:$0xff]
        %v1304 = vld [vmem:[#allocation3 + $0x160] sm:$0xff]
        %v1305 = vld [vmem:[#allocation3 + $0x168] sm:$0xff]
        %v1306 = vld [vmem:[#allocation3 + $0x170] sm:$0xff]
        %v1307 = vld [vmem:[#allocation3 + $0x178] sm:$0xff]
        %v1308 = vld [vmem:[#allocation3 + $0x180] sm:$0xff]
        %v1309 = vld [vmem:[#allocation3 + $0x188] sm:$0xff]
        %v1310 = vld [vmem:[#allocation3 + $0x190] sm:$0xff]
        %v1311 = vld [vmem:[#allocation3 + $0x198] sm:$0xff]
        %v1312 = vld [vmem:[#allocation3 + $0x1a0] sm:$0xff]
        %v1313 = vld [vmem:[#allocation3 + $0x1a8] sm:$0xff]
        %v1314 = vld [vmem:[#allocation3 + $0x1b0] sm:$0xff]
        %v1315 = vld [vmem:[#allocation3 + $0x1b8] sm:$0xff]
        %v1316 = vld [vmem:[#allocation3 + $0x1c0] sm:$0xff]
        %v1317 = vld [vmem:[#allocation3 + $0x1c8] sm:$0xff]
        %v1318 = vld [vmem:[#allocation3 + $0x1d0] sm:$0xff]
        %v1319 = vld [vmem:[#allocation3 + $0x1d8] sm:$0xff]
        %v1320 = vld [vmem:[#allocation3 + $0x1e0] sm:$0xff]
        %v1321 = vld [vmem:[#allocation3 + $0x1e8] sm:$0xff]
        %v1322 = vld [vmem:[#allocation3 + $0x1f0] sm:$0xff]
        %v1323 = vld [vmem:[#allocation3 + $0x1f8] sm:$0xff]
        %v1324 = vld [vmem:[#allocation3 + $0x200] sm:$0xff]
        %v1325 = vld [vmem:[#allocation3 + $0x208] sm:$0xff]
        %v1326 = vld [vmem:[#allocation3 + $0x210] sm:$0xff]
        %v1327 = vld [vmem:[#allocation3 + $0x218] sm:$0xff]
        %v1328 = vld [vmem:[#allocation3 + $0x220] sm:$0xff]
        %v1329 = vld [vmem:[#allocation3 + $0x228] sm:$0xff]
        %v1330 = vld [vmem:[#allocation3 + $0x230] sm:$0xff]
        %v1331 = vld [vmem:[#allocation3 + $0x238] sm:$0xff]
        %v1332 = vpack.c.bf16 %v1262, %v1260
        %v1333 = vpack.c.bf16 %v1263, %v1261
        %v1334 = vpack.c.bf16 %v1266, %v1264
        %v1335 = vpack.c.bf16 %v1267, %v1265
        %v1336 = vpack.c.bf16 %v1270, %v1268
        %v1337 = vpack.c.bf16 %v1271, %v1269
        %v1338 = vpack.c.bf16 %v1274, %v1272
        %v1339 = vpack.c.bf16 %v1275, %v1273
        %v1340 = vpack.c.bf16 %v1278, %v1276
        %v1341 = vpack.c.bf16 %v1279, %v1277
        %v1342 = vpack.c.bf16 %v1282, %v1280
        %v1343 = vpack.c.bf16 %v1283, %v1281
        %v1344 = vpack.c.bf16 %v1286, %v1284
        %v1345 = vpack.c.bf16 %v1287, %v1285
        %v1346 = vpack.c.bf16 %v1290, %v1288
        %v1347 = vpack.c.bf16 %v1291, %v1289
        %v1348 = vpack.c.bf16 %v1294, %v1292
        %v1349 = vpack.c.bf16 %v1295, %v1293
        %v1350 = vpack.c.bf16 %v1298, %v1296
        %v1351 = vpack.c.bf16 %v1299, %v1297
        %v1352 = vpack.c.bf16 %v1302, %v1300
        %v1353 = vpack.c.bf16 %v1303, %v1301
        %v1354 = vpack.c.bf16 %v1306, %v1304
        %v1355 = vpack.c.bf16 %v1307, %v1305
        %v1356 = vpack.c.bf16 %v1310, %v1308
        %v1357 = vpack.c.bf16 %v1311, %v1309
        %v1358 = vpack.c.bf16 %v1314, %v1312
        %v1359 = vpack.c.bf16 %v1315, %v1313
        %v1360 = vpack.c.bf16 %v1318, %v1316
        %v1361 = vpack.c.bf16 %v1319, %v1317
        %v1362 = vpack.c.bf16 %v1322, %v1320
        %v1363 = vpack.c.bf16 %v1323, %v1321
        %v1364 = vpack.c.bf16 %v1326, %v1324
        %v1365 = vpack.c.bf16 %v1327, %v1325
        %v1366 = vpack.c.bf16 %v1330, %v1328
        %v1367 = vpack.c.bf16 %v1331, %v1329
        %v1368 = vld [vmem:[%s6] sm:$0xf]
        %1370 = vset.pattern.permute.xlu0 0
        %1371 = vperm.xlu0 %1370, %v1368
        %v1372 = vpop.permute.xlu0 %1371
        %v1375 = vcombine.high %v1259, %v1259
        %v1377 = vunpack.c.l.s4 1983009808
        %v1378 = vunpack.c.0.s8 %v1377
        %v1379 = vlaneseq
        %v1380 = vshrl.u32 %v1379, 7
        %v1381 = vsub.s32 %v1378, %v1380
        %v1382 = vrot.slane %v1259, %v1381
        %v1384 = vunpack.c.l.s4 1983009808
        %v1385 = vunpack.c.0.s8 %v1384
        %v1386 = vlaneseq
        %v1387 = vshrl.u32 %v1386, 7
        %v1388 = vsub.s32 %v1385, %v1387
        %v1389 = vrot.slane %v1375, %v1388
        %v1390 = vcombine.high %v1382, %v1382
        %vm1393 = vcmask 261120
        %v1395 = vsel %vm1393, %v1389, 0
        %1397 = vmatprep.subr.bf16.mxu0 %v1333
        %1398 = vmatpush1.bf16.msra.mxu0 %v1332
        %1399 = vmatprep.subr.bf16.mxu0 %v1335
        %1400 = vmatpush1.bf16.msra.mxu0 %v1334
        %1401 = vmatprep.subr.bf16.mxu0 %v1337
        %1402 = vmatpush1.bf16.msra.mxu0 %v1336
        %1403 = vmatprep.subr.bf16.mxu0 %v1339
        %1404 = vmatpush1.bf16.msra.mxu0 %v1338
        %1405 = vmatprep.subr.bf16.mxu0 %v1341
        %1406 = vmatpush1.bf16.msra.mxu0 %v1340
        %1407 = vmatprep.subr.bf16.mxu0 %v1343
        %1408 = vmatpush1.bf16.msra.mxu0 %v1342
        %1409 = vmatprep.subr.bf16.mxu0 %v1345
        %1410 = vmatpush1.bf16.msra.mxu0 %v1344
        %1411 = vmatprep.subr.bf16.mxu0 %v1347
        %1412 = vmatpush1.bf16.msra.mxu0 %v1346
        %1413 = vmatprep.subr.bf16.mxu0 %v1349
        %1414 = vmatpush1.bf16.msra.mxu0 %v1348
        %1415 = vmatprep.subr.bf16.mxu0 %v1351
        %1416 = vmatpush1.bf16.msra.mxu0 %v1350
        %1417 = vmatprep.subr.bf16.mxu0 %v1353
        %1418 = vmatpush1.bf16.msra.mxu0 %v1352
        %1419 = vmatprep.subr.bf16.mxu0 %v1355
        %1420 = vmatpush1.bf16.msra.mxu0 %v1354
        %1421 = vmatprep.subr.bf16.mxu0 %v1357
        %1422 = vmatpush1.bf16.msra.mxu0 %v1356
        %1423 = vmatprep.subr.bf16.mxu0 %v1359
        %1424 = vmatpush1.bf16.msra.mxu0 %v1358
        %1425 = vmatprep.subr.bf16.mxu0 %v1361
        %1426 = vmatpush1.bf16.msra.mxu0 %v1360
        %1427 = vmatprep.subr.bf16.mxu0 %v1363
        %1428 = vmatpush1.bf16.msra.mxu0 %v1362
        %1429 = vmatprep.mubr.bf16.mxu0 %v1390
        %1430 = vmatmul.mubr.bf16.gmra.mrb[0].mxu0 %v1382
        %v1431 = vpop.f32.mrb[0].mxu0
        %v1432 = vadd.f32 %v1372, %v1431
        %v1433 = vpop.f32.mrb[0].mxu0
        %v1434 = vadd.f32 %v1372, %v1433
        %v1435 = vpop.f32.mrb[0].mxu0
        %v1436 = vpop.f32.mrb[0].mxu0
        %1437 = vdwg.mxu0
        %1438 = vmatprep.subr.bf16.mxu0 %v1365
        %1439 = vmatpush1.bf16.msra.mxu0 %v1364
        %1440 = vmatprep.subr.bf16.mxu0 %v1367
        %1441 = vmatpush1.bf16.msra.mxu0 %v1366
        %1442 = vmatprep.subr.bf16.mxu0 0
        %1443 = vmatpush1.bf16.msra.mxu0 0
        %1444 = vmatprep.subr.bf16.mxu0 0
        %1445 = vmatpush1.bf16.msra.mxu0 0
        %1446 = vmatprep.subr.bf16.mxu0 0
        %1447 = vmatpush1.bf16.msra.mxu0 0
        %1448 = vmatprep.subr.bf16.mxu0 0
        %1449 = vmatpush1.bf16.msra.mxu0 0
        %1450 = vmatprep.subr.bf16.mxu0 0
        %1451 = vmatpush1.bf16.msra.mxu0 0
        %1452 = vmatprep.subr.bf16.mxu0 0
        %1453 = vmatpush1.bf16.msra.mxu0 0
        %1454 = vmatprep.subr.bf16.mxu0 0
        %1455 = vmatpush1.bf16.msra.mxu0 0
        %1456 = vmatprep.subr.bf16.mxu0 0
        %1457 = vmatpush1.bf16.msra.mxu0 0
        %1458 = vmatprep.subr.bf16.mxu0 0
        %1459 = vmatpush1.bf16.msra.mxu0 0
        %1460 = vmatprep.subr.bf16.mxu0 0
        %1461 = vmatpush1.bf16.msra.mxu0 0
        %1462 = vmatprep.subr.bf16.mxu0 0
        %1463 = vmatpush1.bf16.msra.mxu0 0
        %1464 = vmatprep.subr.bf16.mxu0 0
        %1465 = vmatpush1.bf16.msra.mxu0 0
        %1466 = vmatprep.subr.bf16.mxu0 0
        %1467 = vmatpush1.bf16.msra.mxu0 0
        %1468 = vmatprep.subr.bf16.mxu0 0
        %1469 = vmatpush1.bf16.msra.mxu0 0
        %1470 = vmatprep.mubr.bf16.mxu0 0
        %1471 = vmatmul.mubr.bf16.gmra.mrb[0].mxu0 %v1395
        %v1472 = vpop.f32.mrb[0].mxu0
        %v1473 = vadd.f32 %v1432, %v1472
        %v1474 = vpop.f32.mrb[0].mxu0
        %v1475 = vadd.f32 %v1434, %v1474
        %v1476 = vpop.f32.mrb[0].mxu0
        %v1477 = vpop.f32.mrb[0].mxu0
        %1478 = vdwg.mxu0
        %v1479 = vmul.f32 %v1473, 0.039696977
        %v1480 = vmul.f32 %v1475, 0.039696977
        %v1483 = vcombine.low %v1479, %v1480
        %v1485 = vsub.f32 %v398, %v1483
        %v1486 = vmul.f32 %v1485, 1.0016251
        %v1487 = vld [vmem:[%s340] sm:$0xff]
        %v1488 = vmul.f32 %v1487, 0.040886123
        %v1489 = vadd.f32 %v1486, %v1488
        %v1491 = vcombine.high %v1489, %v1489
        %1493 = vrot.lane.b32.xlu0 %v1489, 17
        %v1494 = vpop.permute.xlu0 %1493
        %1495 = vrot.lane.b32.xlu0 %v1491, 17
        %v1496 = vpop.permute.xlu0 %1495
        %v1497 = vsel %vm408, %v1494, %v1496
        %v1498 = vsel %vm408, %v1496, %v1494
        %v1499 = vld [vmem:[%s7] ss:$8 sm:$0x3]
        %v1501 = vlaneseq
        %v1502 = vshrl.u32 %v1501, 7
        %v1503 = vsub.s32 0, %v1502
        %v1504 = vrot.slane %v1499, %v1503
        %v1505 = vlaneseq
        %v1506 = vshrl.u32 %v1505, 7
        %v1507 = vsub.s32 1, %v1506
        %v1508 = vrot.slane %v1499, %v1507
        %v1511 = vmul.f32 %v1498, %v1504
        %v1512 = vmul.f32 %v1497, %v1508
        %1513 = vst [vmem:[#allocation2] sm:$0xf] %v1511
        %1514 = vst [vmem:[#allocation2 + $0x8] sm:$0xf] %v1512
        %1515 = vrot.lane.b32.xlu0 %v1489, 16
        %v1516 = vpop.permute.xlu0 %1515
        %1517 = vrot.lane.b32.xlu0 %v1491, 16
        %v1518 = vpop.permute.xlu0 %1517
        %v1519 = vsel %vm431, %v1516, %v1518
        %v1520 = vsel %vm431, %v1518, %v1516
        %v1521 = vld [vmem:[%s434] ss:$8 sm:$0x3]
        %v1523 = vlaneseq
        %v1524 = vshrl.u32 %v1523, 7
        %v1525 = vsub.s32 0, %v1524
        %v1526 = vrot.slane %v1521, %v1525
        %v1527 = vlaneseq
        %v1528 = vshrl.u32 %v1527, 7
        %v1529 = vsub.s32 1, %v1528
        %v1530 = vrot.slane %v1521, %v1529
        %v1533 = vmul.f32 %v1520, %v1526
        %v1534 = vmul.f32 %v1519, %v1530
        %v1537 = vrot.slane %v1533, 4
        %v1538 = vrot.slane %v1534, 4
        %1541 = vst [vmem:[#allocation2] sm:$0xf0] %v1537
        %1542 = vst [vmem:[#allocation2 + $0x8] sm:$0xf0] %v1538
        %1543 = vrot.lane.b32.xlu0 %v1489, 15
        %v1544 = vpop.permute.xlu0 %1543
        %1545 = vrot.lane.b32.xlu0 %v1491, 15
        %v1546 = vpop.permute.xlu0 %1545
        %v1547 = vsel %vm461, %v1544, %v1546
        %v1548 = vsel %vm461, %v1546, %v1544
        %v1549 = vld [vmem:[%s464] ss:$8 sm:$0x3]
        %v1551 = vlaneseq
        %v1552 = vshrl.u32 %v1551, 7
        %v1553 = vsub.s32 0, %v1552
        %v1554 = vrot.slane %v1549, %v1553
        %v1555 = vlaneseq
        %v1556 = vshrl.u32 %v1555, 7
        %v1557 = vsub.s32 1, %v1556
        %v1558 = vrot.slane %v1549, %v1557
        %v1561 = vmul.f32 %v1548, %v1554
        %v1562 = vmul.f32 %v1547, %v1558
        %1563 = vst [vmem:[#allocation2 + $0x10] sm:$0xf] %v1561
        %1564 = vst [vmem:[#allocation2 + $0x18] sm:$0xf] %v1562
        %1565 = vrot.lane.b32.xlu0 %v1489, 1
        %v1566 = vpop.permute.xlu0 %1565
        %1567 = vrot.lane.b32.xlu0 %v1491, 1
        %v1568 = vpop.permute.xlu0 %1567
        %v1569 = vsel %vm485, %v1566, %v1568
        %v1570 = vsel %vm485, %v1568, %v1566
        %v1571 = vld [vmem:[%s488] ss:$8 sm:$0x3]
        %v1573 = vlaneseq
        %v1574 = vshrl.u32 %v1573, 7
        %v1575 = vsub.s32 0, %v1574
        %v1576 = vrot.slane %v1571, %v1575
        %v1577 = vlaneseq
        %v1578 = vshrl.u32 %v1577, 7
        %v1579 = vsub.s32 1, %v1578
        %v1580 = vrot.slane %v1571, %v1579
        %v1583 = vmul.f32 %v1570, %v1576
        %v1584 = vmul.f32 %v1569, %v1580
        %v1587 = vrot.slane %v1583, 4
        %v1588 = vrot.slane %v1584, 4
        %1591 = vst [vmem:[#allocation2 + $0x10] sm:$0xf0] %v1587
        %1592 = vst [vmem:[#allocation2 + $0x18] sm:$0xf0] %v1588
        %v1593 = vld [vmem:[%s511] ss:$8 sm:$0x3]
        %v1595 = vlaneseq
        %v1596 = vshrl.u32 %v1595, 7
        %v1597 = vsub.s32 0, %v1596
        %v1598 = vrot.slane %v1593, %v1597
        %v1599 = vlaneseq
        %v1600 = vshrl.u32 %v1599, 7
        %v1601 = vsub.s32 1, %v1600
        %v1602 = vrot.slane %v1593, %v1601
        %v1603 = vcombine.low %v1598, %v1602
        %v1605 = vmul.f32 %v1489, %v1603
        %v1607 = vcombine.high %v1605, %v1605
        %1609 = vst [vmem:[#allocation2 + $0x20] sm:$0xf] %v1605
        %1610 = vst [vmem:[#allocation2 + $0x28] sm:$0xf] %v1607
        %1611 = vrot.lane.b32.xlu0 %v1489, 127
        %v1612 = vpop.permute.xlu0 %1611
        %1613 = vrot.lane.b32.xlu0 %v1491, 127
        %v1614 = vpop.permute.xlu0 %1613
        %v1615 = vsel %vm534, %v1612, %v1614
        %v1616 = vsel %vm534, %v1614, %v1612
        %v1617 = vld [vmem:[%s537] ss:$8 sm:$0x3]
        %v1619 = vlaneseq
        %v1620 = vshrl.u32 %v1619, 7
        %v1621 = vsub.s32 0, %v1620
        %v1622 = vrot.slane %v1617, %v1621
        %v1623 = vlaneseq
        %v1624 = vshrl.u32 %v1623, 7
        %v1625 = vsub.s32 1, %v1624
        %v1626 = vrot.slane %v1617, %v1625
        %v1629 = vmul.f32 %v1615, %v1622
        %v1630 = vmul.f32 %v1616, %v1626
        %v1633 = vrot.slane %v1629, 4
        %v1634 = vrot.slane %v1630, 4
        %1637 = vst [vmem:[#allocation2 + $0x20] sm:$0xf0] %v1633
        %1638 = vst [vmem:[#allocation2 + $0x28] sm:$0xf0] %v1634
        %1639 = vrot.lane.b32.xlu0 %v1489, 113
        %v1640 = vpop.permute.xlu0 %1639
        %1641 = vrot.lane.b32.xlu0 %v1491, 113
        %v1642 = vpop.permute.xlu0 %1641
        %v1643 = vsel %vm564, %v1640, %v1642
        %v1644 = vsel %vm564, %v1642, %v1640
        %v1645 = vld [vmem:[%s567] ss:$8 sm:$0x3]
        %v1647 = vlaneseq
        %v1648 = vshrl.u32 %v1647, 7
        %v1649 = vsub.s32 0, %v1648
        %v1650 = vrot.slane %v1645, %v1649
        %v1651 = vlaneseq
        %v1652 = vshrl.u32 %v1651, 7
        %v1653 = vsub.s32 1, %v1652
        %v1654 = vrot.slane %v1645, %v1653
        %v1657 = vmul.f32 %v1643, %v1650
        %v1658 = vmul.f32 %v1644, %v1654
        %1659 = vst [vmem:[#allocation2 + $0x30] sm:$0xf] %v1657
        %1660 = vst [vmem:[#allocation2 + $0x38] sm:$0xf] %v1658
        %1661 = vrot.lane.b32.xlu0 %v1489, 112
        %v1662 = vpop.permute.xlu0 %1661
        %1663 = vrot.lane.b32.xlu0 %v1491, 112
        %v1664 = vpop.permute.xlu0 %1663
        %v1665 = vsel %vm588, %v1662, %v1664
        %v1666 = vsel %vm588, %v1664, %v1662
        %v1667 = vld [vmem:[%s591] ss:$8 sm:$0x3]
        %v1669 = vlaneseq
        %v1670 = vshrl.u32 %v1669, 7
        %v1671 = vsub.s32 0, %v1670
        %v1672 = vrot.slane %v1667, %v1671
        %v1673 = vlaneseq
        %v1674 = vshrl.u32 %v1673, 7
        %v1675 = vsub.s32 1, %v1674
        %v1676 = vrot.slane %v1667, %v1675
        %v1679 = vmul.f32 %v1665, %v1672
        %v1680 = vmul.f32 %v1666, %v1676
        %v1683 = vrot.slane %v1679, 4
        %v1684 = vrot.slane %v1680, 4
        %1687 = vst [vmem:[#allocation2 + $0x30] sm:$0xf0] %v1683
        %1688 = vst [vmem:[#allocation2 + $0x38] sm:$0xf0] %v1684
        %1689 = vrot.lane.b32.xlu0 %v1489, 111
        %v1690 = vpop.permute.xlu0 %1689
        %1691 = vrot.lane.b32.xlu0 %v1491, 111
        %v1692 = vpop.permute.xlu0 %1691
        %v1693 = vsel %vm618, %v1690, %v1692
        %v1694 = vsel %vm618, %v1692, %v1690
        %v1695 = vld [vmem:[%s621] ss:$8 sm:$0x3]
        %v1697 = vlaneseq
        %v1698 = vshrl.u32 %v1697, 7
        %v1699 = vsub.s32 0, %v1698
        %v1700 = vrot.slane %v1695, %v1699
        %v1701 = vlaneseq
        %v1702 = vshrl.u32 %v1701, 7
        %v1703 = vsub.s32 1, %v1702
        %v1704 = vrot.slane %v1695, %v1703
        %v1707 = vmul.f32 %v1693, %v1700
        %v1708 = vmul.f32 %v1694, %v1704
        %1709 = vst [vmem:[#allocation2 + $0x40] sm:$0xf] %v1707
        %1710 = vst [vmem:[#allocation2 + $0x48] sm:$0xf] %v1708
        %v1711 = vld [vmem:[%s3] sm:$0xf]
        %v1712 = vld [vmem:[%s3 + $0x4] sm:$0xf]
        %v1713 = vld [vmem:[%s3 + $0x8] sm:$0xf]
        %v1714 = vld [vmem:[%s3 + $0xc] sm:$0xf]
        %v1715 = vld [vmem:[#allocation2] sm:$0xff]
        %v1716 = vld [vmem:[#allocation2 + $0x8] sm:$0xff]
        %v1717 = vld [vmem:[#allocation2 + $0x10] sm:$0xff]
        %v1718 = vld [vmem:[#allocation2 + $0x18] sm:$0xff]
        %v1719 = vld [vmem:[#allocation2 + $0x20] sm:$0xff]
        %v1720 = vld [vmem:[#allocation2 + $0x28] sm:$0xff]
        %v1721 = vld [vmem:[#allocation2 + $0x30] sm:$0xff]
        %v1722 = vld [vmem:[#allocation2 + $0x38] sm:$0xff]
        %v1723 = vld [vmem:[#allocation2 + $0x40] sm:$0xf]
        %v1724 = vld [vmem:[#allocation2 + $0x48] sm:$0xf]
        %v1725 = vpack.c.bf16 %v1717, %v1715
        %v1726 = vpack.c.bf16 %v1718, %v1716
        %v1727 = vpack.c.bf16 %v1721, %v1719
        %v1728 = vpack.c.bf16 %v1722, %v1720
        %v1729 = vpack.c.bf16 %v1723, %v1723
        %v1730 = vpack.c.bf16 %v1724, %v1724
        %s1731 = scalar_lea.vmem %s4, 32
        %v1732 = vld [vmem:[%s1731] sm:$0xff]
        %v1733 = vld [vmem:[%s1731 + $0x8] sm:$0xff]
        %v1734 = vld [vmem:[%s1731 + $0x10] sm:$0xff]
        %v1735 = vld [vmem:[%s1731 + $0x18] sm:$0xff]
        %1737 = vset.pattern.permute.xlu0 0
        %1738 = vperm.xlu0 %1737, %v1732
        %v1739 = vpop.permute.xlu0 %1738
        %1742 = vset.pattern.permute.xlu0 0
        %1743 = vperm.xlu0 %1742, %v1733
        %v1744 = vpop.permute.xlu0 %1743
        %1747 = vset.pattern.permute.xlu0 0
        %1748 = vperm.xlu0 %1747, %v1734
        %v1749 = vpop.permute.xlu0 %1748
        %1752 = vset.pattern.permute.xlu0 0
        %1753 = vperm.xlu0 %1752, %v1735
        %v1754 = vpop.permute.xlu0 %1753
        %v1760 = vunpack.c.l.b16 %v1711
        %v1761 = vunpack.c.l.b16 %v1712
        %v1762 = vunpack.c.l.b16 %v1713
        %v1763 = vunpack.c.l.b16 %v1714
        %v1764 = vpack.c.b16 %v1761, %v1760
        %v1765 = vpack.c.b16 %v1763, %v1762
        %v1767 = vsel %vm692, %v1764, 0
        %v1770 = vsel %vm692, %v1765, 0
        %v1773 = vsel %vm699, %v1729, 0
        %v1776 = vsel %vm699, %v1730, 0
        %1778 = vmatprep.subr.bf16.mxu0 %v1726
        %1779 = vmatpush1.bf16.msra.mxu0 %v1725
        %1780 = vmatprep.subr.bf16.mxu0 %v1728
        %1781 = vmatpush1.bf16.msra.mxu0 %v1727
        %1782 = vmatprep.subr.bf16.mxu0 %v1776
        %1783 = vmatpush1.bf16.msra.mxu0 %v1773
        %1784 = vmatprep.subr.bf16.mxu0 0
        %1785 = vmatpush1.bf16.msra.mxu0 0
        %1786 = vmatprep.subr.bf16.mxu0 0
        %1787 = vmatpush1.bf16.msra.mxu0 0
        %1788 = vmatprep.subr.bf16.mxu0 0
        %1789 = vmatpush1.bf16.msra.mxu0 0
        %1790 = vmatprep.subr.bf16.mxu0 0
        %1791 = vmatpush1.bf16.msra.mxu0 0
        %1792 = vmatprep.subr.bf16.mxu0 0
        %1793 = vmatpush1.bf16.msra.mxu0 0
        %1794 = vmatprep.subr.bf16.mxu0 0
        %1795 = vmatpush1.bf16.msra.mxu0 0
        %1796 = vmatprep.subr.bf16.mxu0 0
        %1797 = vmatpush1.bf16.msra.mxu0 0
        %1798 = vmatprep.subr.bf16.mxu0 0
        %1799 = vmatpush1.bf16.msra.mxu0 0
        %1800 = vmatprep.subr.bf16.mxu0 0
        %1801 = vmatpush1.bf16.msra.mxu0 0
        %1802 = vmatprep.subr.bf16.mxu0 0
        %1803 = vmatpush1.bf16.msra.mxu0 0
        %1804 = vmatprep.subr.bf16.mxu0 0
        %1805 = vmatpush1.bf16.msra.mxu0 0
        %1806 = vmatprep.subr.bf16.mxu0 0
        %1807 = vmatpush1.bf16.msra.mxu0 0
        %1808 = vmatprep.subr.bf16.mxu0 0
        %1809 = vmatpush1.bf16.msra.mxu0 0
        %1810 = vmatprep.mubr.bf16.mxu0 0
        %1811 = vmatmul.mubr.bf16.gmra.mrb[0].mxu0 %v1767
        %v1812 = vpop.f32.mrb[0].mxu0
        %v1813 = vadd.f32 %v1739, %v1812
        %v1814 = vpop.f32.mrb[0].mxu0
        %v1815 = vadd.f32 %v1739, %v1814
        %v1816 = vpop.f32.mrb[0].mxu0
        %v1817 = vadd.f32 %v1744, %v1816
        %v1818 = vpop.f32.mrb[0].mxu0
        %v1819 = vadd.f32 %v1744, %v1818
        %1820 = vmatprep.mubr.bf16.mxu0 0
        %1821 = vmatmul.mubr.bf16.gmra.mrb[0].mxu0 %v1770
        %v1822 = vpop.f32.mrb[0].mxu0
        %v1823 = vadd.f32 %v1749, %v1822
        %v1824 = vpop.f32.mrb[0].mxu0
        %v1825 = vadd.f32 %v1749, %v1824
        %v1826 = vpop.f32.mrb[0].mxu0
        %v1827 = vadd.f32 %v1754, %v1826
        %v1828 = vpop.f32.mrb[0].mxu0
        %v1829 = vadd.f32 %v1754, %v1828
        %1830 = vdwg.mxu0
        %v1831 = vxor.u32 %v1813, 2147483648
        %v1832 = vxor.u32 %v1815, 2147483648
        %v1833 = vxor.u32 %v1817, 2147483648
        %v1834 = vxor.u32 %v1819, 2147483648
        %v1835 = vxor.u32 %v1823, 2147483648
        %v1836 = vxor.u32 %v1825, 2147483648
        %v1837 = vxor.u32 %v1827, 2147483648
        %v1838 = vxor.u32 %v1829, 2147483648
        %v1839 = vmul.f32 %v1831, 1.442695
        %v1840 = vpow.pop %v1839
        %v1841 = vmul.f32 %v1832, 1.442695
        %v1842 = vpow.pop %v1841
        %v1843 = vmul.f32 %v1833, 1.442695
        %v1844 = vpow.pop %v1843
        %v1845 = vmul.f32 %v1834, 1.442695
        %v1846 = vpow.pop %v1845
        %v1847 = vmul.f32 %v1835, 1.442695
        %v1848 = vpow.pop %v1847
        %v1849 = vmul.f32 %v1836, 1.442695
        %v1850 = vpow.pop %v1849
        %v1851 = vmul.f32 %v1837, 1.442695
        %v1852 = vpow.pop %v1851
        %v1853 = vmul.f32 %v1838, 1.442695
        %v1854 = vpow.pop %v1853
        %v1855 = vadd.f32 %v1840, 1.0
        %v1856 = vadd.f32 %v1842, 1.0
        %v1857 = vadd.f32 %v1844, 1.0
        %v1858 = vadd.f32 %v1846, 1.0
        %v1859 = vadd.f32 %v1848, 1.0
        %v1860 = vadd.f32 %v1850, 1.0
        %v1861 = vadd.f32 %v1852, 1.0
        %v1862 = vadd.f32 %v1854, 1.0
        %v1863 = vrcp.pop %v1855
        %v1864 = vmul.f32 1.0, %v1863
        %v1865 = vrcp.pop %v1856
        %v1866 = vmul.f32 1.0, %v1865
        %v1867 = vrcp.pop %v1857
        %v1868 = vmul.f32 1.0, %v1867
        %v1869 = vrcp.pop %v1858
        %v1870 = vmul.f32 1.0, %v1869
        %v1871 = vrcp.pop %v1859
        %v1872 = vmul.f32 1.0, %v1871
        %v1873 = vrcp.pop %v1860
        %v1874 = vmul.f32 1.0, %v1873
        %v1875 = vrcp.pop %v1861
        %v1876 = vmul.f32 1.0, %v1875
        %v1877 = vrcp.pop %v1862
        %v1878 = vmul.f32 1.0, %v1877
        %v1879 = vmul.f32 %v1813, %v1864
        %v1880 = vmul.f32 %v1815, %v1866
        %v1881 = vmul.f32 %v1817, %v1868
        %v1882 = vmul.f32 %v1819, %v1870
        %v1883 = vmul.f32 %v1823, %v1872
        %v1884 = vmul.f32 %v1825, %v1874
        %v1885 = vmul.f32 %v1827, %v1876
        %v1886 = vmul.f32 %v1829, %v1878
        %1887 = vrot.lane.b32.xlu0 %v1879, 17
        %v1888 = vpop.permute.xlu0 %1887
        %1889 = vrot.lane.b32.xlu0 %v1881, 17
        %v1890 = vpop.permute.xlu0 %1889
        %1891 = vrot.lane.b32.xlu0 %v1883, 17
        %v1892 = vpop.permute.xlu0 %1891
        %1893 = vrot.lane.b32.xlu0 %v1885, 17
        %v1894 = vpop.permute.xlu0 %1893
        %1895 = vrot.lane.b32.xlu0 %v1880, 17
        %v1896 = vpop.permute.xlu0 %1895
        %1897 = vrot.lane.b32.xlu0 %v1882, 17
        %v1898 = vpop.permute.xlu0 %1897
        %1899 = vrot.lane.b32.xlu0 %v1884, 17
        %v1900 = vpop.permute.xlu0 %1899
        %1901 = vrot.lane.b32.xlu0 %v1886, 17
        %v1902 = vpop.permute.xlu0 %1901
        %v1903 = vsel %vm408, %v1888, %v1896
        %v1904 = vsel %vm408, %v1890, %v1898
        %v1905 = vsel %vm408, %v1892, %v1900
        %v1906 = vsel %vm408, %v1894, %v1902
        %v1907 = vsel %vm408, %v1896, %v1888
        %v1908 = vsel %vm408, %v1898, %v1890
        %v1909 = vsel %vm408, %v1900, %v1892
        %v1910 = vsel %vm408, %v1902, %v1894
        %v1911 = vld [vmem:[%s7] ss:$8 sm:$0x3]
        %v1913 = vlaneseq
        %v1914 = vshrl.u32 %v1913, 7
        %v1915 = vsub.s32 0, %v1914
        %v1916 = vrot.slane %v1911, %v1915
        %v1917 = vlaneseq
        %v1918 = vshrl.u32 %v1917, 7
        %v1919 = vsub.s32 1, %v1918
        %v1920 = vrot.slane %v1911, %v1919
        %v1923 = vmul.f32 %v1907, %v1916
        %v1924 = vmul.f32 %v1903, %v1920
        %v1925 = vmul.f32 %v1908, %v1916
        %v1926 = vmul.f32 %v1904, %v1920
        %v1927 = vmul.f32 %v1909, %v1916
        %v1928 = vmul.f32 %v1905, %v1920
        %v1929 = vmul.f32 %v1910, %v1916
        %v1930 = vmul.f32 %v1906, %v1920
        %1931 = vst [vmem:[#allocation3] sm:$0xff] %v1923
        %1932 = vst [vmem:[#allocation3 + $0x8] sm:$0xff] %v1924
        %1933 = vst [vmem:[#allocation3 + $0x10] sm:$0xff] %v1925
        %1934 = vst [vmem:[#allocation3 + $0x18] sm:$0xff] %v1926
        %1935 = vst [vmem:[#allocation3 + $0x20] sm:$0xff] %v1927
        %1936 = vst [vmem:[#allocation3 + $0x28] sm:$0xff] %v1928
        %1937 = vst [vmem:[#allocation3 + $0x30] sm:$0xff] %v1929
        %1938 = vst [vmem:[#allocation3 + $0x38] sm:$0xff] %v1930
        %1939 = vrot.lane.b32.xlu0 %v1879, 16
        %v1940 = vpop.permute.xlu0 %1939
        %1941 = vrot.lane.b32.xlu0 %v1881, 16
        %v1942 = vpop.permute.xlu0 %1941
        %1943 = vrot.lane.b32.xlu0 %v1883, 16
        %v1944 = vpop.permute.xlu0 %1943
        %1945 = vrot.lane.b32.xlu0 %v1885, 16
        %v1946 = vpop.permute.xlu0 %1945
        %1947 = vrot.lane.b32.xlu0 %v1880, 16
        %v1948 = vpop.permute.xlu0 %1947
        %1949 = vrot.lane.b32.xlu0 %v1882, 16
        %v1950 = vpop.permute.xlu0 %1949
        %1951 = vrot.lane.b32.xlu0 %v1884, 16
        %v1952 = vpop.permute.xlu0 %1951
        %1953 = vrot.lane.b32.xlu0 %v1886, 16
        %v1954 = vpop.permute.xlu0 %1953
        %v1955 = vsel %vm431, %v1940, %v1948
        %v1956 = vsel %vm431, %v1942, %v1950
        %v1957 = vsel %vm431, %v1944, %v1952
        %v1958 = vsel %vm431, %v1946, %v1954
        %v1959 = vsel %vm431, %v1948, %v1940
        %v1960 = vsel %vm431, %v1950, %v1942
        %v1961 = vsel %vm431, %v1952, %v1944
        %v1962 = vsel %vm431, %v1954, %v1946
        %v1963 = vld [vmem:[%s434] ss:$8 sm:$0x3]
        %v1965 = vlaneseq
        %v1966 = vshrl.u32 %v1965, 7
        %v1967 = vsub.s32 0, %v1966
        %v1968 = vrot.slane %v1963, %v1967
        %v1969 = vlaneseq
        %v1970 = vshrl.u32 %v1969, 7
        %v1971 = vsub.s32 1, %v1970
        %v1972 = vrot.slane %v1963, %v1971
        %v1975 = vmul.f32 %v1959, %v1968
        %v1976 = vmul.f32 %v1955, %v1972
        %v1977 = vmul.f32 %v1960, %v1968
        %v1978 = vmul.f32 %v1956, %v1972
        %v1979 = vmul.f32 %v1961, %v1968
        %v1980 = vmul.f32 %v1957, %v1972
        %v1981 = vmul.f32 %v1962, %v1968
        %v1982 = vmul.f32 %v1958, %v1972
        %1983 = vst [vmem:[#allocation3 + $0x40] sm:$0xff] %v1975
        %1984 = vst [vmem:[#allocation3 + $0x48] sm:$0xff] %v1976
        %1985 = vst [vmem:[#allocation3 + $0x50] sm:$0xff] %v1977
        %1986 = vst [vmem:[#allocation3 + $0x58] sm:$0xff] %v1978
        %1987 = vst [vmem:[#allocation3 + $0x60] sm:$0xff] %v1979
        %1988 = vst [vmem:[#allocation3 + $0x68] sm:$0xff] %v1980
        %1989 = vst [vmem:[#allocation3 + $0x70] sm:$0xff] %v1981
        %1990 = vst [vmem:[#allocation3 + $0x78] sm:$0xff] %v1982
        %1991 = vrot.lane.b32.xlu0 %v1879, 15
        %v1992 = vpop.permute.xlu0 %1991
        %1993 = vrot.lane.b32.xlu0 %v1881, 15
        %v1994 = vpop.permute.xlu0 %1993
        %1995 = vrot.lane.b32.xlu0 %v1883, 15
        %v1996 = vpop.permute.xlu0 %1995
        %1997 = vrot.lane.b32.xlu0 %v1885, 15
        %v1998 = vpop.permute.xlu0 %1997
        %1999 = vrot.lane.b32.xlu0 %v1880, 15
        %v2000 = vpop.permute.xlu0 %1999
        %2001 = vrot.lane.b32.xlu0 %v1882, 15
        %v2002 = vpop.permute.xlu0 %2001
        %2003 = vrot.lane.b32.xlu0 %v1884, 15
        %v2004 = vpop.permute.xlu0 %2003
        %2005 = vrot.lane.b32.xlu0 %v1886, 15
        %v2006 = vpop.permute.xlu0 %2005
        %v2007 = vsel %vm461, %v1992, %v2000
        %v2008 = vsel %vm461, %v1994, %v2002
        %v2009 = vsel %vm461, %v1996, %v2004
        %v2010 = vsel %vm461, %v1998, %v2006
        %v2011 = vsel %vm461, %v2000, %v1992
        %v2012 = vsel %vm461, %v2002, %v1994
        %v2013 = vsel %vm461, %v2004, %v1996
        %v2014 = vsel %vm461, %v2006, %v1998
        %v2015 = vld [vmem:[%s464] ss:$8 sm:$0x3]
        %v2017 = vlaneseq
        %v2018 = vshrl.u32 %v2017, 7
        %v2019 = vsub.s32 0, %v2018
        %v2020 = vrot.slane %v2015, %v2019
        %v2021 = vlaneseq
        %v2022 = vshrl.u32 %v2021, 7
        %v2023 = vsub.s32 1, %v2022
        %v2024 = vrot.slane %v2015, %v2023
        %v2027 = vmul.f32 %v2011, %v2020
        %v2028 = vmul.f32 %v2007, %v2024
        %v2029 = vmul.f32 %v2012, %v2020
        %v2030 = vmul.f32 %v2008, %v2024
        %v2031 = vmul.f32 %v2013, %v2020
        %v2032 = vmul.f32 %v2009, %v2024
        %v2033 = vmul.f32 %v2014, %v2020
        %v2034 = vmul.f32 %v2010, %v2024
        %2035 = vst [vmem:[#allocation3 + $0x80] sm:$0xff] %v2027
        %2036 = vst [vmem:[#allocation3 + $0x88] sm:$0xff] %v2028
        %2037 = vst [vmem:[#allocation3 + $0x90] sm:$0xff] %v2029
        %2038 = vst [vmem:[#allocation3 + $0x98] sm:$0xff] %v2030
        %2039 = vst [vmem:[#allocation3 + $0xa0] sm:$0xff] %v2031
        %2040 = vst [vmem:[#allocation3 + $0xa8] sm:$0xff] %v2032
        %2041 = vst [vmem:[#allocation3 + $0xb0] sm:$0xff] %v2033
        %2042 = vst [vmem:[#allocation3 + $0xb8] sm:$0xff] %v2034
        %2043 = vrot.lane.b32.xlu0 %v1879, 1
        %v2044 = vpop.permute.xlu0 %2043
        %2045 = vrot.lane.b32.xlu0 %v1881, 1
        %v2046 = vpop.permute.xlu0 %2045
        %2047 = vrot.lane.b32.xlu0 %v1883, 1
        %v2048 = vpop.permute.xlu0 %2047
        %2049 = vrot.lane.b32.xlu0 %v1885, 1
        %v2050 = vpop.permute.xlu0 %2049
        %2051 = vrot.lane.b32.xlu0 %v1880, 1
        %v2052 = vpop.permute.xlu0 %2051
        %2053 = vrot.lane.b32.xlu0 %v1882, 1
        %v2054 = vpop.permute.xlu0 %2053
        %2055 = vrot.lane.b32.xlu0 %v1884, 1
        %v2056 = vpop.permute.xlu0 %2055
        %2057 = vrot.lane.b32.xlu0 %v1886, 1
        %v2058 = vpop.permute.xlu0 %2057
        %v2059 = vsel %vm485, %v2044, %v2052
        %v2060 = vsel %vm485, %v2046, %v2054
        %v2061 = vsel %vm485, %v2048, %v2056
        %v2062 = vsel %vm485, %v2050, %v2058
        %v2063 = vsel %vm485, %v2052, %v2044
        %v2064 = vsel %vm485, %v2054, %v2046
        %v2065 = vsel %vm485, %v2056, %v2048
        %v2066 = vsel %vm485, %v2058, %v2050
        %v2067 = vld [vmem:[%s488] ss:$8 sm:$0x3]
        %v2069 = vlaneseq
        %v2070 = vshrl.u32 %v2069, 7
        %v2071 = vsub.s32 0, %v2070
        %v2072 = vrot.slane %v2067, %v2071
        %v2073 = vlaneseq
        %v2074 = vshrl.u32 %v2073, 7
        %v2075 = vsub.s32 1, %v2074
        %v2076 = vrot.slane %v2067, %v2075
        %v2079 = vmul.f32 %v2063, %v2072
        %v2080 = vmul.f32 %v2059, %v2076
        %v2081 = vmul.f32 %v2064, %v2072
        %v2082 = vmul.f32 %v2060, %v2076
        %v2083 = vmul.f32 %v2065, %v2072
        %v2084 = vmul.f32 %v2061, %v2076
        %v2085 = vmul.f32 %v2066, %v2072
        %v2086 = vmul.f32 %v2062, %v2076
        %2087 = vst [vmem:[#allocation3 + $0xc0] sm:$0xff] %v2079
        %2088 = vst [vmem:[#allocation3 + $0xc8] sm:$0xff] %v2080
        %2089 = vst [vmem:[#allocation3 + $0xd0] sm:$0xff] %v2081
        %2090 = vst [vmem:[#allocation3 + $0xd8] sm:$0xff] %v2082
        %2091 = vst [vmem:[#allocation3 + $0xe0] sm:$0xff] %v2083
        %2092 = vst [vmem:[#allocation3 + $0xe8] sm:$0xff] %v2084
        %2093 = vst [vmem:[#allocation3 + $0xf0] sm:$0xff] %v2085
        %2094 = vst [vmem:[#allocation3 + $0xf8] sm:$0xff] %v2086
        %v2095 = vld [vmem:[%s511] ss:$8 sm:$0x3]
        %v2097 = vlaneseq
        %v2098 = vshrl.u32 %v2097, 7
        %v2099 = vsub.s32 0, %v2098
        %v2100 = vrot.slane %v2095, %v2099
        %v2101 = vlaneseq
        %v2102 = vshrl.u32 %v2101, 7
        %v2103 = vsub.s32 1, %v2102
        %v2104 = vrot.slane %v2095, %v2103
        %v2107 = vmul.f32 %v1879, %v2100
        %v2108 = vmul.f32 %v1880, %v2104
        %v2109 = vmul.f32 %v1881, %v2100
        %v2110 = vmul.f32 %v1882, %v2104
        %v2111 = vmul.f32 %v1883, %v2100
        %v2112 = vmul.f32 %v1884, %v2104
        %v2113 = vmul.f32 %v1885, %v2100
        %v2114 = vmul.f32 %v1886, %v2104
        %2115 = vst [vmem:[#allocation3 + $0x100] sm:$0xff] %v2107
        %2116 = vst [vmem:[#allocation3 + $0x108] sm:$0xff] %v2108
        %2117 = vst [vmem:[#allocation3 + $0x110] sm:$0xff] %v2109
        %2118 = vst [vmem:[#allocation3 + $0x118] sm:$0xff] %v2110
        %2119 = vst [vmem:[#allocation3 + $0x120] sm:$0xff] %v2111
        %2120 = vst [vmem:[#allocation3 + $0x128] sm:$0xff] %v2112
        %2121 = vst [vmem:[#allocation3 + $0x130] sm:$0xff] %v2113
        %2122 = vst [vmem:[#allocation3 + $0x138] sm:$0xff] %v2114
        %2123 = vrot.lane.b32.xlu0 %v1879, 127
        %v2124 = vpop.permute.xlu0 %2123
        %2125 = vrot.lane.b32.xlu0 %v1881, 127
        %v2126 = vpop.permute.xlu0 %2125
        %2127 = vrot.lane.b32.xlu0 %v1883, 127
        %v2128 = vpop.permute.xlu0 %2127
        %2129 = vrot.lane.b32.xlu0 %v1885, 127
        %v2130 = vpop.permute.xlu0 %2129
        %2131 = vrot.lane.b32.xlu0 %v1880, 127
        %v2132 = vpop.permute.xlu0 %2131
        %2133 = vrot.lane.b32.xlu0 %v1882, 127
        %v2134 = vpop.permute.xlu0 %2133
        %2135 = vrot.lane.b32.xlu0 %v1884, 127
        %v2136 = vpop.permute.xlu0 %2135
        %2137 = vrot.lane.b32.xlu0 %v1886, 127
        %v2138 = vpop.permute.xlu0 %2137
        %v2139 = vsel %vm534, %v2124, %v2132
        %v2140 = vsel %vm534, %v2126, %v2134
        %v2141 = vsel %vm534, %v2128, %v2136
        %v2142 = vsel %vm534, %v2130, %v2138
        %v2143 = vsel %vm534, %v2132, %v2124
        %v2144 = vsel %vm534, %v2134, %v2126
        %v2145 = vsel %vm534, %v2136, %v2128
        %v2146 = vsel %vm534, %v2138, %v2130
        %v2147 = vld [vmem:[%s537] ss:$8 sm:$0x3]
        %v2149 = vlaneseq
        %v2150 = vshrl.u32 %v2149, 7
        %v2151 = vsub.s32 0, %v2150
        %v2152 = vrot.slane %v2147, %v2151
        %v2153 = vlaneseq
        %v2154 = vshrl.u32 %v2153, 7
        %v2155 = vsub.s32 1, %v2154
        %v2156 = vrot.slane %v2147, %v2155
        %v2159 = vmul.f32 %v2139, %v2152
        %v2160 = vmul.f32 %v2143, %v2156
        %v2161 = vmul.f32 %v2140, %v2152
        %v2162 = vmul.f32 %v2144, %v2156
        %v2163 = vmul.f32 %v2141, %v2152
        %v2164 = vmul.f32 %v2145, %v2156
        %v2165 = vmul.f32 %v2142, %v2152
        %v2166 = vmul.f32 %v2146, %v2156
        %2167 = vst [vmem:[#allocation3 + $0x140] sm:$0xff] %v2159
        %2168 = vst [vmem:[#allocation3 + $0x148] sm:$0xff] %v2160
        %2169 = vst [vmem:[#allocation3 + $0x150] sm:$0xff] %v2161
        %2170 = vst [vmem:[#allocation3 + $0x158] sm:$0xff] %v2162
        %2171 = vst [vmem:[#allocation3 + $0x160] sm:$0xff] %v2163
        %2172 = vst [vmem:[#allocation3 + $0x168] sm:$0xff] %v2164
        %2173 = vst [vmem:[#allocation3 + $0x170] sm:$0xff] %v2165
        %2174 = vst [vmem:[#allocation3 + $0x178] sm:$0xff] %v2166
        %2175 = vrot.lane.b32.xlu0 %v1879, 113
        %v2176 = vpop.permute.xlu0 %2175
        %2177 = vrot.lane.b32.xlu0 %v1881, 113
        %v2178 = vpop.permute.xlu0 %2177
        %2179 = vrot.lane.b32.xlu0 %v1883, 113
        %v2180 = vpop.permute.xlu0 %2179
        %2181 = vrot.lane.b32.xlu0 %v1885, 113
        %v2182 = vpop.permute.xlu0 %2181
        %2183 = vrot.lane.b32.xlu0 %v1880, 113
        %v2184 = vpop.permute.xlu0 %2183
        %2185 = vrot.lane.b32.xlu0 %v1882, 113
        %v2186 = vpop.permute.xlu0 %2185
        %2187 = vrot.lane.b32.xlu0 %v1884, 113
        %v2188 = vpop.permute.xlu0 %2187
        %2189 = vrot.lane.b32.xlu0 %v1886, 113
        %v2190 = vpop.permute.xlu0 %2189
        %v2191 = vsel %vm564, %v2176, %v2184
        %v2192 = vsel %vm564, %v2178, %v2186
        %v2193 = vsel %vm564, %v2180, %v2188
        %v2194 = vsel %vm564, %v2182, %v2190
        %v2195 = vsel %vm564, %v2184, %v2176
        %v2196 = vsel %vm564, %v2186, %v2178
        %v2197 = vsel %vm564, %v2188, %v2180
        %v2198 = vsel %vm564, %v2190, %v2182
        %v2199 = vld [vmem:[%s567] ss:$8 sm:$0x3]
        %v2201 = vlaneseq
        %v2202 = vshrl.u32 %v2201, 7
        %v2203 = vsub.s32 0, %v2202
        %v2204 = vrot.slane %v2199, %v2203
        %v2205 = vlaneseq
        %v2206 = vshrl.u32 %v2205, 7
        %v2207 = vsub.s32 1, %v2206
        %v2208 = vrot.slane %v2199, %v2207
        %v2211 = vmul.f32 %v2191, %v2204
        %v2212 = vmul.f32 %v2195, %v2208
        %v2213 = vmul.f32 %v2192, %v2204
        %v2214 = vmul.f32 %v2196, %v2208
        %v2215 = vmul.f32 %v2193, %v2204
        %v2216 = vmul.f32 %v2197, %v2208
        %v2217 = vmul.f32 %v2194, %v2204
        %v2218 = vmul.f32 %v2198, %v2208
        %2219 = vst [vmem:[#allocation3 + $0x180] sm:$0xff] %v2211
        %2220 = vst [vmem:[#allocation3 + $0x188] sm:$0xff] %v2212
        %2221 = vst [vmem:[#allocation3 + $0x190] sm:$0xff] %v2213
        %2222 = vst [vmem:[#allocation3 + $0x198] sm:$0xff] %v2214
        %2223 = vst [vmem:[#allocation3 + $0x1a0] sm:$0xff] %v2215
        %2224 = vst [vmem:[#allocation3 + $0x1a8] sm:$0xff] %v2216
        %2225 = vst [vmem:[#allocation3 + $0x1b0] sm:$0xff] %v2217
        %2226 = vst [vmem:[#allocation3 + $0x1b8] sm:$0xff] %v2218
        %2227 = vrot.lane.b32.xlu0 %v1879, 112
        %v2228 = vpop.permute.xlu0 %2227
        %2229 = vrot.lane.b32.xlu0 %v1881, 112
        %v2230 = vpop.permute.xlu0 %2229
        %2231 = vrot.lane.b32.xlu0 %v1883, 112
        %v2232 = vpop.permute.xlu0 %2231
        %2233 = vrot.lane.b32.xlu0 %v1885, 112
        %v2234 = vpop.permute.xlu0 %2233
        %2235 = vrot.lane.b32.xlu0 %v1880, 112
        %v2236 = vpop.permute.xlu0 %2235
        %2237 = vrot.lane.b32.xlu0 %v1882, 112
        %v2238 = vpop.permute.xlu0 %2237
        %2239 = vrot.lane.b32.xlu0 %v1884, 112
        %v2240 = vpop.permute.xlu0 %2239
        %2241 = vrot.lane.b32.xlu0 %v1886, 112
        %v2242 = vpop.permute.xlu0 %2241
        %v2243 = vsel %vm588, %v2228, %v2236
        %v2244 = vsel %vm588, %v2230, %v2238
        %v2245 = vsel %vm588, %v2232, %v2240
        %v2246 = vsel %vm588, %v2234, %v2242
        %v2247 = vsel %vm588, %v2236, %v2228
        %v2248 = vsel %vm588, %v2238, %v2230
        %v2249 = vsel %vm588, %v2240, %v2232
        %v2250 = vsel %vm588, %v2242, %v2234
        %v2251 = vld [vmem:[%s591] ss:$8 sm:$0x3]
        %v2253 = vlaneseq
        %v2254 = vshrl.u32 %v2253, 7
        %v2255 = vsub.s32 0, %v2254
        %v2256 = vrot.slane %v2251, %v2255
        %v2257 = vlaneseq
        %v2258 = vshrl.u32 %v2257, 7
        %v2259 = vsub.s32 1, %v2258
        %v2260 = vrot.slane %v2251, %v2259
        %v2263 = vmul.f32 %v2243, %v2256
        %v2264 = vmul.f32 %v2247, %v2260
        %v2265 = vmul.f32 %v2244, %v2256
        %v2266 = vmul.f32 %v2248, %v2260
        %v2267 = vmul.f32 %v2245, %v2256
        %v2268 = vmul.f32 %v2249, %v2260
        %v2269 = vmul.f32 %v2246, %v2256
        %v2270 = vmul.f32 %v2250, %v2260
        %2271 = vst [vmem:[#allocation3 + $0x1c0] sm:$0xff] %v2263
        %2272 = vst [vmem:[#allocation3 + $0x1c8] sm:$0xff] %v2264
        %2273 = vst [vmem:[#allocation3 + $0x1d0] sm:$0xff] %v2265
        %2274 = vst [vmem:[#allocation3 + $0x1d8] sm:$0xff] %v2266
        %2275 = vst [vmem:[#allocation3 + $0x1e0] sm:$0xff] %v2267
        %2276 = vst [vmem:[#allocation3 + $0x1e8] sm:$0xff] %v2268
        %2277 = vst [vmem:[#allocation3 + $0x1f0] sm:$0xff] %v2269
        %2278 = vst [vmem:[#allocation3 + $0x1f8] sm:$0xff] %v2270
        %2279 = vrot.lane.b32.xlu0 %v1879, 111
        %v2280 = vpop.permute.xlu0 %2279
        %2281 = vrot.lane.b32.xlu0 %v1881, 111
        %v2282 = vpop.permute.xlu0 %2281
        %2283 = vrot.lane.b32.xlu0 %v1883, 111
        %v2284 = vpop.permute.xlu0 %2283
        %2285 = vrot.lane.b32.xlu0 %v1885, 111
        %v2286 = vpop.permute.xlu0 %2285
        %2287 = vrot.lane.b32.xlu0 %v1880, 111
        %v2288 = vpop.permute.xlu0 %2287
        %2289 = vrot.lane.b32.xlu0 %v1882, 111
        %v2290 = vpop.permute.xlu0 %2289
        %2291 = vrot.lane.b32.xlu0 %v1884, 111
        %v2292 = vpop.permute.xlu0 %2291
        %2293 = vrot.lane.b32.xlu0 %v1886, 111
        %v2294 = vpop.permute.xlu0 %2293
        %v2295 = vsel %vm618, %v2280, %v2288
        %v2296 = vsel %vm618, %v2282, %v2290
        %v2297 = vsel %vm618, %v2284, %v2292
        %v2298 = vsel %vm618, %v2286, %v2294
        %v2299 = vsel %vm618, %v2288, %v2280
        %v2300 = vsel %vm618, %v2290, %v2282
        %v2301 = vsel %vm618, %v2292, %v2284
        %v2302 = vsel %vm618, %v2294, %v2286
        %v2303 = vld [vmem:[%s621] ss:$8 sm:$0x3]
        %v2305 = vlaneseq
        %v2306 = vshrl.u32 %v2305, 7
        %v2307 = vsub.s32 0, %v2306
        %v2308 = vrot.slane %v2303, %v2307
        %v2309 = vlaneseq
        %v2310 = vshrl.u32 %v2309, 7
        %v2311 = vsub.s32 1, %v2310
        %v2312 = vrot.slane %v2303, %v2311
        %v2315 = vmul.f32 %v2295, %v2308
        %v2316 = vmul.f32 %v2299, %v2312
        %v2317 = vmul.f32 %v2296, %v2308
        %v2318 = vmul.f32 %v2300, %v2312
        %v2319 = vmul.f32 %v2297, %v2308
        %v2320 = vmul.f32 %v2301, %v2312
        %v2321 = vmul.f32 %v2298, %v2308
        %v2322 = vmul.f32 %v2302, %v2312
        %2323 = vst [vmem:[#allocation3 + $0x200] sm:$0xff] %v2315
        %2324 = vst [vmem:[#allocation3 + $0x208] sm:$0xff] %v2316
        %2325 = vst [vmem:[#allocation3 + $0x210] sm:$0xff] %v2317
        %2326 = vst [vmem:[#allocation3 + $0x218] sm:$0xff] %v2318
        %2327 = vst [vmem:[#allocation3 + $0x220] sm:$0xff] %v2319
        %2328 = vst [vmem:[#allocation3 + $0x228] sm:$0xff] %v2320
        %2329 = vst [vmem:[#allocation3 + $0x230] sm:$0xff] %v2321
        %2330 = vst [vmem:[#allocation3 + $0x238] sm:$0xff] %v2322
        %v2331 = vld [vmem:[%s5] sm:$0x3f]
        %v2332 = vld [vmem:[#allocation3] sm:$0xff]
        %v2333 = vld [vmem:[#allocation3 + $0x8] sm:$0xff]
        %v2334 = vld [vmem:[#allocation3 + $0x10] sm:$0xff]
        %v2335 = vld [vmem:[#allocation3 + $0x18] sm:$0xff]
        %v2336 = vld [vmem:[#allocation3 + $0x20] sm:$0xff]
        %v2337 = vld [vmem:[#allocation3 + $0x28] sm:$0xff]
        %v2338 = vld [vmem:[#allocation3 + $0x30] sm:$0xff]
        %v2339 = vld [vmem:[#allocation3 + $0x38] sm:$0xff]
        %v2340 = vld [vmem:[#allocation3 + $0x40] sm:$0xff]
        %v2341 = vld [vmem:[#allocation3 + $0x48] sm:$0xff]
        %v2342 = vld [vmem:[#allocation3 + $0x50] sm:$0xff]
        %v2343 = vld [vmem:[#allocation3 + $0x58] sm:$0xff]
        %v2344 = vld [vmem:[#allocation3 + $0x60] sm:$0xff]
        %v2345 = vld [vmem:[#allocation3 + $0x68] sm:$0xff]
        %v2346 = vld [vmem:[#allocation3 + $0x70] sm:$0xff]
        %v2347 = vld [vmem:[#allocation3 + $0x78] sm:$0xff]
        %v2348 = vld [vmem:[#allocation3 + $0x80] sm:$0xff]
        %v2349 = vld [vmem:[#allocation3 + $0x88] sm:$0xff]
        %v2350 = vld [vmem:[#allocation3 + $0x90] sm:$0xff]
        %v2351 = vld [vmem:[#allocation3 + $0x98] sm:$0xff]
        %v2352 = vld [vmem:[#allocation3 + $0xa0] sm:$0xff]
        %v2353 = vld [vmem:[#allocation3 + $0xa8] sm:$0xff]
        %v2354 = vld [vmem:[#allocation3 + $0xb0] sm:$0xff]
        %v2355 = vld [vmem:[#allocation3 + $0xb8] sm:$0xff]
        %v2356 = vld [vmem:[#allocation3 + $0xc0] sm:$0xff]
        %v2357 = vld [vmem:[#allocation3 + $0xc8] sm:$0xff]
        %v2358 = vld [vmem:[#allocation3 + $0xd0] sm:$0xff]
        %v2359 = vld [vmem:[#allocation3 + $0xd8] sm:$0xff]
        %v2360 = vld [vmem:[#allocation3 + $0xe0] sm:$0xff]
        %v2361 = vld [vmem:[#allocation3 + $0xe8] sm:$0xff]
        %v2362 = vld [vmem:[#allocation3 + $0xf0] sm:$0xff]
        %v2363 = vld [vmem:[#allocation3 + $0xf8] sm:$0xff]
        %v2364 = vld [vmem:[#allocation3 + $0x100] sm:$0xff]
        %v2365 = vld [vmem:[#allocation3 + $0x108] sm:$0xff]
        %v2366 = vld [vmem:[#allocation3 + $0x110] sm:$0xff]
        %v2367 = vld [vmem:[#allocation3 + $0x118] sm:$0xff]
        %v2368 = vld [vmem:[#allocation3 + $0x120] sm:$0xff]
        %v2369 = vld [vmem:[#allocation3 + $0x128] sm:$0xff]
        %v2370 = vld [vmem:[#allocation3 + $0x130] sm:$0xff]
        %v2371 = vld [vmem:[#allocation3 + $0x138] sm:$0xff]
        %v2372 = vld [vmem:[#allocation3 + $0x140] sm:$0xff]
        %v2373 = vld [vmem:[#allocation3 + $0x148] sm:$0xff]
        %v2374 = vld [vmem:[#allocation3 + $0x150] sm:$0xff]
        %v2375 = vld [vmem:[#allocation3 + $0x158] sm:$0xff]
        %v2376 = vld [vmem:[#allocation3 + $0x160] sm:$0xff]
        %v2377 = vld [vmem:[#allocation3 + $0x168] sm:$0xff]
        %v2378 = vld [vmem:[#allocation3 + $0x170] sm:$0xff]
        %v2379 = vld [vmem:[#allocation3 + $0x178] sm:$0xff]
        %v2380 = vld [vmem:[#allocation3 + $0x180] sm:$0xff]
        %v2381 = vld [vmem:[#allocation3 + $0x188] sm:$0xff]
        %v2382 = vld [vmem:[#allocation3 + $0x190] sm:$0xff]
        %v2383 = vld [vmem:[#allocation3 + $0x198] sm:$0xff]
        %v2384 = vld [vmem:[#allocation3 + $0x1a0] sm:$0xff]
        %v2385 = vld [vmem:[#allocation3 + $0x1a8] sm:$0xff]
        %v2386 = vld [vmem:[#allocation3 + $0x1b0] sm:$0xff]
        %v2387 = vld [vmem:[#allocation3 + $0x1b8] sm:$0xff]
        %v2388 = vld [vmem:[#allocation3 + $0x1c0] sm:$0xff]
        %v2389 = vld [vmem:[#allocation3 + $0x1c8] sm:$0xff]
        %v2390 = vld [vmem:[#allocation3 + $0x1d0] sm:$0xff]
        %v2391 = vld [vmem:[#allocation3 + $0x1d8] sm:$0xff]
        %v2392 = vld [vmem:[#allocation3 + $0x1e0] sm:$0xff]
        %v2393 = vld [vmem:[#allocation3 + $0x1e8] sm:$0xff]
        %v2394 = vld [vmem:[#allocation3 + $0x1f0] sm:$0xff]
        %v2395 = vld [vmem:[#allocation3 + $0x1f8] sm:$0xff]
        %v2396 = vld [vmem:[#allocation3 + $0x200] sm:$0xff]
        %v2397 = vld [vmem:[#allocation3 + $0x208] sm:$0xff]
        %v2398 = vld [vmem:[#allocation3 + $0x210] sm:$0xff]
        %v2399 = vld [vmem:[#allocation3 + $0x218] sm:$0xff]
        %v2400 = vld [vmem:[#allocation3 + $0x220] sm:$0xff]
        %v2401 = vld [vmem:[#allocation3 + $0x228] sm:$0xff]
        %v2402 = vld [vmem:[#allocation3 + $0x230] sm:$0xff]
        %v2403 = vld [vmem:[#allocation3 + $0x238] sm:$0xff]
        %v2404 = vpack.c.bf16 %v2334, %v2332
        %v2405 = vpack.c.bf16 %v2335, %v2333
        %v2406 = vpack.c.bf16 %v2338, %v2336
        %v2407 = vpack.c.bf16 %v2339, %v2337
        %v2408 = vpack.c.bf16 %v2342, %v2340
        %v2409 = vpack.c.bf16 %v2343, %v2341
        %v2410 = vpack.c.bf16 %v2346, %v2344
        %v2411 = vpack.c.bf16 %v2347, %v2345
        %v2412 = vpack.c.bf16 %v2350, %v2348
        %v2413 = vpack.c.bf16 %v2351, %v2349
        %v2414 = vpack.c.bf16 %v2354, %v2352
        %v2415 = vpack.c.bf16 %v2355, %v2353
        %v2416 = vpack.c.bf16 %v2358, %v2356
        %v2417 = vpack.c.bf16 %v2359, %v2357
        %v2418 = vpack.c.bf16 %v2362, %v2360
        %v2419 = vpack.c.bf16 %v2363, %v2361
        %v2420 = vpack.c.bf16 %v2366, %v2364
        %v2421 = vpack.c.bf16 %v2367, %v2365
        %v2422 = vpack.c.bf16 %v2370, %v2368
        %v2423 = vpack.c.bf16 %v2371, %v2369
        %v2424 = vpack.c.bf16 %v2374, %v2372
        %v2425 = vpack.c.bf16 %v2375, %v2373
        %v2426 = vpack.c.bf16 %v2378, %v2376
        %v2427 = vpack.c.bf16 %v2379, %v2377
        %v2428 = vpack.c.bf16 %v2382, %v2380
        %v2429 = vpack.c.bf16 %v2383, %v2381
        %v2430 = vpack.c.bf16 %v2386, %v2384
        %v2431 = vpack.c.bf16 %v2387, %v2385
        %v2432 = vpack.c.bf16 %v2390, %v2388
        %v2433 = vpack.c.bf16 %v2391, %v2389
        %v2434 = vpack.c.bf16 %v2394, %v2392
        %v2435 = vpack.c.bf16 %v2395, %v2393
        %v2436 = vpack.c.bf16 %v2398, %v2396
        %v2437 = vpack.c.bf16 %v2399, %v2397
        %v2438 = vpack.c.bf16 %v2402, %v2400
        %v2439 = vpack.c.bf16 %v2403, %v2401
        %v2440 = vld [vmem:[%s6] sm:$0xf]
        %2442 = vset.pattern.permute.xlu0 0
        %2443 = vperm.xlu0 %2442, %v2440
        %v2444 = vpop.permute.xlu0 %2443
        %v2447 = vcombine.high %v2331, %v2331
        %v2449 = vunpack.c.l.s4 1983009808
        %v2450 = vunpack.c.0.s8 %v2449
        %v2451 = vlaneseq
        %v2452 = vshrl.u32 %v2451, 7
        %v2453 = vsub.s32 %v2450, %v2452
        %v2454 = vrot.slane %v2331, %v2453
        %v2456 = vunpack.c.l.s4 1983009808
        %v2457 = vunpack.c.0.s8 %v2456
        %v2458 = vlaneseq
        %v2459 = vshrl.u32 %v2458, 7
        %v2460 = vsub.s32 %v2457, %v2459
        %v2461 = vrot.slane %v2447, %v2460
        %v2462 = vcombine.high %v2454, %v2454
        %v2466 = vsel %vm1393, %v2461, 0
        %2468 = vmatprep.subr.bf16.mxu0 %v2405
        %2469 = vmatpush1.bf16.msra.mxu0 %v2404
        %2470 = vmatprep.subr.bf16.mxu0 %v2407
        %2471 = vmatpush1.bf16.msra.mxu0 %v2406
        %2472 = vmatprep.subr.bf16.mxu0 %v2409
        %2473 = vmatpush1.bf16.msra.mxu0 %v2408
        %2474 = vmatprep.subr.bf16.mxu0 %v2411
        %2475 = vmatpush1.bf16.msra.mxu0 %v2410
        %2476 = vmatprep.subr.bf16.mxu0 %v2413
        %2477 = vmatpush1.bf16.msra.mxu0 %v2412
        %2478 = vmatprep.subr.bf16.mxu0 %v2415
        %2479 = vmatpush1.bf16.msra.mxu0 %v2414
        %2480 = vmatprep.subr.bf16.mxu0 %v2417
        %2481 = vmatpush1.bf16.msra.mxu0 %v2416
        %2482 = vmatprep.subr.bf16.mxu0 %v2419
        %2483 = vmatpush1.bf16.msra.mxu0 %v2418
        %2484 = vmatprep.subr.bf16.mxu0 %v2421
        %2485 = vmatpush1.bf16.msra.mxu0 %v2420
        %2486 = vmatprep.subr.bf16.mxu0 %v2423
        %2487 = vmatpush1.bf16.msra.mxu0 %v2422
        %2488 = vmatprep.subr.bf16.mxu0 %v2425
        %2489 = vmatpush1.bf16.msra.mxu0 %v2424
        %2490 = vmatprep.subr.bf16.mxu0 %v2427
        %2491 = vmatpush1.bf16.msra.mxu0 %v2426
        %2492 = vmatprep.subr.bf16.mxu0 %v2429
        %2493 = vmatpush1.bf16.msra.mxu0 %v2428
        %2494 = vmatprep.subr.bf16.mxu0 %v2431
        %2495 = vmatpush1.bf16.msra.mxu0 %v2430
        %2496 = vmatprep.subr.bf16.mxu0 %v2433
        %2497 = vmatpush1.bf16.msra.mxu0 %v2432
        %2498 = vmatprep.subr.bf16.mxu0 %v2435
        %2499 = vmatpush1.bf16.msra.mxu0 %v2434
        %2500 = vmatprep.mubr.bf16.mxu0 %v2462
        %2501 = vmatmul.mubr.bf16.gmra.mrb[0].mxu0 %v2454
        %v2502 = vpop.f32.mrb[0].mxu0
        %v2503 = vadd.f32 %v2444, %v2502
        %v2504 = vpop.f32.mrb[0].mxu0
        %v2505 = vadd.f32 %v2444, %v2504
        %v2506 = vpop.f32.mrb[0].mxu0
        %v2507 = vpop.f32.mrb[0].mxu0
        %2508 = vdwg.mxu0
        %2509 = vmatprep.subr.bf16.mxu0 %v2437
        %2510 = vmatpush1.bf16.msra.mxu0 %v2436
        %2511 = vmatprep.subr.bf16.mxu0 %v2439
        %2512 = vmatpush1.bf16.msra.mxu0 %v2438
        %2513 = vmatprep.subr.bf16.mxu0 0
        %2514 = vmatpush1.bf16.msra.mxu0 0
        %2515 = vmatprep.subr.bf16.mxu0 0
        %2516 = vmatpush1.bf16.msra.mxu0 0
        %2517 = vmatprep.subr.bf16.mxu0 0
        %2518 = vmatpush1.bf16.msra.mxu0 0
        %2519 = vmatprep.subr.bf16.mxu0 0
        %2520 = vmatpush1.bf16.msra.mxu0 0
        %2521 = vmatprep.subr.bf16.mxu0 0
        %2522 = vmatpush1.bf16.msra.mxu0 0
        %2523 = vmatprep.subr.bf16.mxu0 0
        %2524 = vmatpush1.bf16.msra.mxu0 0
        %2525 = vmatprep.subr.bf16.mxu0 0
        %2526 = vmatpush1.bf16.msra.mxu0 0
        %2527 = vmatprep.subr.bf16.mxu0 0
        %2528 = vmatpush1.bf16.msra.mxu0 0
        %2529 = vmatprep.subr.bf16.mxu0 0
        %2530 = vmatpush1.bf16.msra.mxu0 0
        %2531 = vmatprep.subr.bf16.mxu0 0
        %2532 = vmatpush1.bf16.msra.mxu0 0
        %2533 = vmatprep.subr.bf16.mxu0 0
        %2534 = vmatpush1.bf16.msra.mxu0 0
        %2535 = vmatprep.subr.bf16.mxu0 0
        %2536 = vmatpush1.bf16.msra.mxu0 0
        %2537 = vmatprep.subr.bf16.mxu0 0
        %2538 = vmatpush1.bf16.msra.mxu0 0
        %2539 = vmatprep.subr.bf16.mxu0 0
        %2540 = vmatpush1.bf16.msra.mxu0 0
        %2541 = vmatprep.mubr.bf16.mxu0 0
        %2542 = vmatmul.mubr.bf16.gmra.mrb[0].mxu0 %v2466
        %v2543 = vpop.f32.mrb[0].mxu0
        %v2544 = vadd.f32 %v2503, %v2543
        %v2545 = vpop.f32.mrb[0].mxu0
        %v2546 = vadd.f32 %v2505, %v2545
        %v2547 = vpop.f32.mrb[0].mxu0
        %v2548 = vpop.f32.mrb[0].mxu0
        %2549 = vdwg.mxu0
        %v2550 = vmul.f32 %v2544, 0.037424017
        %v2551 = vmul.f32 %v2546, 0.037424017
        %v2554 = vcombine.low %v2550, %v2551
        %v2556 = vsub.f32 %v1489, %v2554
        %v2557 = vmul.f32 %v2556, 1.0010992
        %s2558 = scalar_lea.vmem %s340, 8 [#allocation4]
        %v2559 = vld [vmem:[%s2558] sm:$0xff]
        %v2560 = vmul.f32 %v2559, 0.028212175
        %v2561 = vadd.f32 %v2557, %v2560
        %v2563 = vcombine.high %v2561, %v2561
        %2565 = vrot.lane.b32.xlu0 %v2561, 17
        %v2566 = vpop.permute.xlu0 %2565
        %2567 = vrot.lane.b32.xlu0 %v2563, 17
        %v2568 = vpop.permute.xlu0 %2567
        %v2569 = vsel %vm408, %v2566, %v2568
        %v2570 = vsel %vm408, %v2568, %v2566
        %v2571 = vld [vmem:[%s7] ss:$8 sm:$0x3]
        %v2573 = vlaneseq
        %v2574 = vshrl.u32 %v2573, 7
        %v2575 = vsub.s32 0, %v2574
        %v2576 = vrot.slane %v2571, %v2575
        %v2577 = vlaneseq
        %v2578 = vshrl.u32 %v2577, 7
        %v2579 = vsub.s32 1, %v2578
        %v2580 = vrot.slane %v2571, %v2579
        %v2583 = vmul.f32 %v2570, %v2576
        %v2584 = vmul.f32 %v2569, %v2580
        %2585 = vst [vmem:[#allocation2] sm:$0xf] %v2583
        %2586 = vst [vmem:[#allocation2 + $0x8] sm:$0xf] %v2584
        %2587 = vrot.lane.b32.xlu0 %v2561, 16
        %v2588 = vpop.permute.xlu0 %2587
        %2589 = vrot.lane.b32.xlu0 %v2563, 16
        %v2590 = vpop.permute.xlu0 %2589
        %v2591 = vsel %vm431, %v2588, %v2590
        %v2592 = vsel %vm431, %v2590, %v2588
        %v2593 = vld [vmem:[%s434] ss:$8 sm:$0x3]
        %v2595 = vlaneseq
        %v2596 = vshrl.u32 %v2595, 7
        %v2597 = vsub.s32 0, %v2596
        %v2598 = vrot.slane %v2593, %v2597
        %v2599 = vlaneseq
        %v2600 = vshrl.u32 %v2599, 7
        %v2601 = vsub.s32 1, %v2600
        %v2602 = vrot.slane %v2593, %v2601
        %v2605 = vmul.f32 %v2592, %v2598
        %v2606 = vmul.f32 %v2591, %v2602
        %v2609 = vrot.slane %v2605, 4
        %v2610 = vrot.slane %v2606, 4
        %2613 = vst [vmem:[#allocation2] sm:$0xf0] %v2609
        %2614 = vst [vmem:[#allocation2 + $0x8] sm:$0xf0] %v2610
        %2615 = vrot.lane.b32.xlu0 %v2561, 15
        %v2616 = vpop.permute.xlu0 %2615
        %2617 = vrot.lane.b32.xlu0 %v2563, 15
        %v2618 = vpop.permute.xlu0 %2617
        %v2619 = vsel %vm461, %v2616, %v2618
        %v2620 = vsel %vm461, %v2618, %v2616
        %v2621 = vld [vmem:[%s464] ss:$8 sm:$0x3]
        %v2623 = vlaneseq
        %v2624 = vshrl.u32 %v2623, 7
        %v2625 = vsub.s32 0, %v2624
        %v2626 = vrot.slane %v2621, %v2625
        %v2627 = vlaneseq
        %v2628 = vshrl.u32 %v2627, 7
        %v2629 = vsub.s32 1, %v2628
        %v2630 = vrot.slane %v2621, %v2629
        %v2633 = vmul.f32 %v2620, %v2626
        %v2634 = vmul.f32 %v2619, %v2630
        %2635 = vst [vmem:[#allocation2 + $0x10] sm:$0xf] %v2633
        %2636 = vst [vmem:[#allocation2 + $0x18] sm:$0xf] %v2634
        %2637 = vrot.lane.b32.xlu0 %v2561, 1
        %v2638 = vpop.permute.xlu0 %2637
        %2639 = vrot.lane.b32.xlu0 %v2563, 1
        %v2640 = vpop.permute.xlu0 %2639
        %v2641 = vsel %vm485, %v2638, %v2640
        %v2642 = vsel %vm485, %v2640, %v2638
        %v2643 = vld [vmem:[%s488] ss:$8 sm:$0x3]
        %v2645 = vlaneseq
        %v2646 = vshrl.u32 %v2645, 7
        %v2647 = vsub.s32 0, %v2646
        %v2648 = vrot.slane %v2643, %v2647
        %v2649 = vlaneseq
        %v2650 = vshrl.u32 %v2649, 7
        %v2651 = vsub.s32 1, %v2650
        %v2652 = vrot.slane %v2643, %v2651
        %v2655 = vmul.f32 %v2642, %v2648
        %v2656 = vmul.f32 %v2641, %v2652
        %v2659 = vrot.slane %v2655, 4
        %v2660 = vrot.slane %v2656, 4
        %2663 = vst [vmem:[#allocation2 + $0x10] sm:$0xf0] %v2659
        %2664 = vst [vmem:[#allocation2 + $0x18] sm:$0xf0] %v2660
        %v2665 = vld [vmem:[%s511] ss:$8 sm:$0x3]
        %v2667 = vlaneseq
        %v2668 = vshrl.u32 %v2667, 7
        %v2669 = vsub.s32 0, %v2668
        %v2670 = vrot.slane %v2665, %v2669
        %v2671 = vlaneseq
        %v2672 = vshrl.u32 %v2671, 7
        %v2673 = vsub.s32 1, %v2672
        %v2674 = vrot.slane %v2665, %v2673
        %v2675 = vcombine.low %v2670, %v2674
        %v2677 = vmul.f32 %v2561, %v2675
        %v2679 = vcombine.high %v2677, %v2677
        %2681 = vst [vmem:[#allocation2 + $0x20] sm:$0xf] %v2677
        %2682 = vst [vmem:[#allocation2 + $0x28] sm:$0xf] %v2679
        %2683 = vrot.lane.b32.xlu0 %v2561, 127
        %v2684 = vpop.permute.xlu0 %2683
        %2685 = vrot.lane.b32.xlu0 %v2563, 127
        %v2686 = vpop.permute.xlu0 %2685
        %v2687 = vsel %vm534, %v2684, %v2686
        %v2688 = vsel %vm534, %v2686, %v2684
        %v2689 = vld [vmem:[%s537] ss:$8 sm:$0x3]
        %v2691 = vlaneseq
        %v2692 = vshrl.u32 %v2691, 7
        %v2693 = vsub.s32 0, %v2692
        %v2694 = vrot.slane %v2689, %v2693
        %v2695 = vlaneseq
        %v2696 = vshrl.u32 %v2695, 7
        %v2697 = vsub.s32 1, %v2696
        %v2698 = vrot.slane %v2689, %v2697
        %v2701 = vmul.f32 %v2687, %v2694
        %v2702 = vmul.f32 %v2688, %v2698
        %v2705 = vrot.slane %v2701, 4
        %v2706 = vrot.slane %v2702, 4
        %2709 = vst [vmem:[#allocation2 + $0x20] sm:$0xf0] %v2705
        %2710 = vst [vmem:[#allocation2 + $0x28] sm:$0xf0] %v2706
        %2711 = vrot.lane.b32.xlu0 %v2561, 113
        %v2712 = vpop.permute.xlu0 %2711
        %2713 = vrot.lane.b32.xlu0 %v2563, 113
        %v2714 = vpop.permute.xlu0 %2713
        %v2715 = vsel %vm564, %v2712, %v2714
        %v2716 = vsel %vm564, %v2714, %v2712
        %v2717 = vld [vmem:[%s567] ss:$8 sm:$0x3]
        %v2719 = vlaneseq
        %v2720 = vshrl.u32 %v2719, 7
        %v2721 = vsub.s32 0, %v2720
        %v2722 = vrot.slane %v2717, %v2721
        %v2723 = vlaneseq
        %v2724 = vshrl.u32 %v2723, 7
        %v2725 = vsub.s32 1, %v2724
        %v2726 = vrot.slane %v2717, %v2725
        %v2729 = vmul.f32 %v2715, %v2722
        %v2730 = vmul.f32 %v2716, %v2726
        %2731 = vst [vmem:[#allocation2 + $0x30] sm:$0xf] %v2729
        %2732 = vst [vmem:[#allocation2 + $0x38] sm:$0xf] %v2730
        %2733 = vrot.lane.b32.xlu0 %v2561, 112
        %v2734 = vpop.permute.xlu0 %2733
        %2735 = vrot.lane.b32.xlu0 %v2563, 112
        %v2736 = vpop.permute.xlu0 %2735
        %v2737 = vsel %vm588, %v2734, %v2736
        %v2738 = vsel %vm588, %v2736, %v2734
        %v2739 = vld [vmem:[%s591] ss:$8 sm:$0x3]
        %v2741 = vlaneseq
        %v2742 = vshrl.u32 %v2741, 7
        %v2743 = vsub.s32 0, %v2742
        %v2744 = vrot.slane %v2739, %v2743
        %v2745 = vlaneseq
        %v2746 = vshrl.u32 %v2745, 7
        %v2747 = vsub.s32 1, %v2746
        %v2748 = vrot.slane %v2739, %v2747
        %v2751 = vmul.f32 %v2737, %v2744
        %v2752 = vmul.f32 %v2738, %v2748
        %v2755 = vrot.slane %v2751, 4
        %v2756 = vrot.slane %v2752, 4
        %2759 = vst [vmem:[#allocation2 + $0x30] sm:$0xf0] %v2755
        %2760 = vst [vmem:[#allocation2 + $0x38] sm:$0xf0] %v2756
        %2761 = vrot.lane.b32.xlu0 %v2561, 111
        %v2762 = vpop.permute.xlu0 %2761
        %2763 = vrot.lane.b32.xlu0 %v2563, 111
        %v2764 = vpop.permute.xlu0 %2763
        %v2765 = vsel %vm618, %v2762, %v2764
        %v2766 = vsel %vm618, %v2764, %v2762
        %v2767 = vld [vmem:[%s621] ss:$8 sm:$0x3]
        %v2769 = vlaneseq
        %v2770 = vshrl.u32 %v2769, 7
        %v2771 = vsub.s32 0, %v2770
        %v2772 = vrot.slane %v2767, %v2771
        %v2773 = vlaneseq
        %v2774 = vshrl.u32 %v2773, 7
        %v2775 = vsub.s32 1, %v2774
        %v2776 = vrot.slane %v2767, %v2775
        %v2779 = vmul.f32 %v2765, %v2772
        %v2780 = vmul.f32 %v2766, %v2776
        %2781 = vst [vmem:[#allocation2 + $0x40] sm:$0xf] %v2779
        %2782 = vst [vmem:[#allocation2 + $0x48] sm:$0xf] %v2780
        %v2783 = vld [vmem:[%s3] sm:$0xf]
        %v2784 = vld [vmem:[%s3 + $0x4] sm:$0xf]
        %v2785 = vld [vmem:[%s3 + $0x8] sm:$0xf]
        %v2786 = vld [vmem:[%s3 + $0xc] sm:$0xf]
        %v2787 = vld [vmem:[#allocation2] sm:$0xff]
        %v2788 = vld [vmem:[#allocation2 + $0x8] sm:$0xff]
        %v2789 = vld [vmem:[#allocation2 + $0x10] sm:$0xff]
        %v2790 = vld [vmem:[#allocation2 + $0x18] sm:$0xff]
        %v2791 = vld [vmem:[#allocation2 + $0x20] sm:$0xff]
        %v2792 = vld [vmem:[#allocation2 + $0x28] sm:$0xff]
        %v2793 = vld [vmem:[#allocation2 + $0x30] sm:$0xff]
        %v2794 = vld [vmem:[#allocation2 + $0x38] sm:$0xff]
        %v2795 = vld [vmem:[#allocation2 + $0x40] sm:$0xf]
        %v2796 = vld [vmem:[#allocation2 + $0x48] sm:$0xf]
        %v2797 = vpack.c.bf16 %v2789, %v2787
        %v2798 = vpack.c.bf16 %v2790, %v2788
        %v2799 = vpack.c.bf16 %v2793, %v2791
        %v2800 = vpack.c.bf16 %v2794, %v2792
        %v2801 = vpack.c.bf16 %v2795, %v2795
        %v2802 = vpack.c.bf16 %v2796, %v2796
        %s2803 = scalar_lea.vmem %s4, 64
        %v2804 = vld [vmem:[%s2803] sm:$0xff]
        %v2805 = vld [vmem:[%s2803 + $0x8] sm:$0xff]
        %v2806 = vld [vmem:[%s2803 + $0x10] sm:$0xff]
        %v2807 = vld [vmem:[%s2803 + $0x18] sm:$0xff]
        %2809 = vset.pattern.permute.xlu0 0
        %2810 = vperm.xlu0 %2809, %v2804
        %v2811 = vpop.permute.xlu0 %2810
        %2814 = vset.pattern.permute.xlu0 0
        %2815 = vperm.xlu0 %2814, %v2805
        %v2816 = vpop.permute.xlu0 %2815
        %2819 = vset.pattern.permute.xlu0 0
        %2820 = vperm.xlu0 %2819, %v2806
        %v2821 = vpop.permute.xlu0 %2820
        %2824 = vset.pattern.permute.xlu0 0
        %2825 = vperm.xlu0 %2824, %v2807
        %v2826 = vpop.permute.xlu0 %2825
        %v2832 = vunpack.c.l.b16 %v2783
        %v2833 = vunpack.c.l.b16 %v2784
        %v2834 = vunpack.c.l.b16 %v2785
        %v2835 = vunpack.c.l.b16 %v2786
        %v2836 = vpack.c.b16 %v2833, %v2832
        %v2837 = vpack.c.b16 %v2835, %v2834
        %v2839 = vsel %vm692, %v2836, 0
        %v2842 = vsel %vm692, %v2837, 0
        %v2845 = vsel %vm699, %v2801, 0
        %v2848 = vsel %vm699, %v2802, 0
        %2850 = vmatprep.subr.bf16.mxu0 %v2798
        %2851 = vmatpush1.bf16.msra.mxu0 %v2797
        %2852 = vmatprep.subr.bf16.mxu0 %v2800
        %2853 = vmatpush1.bf16.msra.mxu0 %v2799
        %2854 = vmatprep.subr.bf16.mxu0 %v2848
        %2855 = vmatpush1.bf16.msra.mxu0 %v2845
        %2856 = vmatprep.subr.bf16.mxu0 0
        %2857 = vmatpush1.bf16.msra.mxu0 0
        %2858 = vmatprep.subr.bf16.mxu0 0
        %2859 = vmatpush1.bf16.msra.mxu0 0
        %2860 = vmatprep.subr.bf16.mxu0 0
        %2861 = vmatpush1.bf16.msra.mxu0 0
        %2862 = vmatprep.subr.bf16.mxu0 0
        %2863 = vmatpush1.bf16.msra.mxu0 0
        %2864 = vmatprep.subr.bf16.mxu0 0
        %2865 = vmatpush1.bf16.msra.mxu0 0
        %2866 = vmatprep.subr.bf16.mxu0 0
        %2867 = vmatpush1.bf16.msra.mxu0 0
        %2868 = vmatprep.subr.bf16.mxu0 0
        %2869 = vmatpush1.bf16.msra.mxu0 0
        %2870 = vmatprep.subr.bf16.mxu0 0
        %2871 = vmatpush1.bf16.msra.mxu0 0
        %2872 = vmatprep.subr.bf16.mxu0 0
        %2873 = vmatpush1.bf16.msra.mxu0 0
        %2874 = vmatprep.subr.bf16.mxu0 0
        %2875 = vmatpush1.bf16.msra.mxu0 0
        %2876 = vmatprep.subr.bf16.mxu0 0
        %2877 = vmatpush1.bf16.msra.mxu0 0
        %2878 = vmatprep.subr.bf16.mxu0 0
        %2879 = vmatpush1.bf16.msra.mxu0 0
        %2880 = vmatprep.subr.bf16.mxu0 0
        %2881 = vmatpush1.bf16.msra.mxu0 0
        %2882 = vmatprep.mubr.bf16.mxu0 0
        %2883 = vmatmul.mubr.bf16.gmra.mrb[0].mxu0 %v2839
        %v2884 = vpop.f32.mrb[0].mxu0
        %v2885 = vadd.f32 %v2811, %v2884
        %v2886 = vpop.f32.mrb[0].mxu0
        %v2887 = vadd.f32 %v2811, %v2886
        %v2888 = vpop.f32.mrb[0].mxu0
        %v2889 = vadd.f32 %v2816, %v2888
        %v2890 = vpop.f32.mrb[0].mxu0
        %v2891 = vadd.f32 %v2816, %v2890
        %2892 = vmatprep.mubr.bf16.mxu0 0
        %2893 = vmatmul.mubr.bf16.gmra.mrb[0].mxu0 %v2842
        %v2894 = vpop.f32.mrb[0].mxu0
        %v2895 = vadd.f32 %v2821, %v2894
        %v2896 = vpop.f32.mrb[0].mxu0
        %v2897 = vadd.f32 %v2821, %v2896
        %v2898 = vpop.f32.mrb[0].mxu0
        %v2899 = vadd.f32 %v2826, %v2898
        %v2900 = vpop.f32.mrb[0].mxu0
        %v2901 = vadd.f32 %v2826, %v2900
        %2902 = vdwg.mxu0
        %v2903 = vxor.u32 %v2885, 2147483648
        %v2904 = vxor.u32 %v2887, 2147483648
        %v2905 = vxor.u32 %v2889, 2147483648
        %v2906 = vxor.u32 %v2891, 2147483648
        %v2907 = vxor.u32 %v2895, 2147483648
        %v2908 = vxor.u32 %v2897, 2147483648
        %v2909 = vxor.u32 %v2899, 2147483648
        %v2910 = vxor.u32 %v2901, 2147483648
        %v2911 = vmul.f32 %v2903, 1.442695
        %v2912 = vpow.pop %v2911
        %v2913 = vmul.f32 %v2904, 1.442695
        %v2914 = vpow.pop %v2913
        %v2915 = vmul.f32 %v2905, 1.442695
        %v2916 = vpow.pop %v2915
        %v2917 = vmul.f32 %v2906, 1.442695
        %v2918 = vpow.pop %v2917
        %v2919 = vmul.f32 %v2907, 1.442695
        %v2920 = vpow.pop %v2919
        %v2921 = vmul.f32 %v2908, 1.442695
        %v2922 = vpow.pop %v2921
        %v2923 = vmul.f32 %v2909, 1.442695
        %v2924 = vpow.pop %v2923
        %v2925 = vmul.f32 %v2910, 1.442695
        %v2926 = vpow.pop %v2925
        %v2927 = vadd.f32 %v2912, 1.0
        %v2928 = vadd.f32 %v2914, 1.0
        %v2929 = vadd.f32 %v2916, 1.0
        %v2930 = vadd.f32 %v2918, 1.0
        %v2931 = vadd.f32 %v2920, 1.0
        %v2932 = vadd.f32 %v2922, 1.0
        %v2933 = vadd.f32 %v2924, 1.0
        %v2934 = vadd.f32 %v2926, 1.0
        %v2935 = vrcp.pop %v2927
        %v2936 = vmul.f32 1.0, %v2935
        %v2937 = vrcp.pop %v2928
        %v2938 = vmul.f32 1.0, %v2937
        %v2939 = vrcp.pop %v2929
        %v2940 = vmul.f32 1.0, %v2939
        %v2941 = vrcp.pop %v2930
        %v2942 = vmul.f32 1.0, %v2941
        %v2943 = vrcp.pop %v2931
        %v2944 = vmul.f32 1.0, %v2943
        %v2945 = vrcp.pop %v2932
        %v2946 = vmul.f32 1.0, %v2945
        %v2947 = vrcp.pop %v2933
        %v2948 = vmul.f32 1.0, %v2947
        %v2949 = vrcp.pop %v2934
        %v2950 = vmul.f32 1.0, %v2949
        %v2951 = vmul.f32 %v2885, %v2936
        %v2952 = vmul.f32 %v2887, %v2938
        %v2953 = vmul.f32 %v2889, %v2940
        %v2954 = vmul.f32 %v2891, %v2942
        %v2955 = vmul.f32 %v2895, %v2944
        %v2956 = vmul.f32 %v2897, %v2946
        %v2957 = vmul.f32 %v2899, %v2948
        %v2958 = vmul.f32 %v2901, %v2950
        %2959 = vrot.lane.b32.xlu0 %v2951, 17
        %v2960 = vpop.permute.xlu0 %2959
        %2961 = vrot.lane.b32.xlu0 %v2953, 17
        %v2962 = vpop.permute.xlu0 %2961
        %2963 = vrot.lane.b32.xlu0 %v2955, 17
        %v2964 = vpop.permute.xlu0 %2963
        %2965 = vrot.lane.b32.xlu0 %v2957, 17
        %v2966 = vpop.permute.xlu0 %2965
        %2967 = vrot.lane.b32.xlu0 %v2952, 17
        %v2968 = vpop.permute.xlu0 %2967
        %2969 = vrot.lane.b32.xlu0 %v2954, 17
        %v2970 = vpop.permute.xlu0 %2969
        %2971 = vrot.lane.b32.xlu0 %v2956, 17
        %v2972 = vpop.permute.xlu0 %2971
        %2973 = vrot.lane.b32.xlu0 %v2958, 17
        %v2974 = vpop.permute.xlu0 %2973
        %v2975 = vsel %vm408, %v2960, %v2968
        %v2976 = vsel %vm408, %v2962, %v2970
        %v2977 = vsel %vm408, %v2964, %v2972
        %v2978 = vsel %vm408, %v2966, %v2974
        %v2979 = vsel %vm408, %v2968, %v2960
        %v2980 = vsel %vm408, %v2970, %v2962
        %v2981 = vsel %vm408, %v2972, %v2964
        %v2982 = vsel %vm408, %v2974, %v2966
        %v2983 = vld [vmem:[%s7] ss:$8 sm:$0x3]
        %v2985 = vlaneseq
        %v2986 = vshrl.u32 %v2985, 7
        %v2987 = vsub.s32 0, %v2986
        %v2988 = vrot.slane %v2983, %v2987
        %v2989 = vlaneseq
        %v2990 = vshrl.u32 %v2989, 7
        %v2991 = vsub.s32 1, %v2990
        %v2992 = vrot.slane %v2983, %v2991
        %v2995 = vmul.f32 %v2979, %v2988
        %v2996 = vmul.f32 %v2975, %v2992
        %v2997 = vmul.f32 %v2980, %v2988
        %v2998 = vmul.f32 %v2976, %v2992
        %v2999 = vmul.f32 %v2981, %v2988
        %v3000 = vmul.f32 %v2977, %v2992
        %v3001 = vmul.f32 %v2982, %v2988
        %v3002 = vmul.f32 %v2978, %v2992
        %3003 = vst [vmem:[#allocation3] sm:$0xff] %v2995
        %3004 = vst [vmem:[#allocation3 + $0x8] sm:$0xff] %v2996
        %3005 = vst [vmem:[#allocation3 + $0x10] sm:$0xff] %v2997
        %3006 = vst [vmem:[#allocation3 + $0x18] sm:$0xff] %v2998
        %3007 = vst [vmem:[#allocation3 + $0x20] sm:$0xff] %v2999
        %3008 = vst [vmem:[#allocation3 + $0x28] sm:$0xff] %v3000
        %3009 = vst [vmem:[#allocation3 + $0x30] sm:$0xff] %v3001
        %3010 = vst [vmem:[#allocation3 + $0x38] sm:$0xff] %v3002
        %3011 = vrot.lane.b32.xlu0 %v2951, 16
        %v3012 = vpop.permute.xlu0 %3011
        %3013 = vrot.lane.b32.xlu0 %v2953, 16
        %v3014 = vpop.permute.xlu0 %3013
        %3015 = vrot.lane.b32.xlu0 %v2955, 16
        %v3016 = vpop.permute.xlu0 %3015
        %3017 = vrot.lane.b32.xlu0 %v2957, 16
        %v3018 = vpop.permute.xlu0 %3017
        %3019 = vrot.lane.b32.xlu0 %v2952, 16
        %v3020 = vpop.permute.xlu0 %3019
        %3021 = vrot.lane.b32.xlu0 %v2954, 16
        %v3022 = vpop.permute.xlu0 %3021
        %3023 = vrot.lane.b32.xlu0 %v2956, 16
        %v3024 = vpop.permute.xlu0 %3023
        %3025 = vrot.lane.b32.xlu0 %v2958, 16
        %v3026 = vpop.permute.xlu0 %3025
        %v3027 = vsel %vm431, %v3012, %v3020
        %v3028 = vsel %vm431, %v3014, %v3022
        %v3029 = vsel %vm431, %v3016, %v3024
        %v3030 = vsel %vm431, %v3018, %v3026
        %v3031 = vsel %vm431, %v3020, %v3012
        %v3032 = vsel %vm431, %v3022, %v3014
        %v3033 = vsel %vm431, %v3024, %v3016
        %v3034 = vsel %vm431, %v3026, %v3018
        %v3035 = vld [vmem:[%s434] ss:$8 sm:$0x3]
        %v3037 = vlaneseq
        %v3038 = vshrl.u32 %v3037, 7
        %v3039 = vsub.s32 0, %v3038
        %v3040 = vrot.slane %v3035, %v3039
        %v3041 = vlaneseq
        %v3042 = vshrl.u32 %v3041, 7
        %v3043 = vsub.s32 1, %v3042
        %v3044 = vrot.slane %v3035, %v3043
        %v3047 = vmul.f32 %v3031, %v3040
        %v3048 = vmul.f32 %v3027, %v3044
        %v3049 = vmul.f32 %v3032, %v3040
        %v3050 = vmul.f32 %v3028, %v3044
        %v3051 = vmul.f32 %v3033, %v3040
        %v3052 = vmul.f32 %v3029, %v3044
        %v3053 = vmul.f32 %v3034, %v3040
        %v3054 = vmul.f32 %v3030, %v3044
        %3055 = vst [vmem:[#allocation3 + $0x40] sm:$0xff] %v3047
        %3056 = vst [vmem:[#allocation3 + $0x48] sm:$0xff] %v3048
        %3057 = vst [vmem:[#allocation3 + $0x50] sm:$0xff] %v3049
        %3058 = vst [vmem:[#allocation3 + $0x58] sm:$0xff] %v3050
        %3059 = vst [vmem:[#allocation3 + $0x60] sm:$0xff] %v3051
        %3060 = vst [vmem:[#allocation3 + $0x68] sm:$0xff] %v3052
        %3061 = vst [vmem:[#allocation3 + $0x70] sm:$0xff] %v3053
        %3062 = vst [vmem:[#allocation3 + $0x78] sm:$0xff] %v3054
        %3063 = vrot.lane.b32.xlu0 %v2951, 15
        %v3064 = vpop.permute.xlu0 %3063
        %3065 = vrot.lane.b32.xlu0 %v2953, 15
        %v3066 = vpop.permute.xlu0 %3065
        %3067 = vrot.lane.b32.xlu0 %v2955, 15
        %v3068 = vpop.permute.xlu0 %3067
        %3069 = vrot.lane.b32.xlu0 %v2957, 15
        %v3070 = vpop.permute.xlu0 %3069
        %3071 = vrot.lane.b32.xlu0 %v2952, 15
        %v3072 = vpop.permute.xlu0 %3071
        %3073 = vrot.lane.b32.xlu0 %v2954, 15
        %v3074 = vpop.permute.xlu0 %3073
        %3075 = vrot.lane.b32.xlu0 %v2956, 15
        %v3076 = vpop.permute.xlu0 %3075
        %3077 = vrot.lane.b32.xlu0 %v2958, 15
        %v3078 = vpop.permute.xlu0 %3077
        %v3079 = vsel %vm461, %v3064, %v3072
        %v3080 = vsel %vm461, %v3066, %v3074
        %v3081 = vsel %vm461, %v3068, %v3076
        %v3082 = vsel %vm461, %v3070, %v3078
        %v3083 = vsel %vm461, %v3072, %v3064
        %v3084 = vsel %vm461, %v3074, %v3066
        %v3085 = vsel %vm461, %v3076, %v3068
        %v3086 = vsel %vm461, %v3078, %v3070
        %v3087 = vld [vmem:[%s464] ss:$8 sm:$0x3]
        %v3089 = vlaneseq
        %v3090 = vshrl.u32 %v3089, 7
        %v3091 = vsub.s32 0, %v3090
        %v3092 = vrot.slane %v3087, %v3091
        %v3093 = vlaneseq
        %v3094 = vshrl.u32 %v3093, 7
        %v3095 = vsub.s32 1, %v3094
        %v3096 = vrot.slane %v3087, %v3095
        %v3099 = vmul.f32 %v3083, %v3092
        %v3100 = vmul.f32 %v3079, %v3096
        %v3101 = vmul.f32 %v3084, %v3092
        %v3102 = vmul.f32 %v3080, %v3096
        %v3103 = vmul.f32 %v3085, %v3092
        %v3104 = vmul.f32 %v3081, %v3096
        %v3105 = vmul.f32 %v3086, %v3092
        %v3106 = vmul.f32 %v3082, %v3096
        %3107 = vst [vmem:[#allocation3 + $0x80] sm:$0xff] %v3099
        %3108 = vst [vmem:[#allocation3 + $0x88] sm:$0xff] %v3100
        %3109 = vst [vmem:[#allocation3 + $0x90] sm:$0xff] %v3101
        %3110 = vst [vmem:[#allocation3 + $0x98] sm:$0xff] %v3102
        %3111 = vst [vmem:[#allocation3 + $0xa0] sm:$0xff] %v3103
        %3112 = vst [vmem:[#allocation3 + $0xa8] sm:$0xff] %v3104
        %3113 = vst [vmem:[#allocation3 + $0xb0] sm:$0xff] %v3105
        %3114 = vst [vmem:[#allocation3 + $0xb8] sm:$0xff] %v3106
        %3115 = vrot.lane.b32.xlu0 %v2951, 1
        %v3116 = vpop.permute.xlu0 %3115
        %3117 = vrot.lane.b32.xlu0 %v2953, 1
        %v3118 = vpop.permute.xlu0 %3117
        %3119 = vrot.lane.b32.xlu0 %v2955, 1
        %v3120 = vpop.permute.xlu0 %3119
        %3121 = vrot.lane.b32.xlu0 %v2957, 1
        %v3122 = vpop.permute.xlu0 %3121
        %3123 = vrot.lane.b32.xlu0 %v2952, 1
        %v3124 = vpop.permute.xlu0 %3123
        %3125 = vrot.lane.b32.xlu0 %v2954, 1
        %v3126 = vpop.permute.xlu0 %3125
        %3127 = vrot.lane.b32.xlu0 %v2956, 1
        %v3128 = vpop.permute.xlu0 %3127
        %3129 = vrot.lane.b32.xlu0 %v2958, 1
        %v3130 = vpop.permute.xlu0 %3129
        %v3131 = vsel %vm485, %v3116, %v3124
        %v3132 = vsel %vm485, %v3118, %v3126
        %v3133 = vsel %vm485, %v3120, %v3128
        %v3134 = vsel %vm485, %v3122, %v3130
        %v3135 = vsel %vm485, %v3124, %v3116
        %v3136 = vsel %vm485, %v3126, %v3118
        %v3137 = vsel %vm485, %v3128, %v3120
        %v3138 = vsel %vm485, %v3130, %v3122
        %v3139 = vld [vmem:[%s488] ss:$8 sm:$0x3]
        %v3141 = vlaneseq
        %v3142 = vshrl.u32 %v3141, 7
        %v3143 = vsub.s32 0, %v3142
        %v3144 = vrot.slane %v3139, %v3143
        %v3145 = vlaneseq
        %v3146 = vshrl.u32 %v3145, 7
        %v3147 = vsub.s32 1, %v3146
        %v3148 = vrot.slane %v3139, %v3147
        %v3151 = vmul.f32 %v3135, %v3144
        %v3152 = vmul.f32 %v3131, %v3148
        %v3153 = vmul.f32 %v3136, %v3144
        %v3154 = vmul.f32 %v3132, %v3148
        %v3155 = vmul.f32 %v3137, %v3144
        %v3156 = vmul.f32 %v3133, %v3148
        %v3157 = vmul.f32 %v3138, %v3144
        %v3158 = vmul.f32 %v3134, %v3148
        %3159 = vst [vmem:[#allocation3 + $0xc0] sm:$0xff] %v3151
        %3160 = vst [vmem:[#allocation3 + $0xc8] sm:$0xff] %v3152
        %3161 = vst [vmem:[#allocation3 + $0xd0] sm:$0xff] %v3153
        %3162 = vst [vmem:[#allocation3 + $0xd8] sm:$0xff] %v3154
        %3163 = vst [vmem:[#allocation3 + $0xe0] sm:$0xff] %v3155
        %3164 = vst [vmem:[#allocation3 + $0xe8] sm:$0xff] %v3156
        %3165 = vst [vmem:[#allocation3 + $0xf0] sm:$0xff] %v3157
        %3166 = vst [vmem:[#allocation3 + $0xf8] sm:$0xff] %v3158
        %v3167 = vld [vmem:[%s511] ss:$8 sm:$0x3]
        %v3169 = vlaneseq
        %v3170 = vshrl.u32 %v3169, 7
        %v3171 = vsub.s32 0, %v3170
        %v3172 = vrot.slane %v3167, %v3171
        %v3173 = vlaneseq
        %v3174 = vshrl.u32 %v3173, 7
        %v3175 = vsub.s32 1, %v3174
        %v3176 = vrot.slane %v3167, %v3175
        %v3179 = vmul.f32 %v2951, %v3172
        %v3180 = vmul.f32 %v2952, %v3176
        %v3181 = vmul.f32 %v2953, %v3172
        %v3182 = vmul.f32 %v2954, %v3176
        %v3183 = vmul.f32 %v2955, %v3172
        %v3184 = vmul.f32 %v2956, %v3176
        %v3185 = vmul.f32 %v2957, %v3172
        %v3186 = vmul.f32 %v2958, %v3176
        %3187 = vst [vmem:[#allocation3 + $0x100] sm:$0xff] %v3179
        %3188 = vst [vmem:[#allocation3 + $0x108] sm:$0xff] %v3180
        %3189 = vst [vmem:[#allocation3 + $0x110] sm:$0xff] %v3181
        %3190 = vst [vmem:[#allocation3 + $0x118] sm:$0xff] %v3182
        %3191 = vst [vmem:[#allocation3 + $0x120] sm:$0xff] %v3183
        %3192 = vst [vmem:[#allocation3 + $0x128] sm:$0xff] %v3184
        %3193 = vst [vmem:[#allocation3 + $0x130] sm:$0xff] %v3185
        %3194 = vst [vmem:[#allocation3 + $0x138] sm:$0xff] %v3186
        %3195 = vrot.lane.b32.xlu0 %v2951, 127
        %v3196 = vpop.permute.xlu0 %3195
        %3197 = vrot.lane.b32.xlu0 %v2953, 127
        %v3198 = vpop.permute.xlu0 %3197
        %3199 = vrot.lane.b32.xlu0 %v2955, 127
        %v3200 = vpop.permute.xlu0 %3199
        %3201 = vrot.lane.b32.xlu0 %v2957, 127
        %v3202 = vpop.permute.xlu0 %3201
        %3203 = vrot.lane.b32.xlu0 %v2952, 127
        %v3204 = vpop.permute.xlu0 %3203
        %3205 = vrot.lane.b32.xlu0 %v2954, 127
        %v3206 = vpop.permute.xlu0 %3205
        %3207 = vrot.lane.b32.xlu0 %v2956, 127
        %v3208 = vpop.permute.xlu0 %3207
        %3209 = vrot.lane.b32.xlu0 %v2958, 127
        %v3210 = vpop.permute.xlu0 %3209
        %v3211 = vsel %vm534, %v3196, %v3204
        %v3212 = vsel %vm534, %v3198, %v3206
        %v3213 = vsel %vm534, %v3200, %v3208
        %v3214 = vsel %vm534, %v3202, %v3210
        %v3215 = vsel %vm534, %v3204, %v3196
        %v3216 = vsel %vm534, %v3206, %v3198
        %v3217 = vsel %vm534, %v3208, %v3200
        %v3218 = vsel %vm534, %v3210, %v3202
        %v3219 = vld [vmem:[%s537] ss:$8 sm:$0x3]
        %v3221 = vlaneseq
        %v3222 = vshrl.u32 %v3221, 7
        %v3223 = vsub.s32 0, %v3222
        %v3224 = vrot.slane %v3219, %v3223
        %v3225 = vlaneseq
        %v3226 = vshrl.u32 %v3225, 7
        %v3227 = vsub.s32 1, %v3226
        %v3228 = vrot.slane %v3219, %v3227
        %v3231 = vmul.f32 %v3211, %v3224
        %v3232 = vmul.f32 %v3215, %v3228
        %v3233 = vmul.f32 %v3212, %v3224
        %v3234 = vmul.f32 %v3216, %v3228
        %v3235 = vmul.f32 %v3213, %v3224
        %v3236 = vmul.f32 %v3217, %v3228
        %v3237 = vmul.f32 %v3214, %v3224
        %v3238 = vmul.f32 %v3218, %v3228
        %3239 = vst [vmem:[#allocation3 + $0x140] sm:$0xff] %v3231
        %3240 = vst [vmem:[#allocation3 + $0x148] sm:$0xff] %v3232
        %3241 = vst [vmem:[#allocation3 + $0x150] sm:$0xff] %v3233
        %3242 = vst [vmem:[#allocation3 + $0x158] sm:$0xff] %v3234
        %3243 = vst [vmem:[#allocation3 + $0x160] sm:$0xff] %v3235
        %3244 = vst [vmem:[#allocation3 + $0x168] sm:$0xff] %v3236
        %3245 = vst [vmem:[#allocation3 + $0x170] sm:$0xff] %v3237
        %3246 = vst [vmem:[#allocation3 + $0x178] sm:$0xff] %v3238
        %3247 = vrot.lane.b32.xlu0 %v2951, 113
        %v3248 = vpop.permute.xlu0 %3247
        %3249 = vrot.lane.b32.xlu0 %v2953, 113
        %v3250 = vpop.permute.xlu0 %3249
        %3251 = vrot.lane.b32.xlu0 %v2955, 113
        %v3252 = vpop.permute.xlu0 %3251
        %3253 = vrot.lane.b32.xlu0 %v2957, 113
        %v3254 = vpop.permute.xlu0 %3253
        %3255 = vrot.lane.b32.xlu0 %v2952, 113
        %v3256 = vpop.permute.xlu0 %3255
        %3257 = vrot.lane.b32.xlu0 %v2954, 113
        %v3258 = vpop.permute.xlu0 %3257
        %3259 = vrot.lane.b32.xlu0 %v2956, 113
        %v3260 = vpop.permute.xlu0 %3259
        %3261 = vrot.lane.b32.xlu0 %v2958, 113
        %v3262 = vpop.permute.xlu0 %3261
        %v3263 = vsel %vm564, %v3248, %v3256
        %v3264 = vsel %vm564, %v3250, %v3258
        %v3265 = vsel %vm564, %v3252, %v3260
        %v3266 = vsel %vm564, %v3254, %v3262
        %v3267 = vsel %vm564, %v3256, %v3248
        %v3268 = vsel %vm564, %v3258, %v3250
        %v3269 = vsel %vm564, %v3260, %v3252
        %v3270 = vsel %vm564, %v3262, %v3254
        %v3271 = vld [vmem:[%s567] ss:$8 sm:$0x3]
        %v3273 = vlaneseq
        %v3274 = vshrl.u32 %v3273, 7
        %v3275 = vsub.s32 0, %v3274
        %v3276 = vrot.slane %v3271, %v3275
        %v3277 = vlaneseq
        %v3278 = vshrl.u32 %v3277, 7
        %v3279 = vsub.s32 1, %v3278
        %v3280 = vrot.slane %v3271, %v3279
        %v3283 = vmul.f32 %v3263, %v3276
        %v3284 = vmul.f32 %v3267, %v3280
        %v3285 = vmul.f32 %v3264, %v3276
        %v3286 = vmul.f32 %v3268, %v3280
        %v3287 = vmul.f32 %v3265, %v3276
        %v3288 = vmul.f32 %v3269, %v3280
        %v3289 = vmul.f32 %v3266, %v3276
        %v3290 = vmul.f32 %v3270, %v3280
        %3291 = vst [vmem:[#allocation3 + $0x180] sm:$0xff] %v3283
        %3292 = vst [vmem:[#allocation3 + $0x188] sm:$0xff] %v3284
        %3293 = vst [vmem:[#allocation3 + $0x190] sm:$0xff] %v3285
        %3294 = vst [vmem:[#allocation3 + $0x198] sm:$0xff] %v3286
        %3295 = vst [vmem:[#allocation3 + $0x1a0] sm:$0xff] %v3287
        %3296 = vst [vmem:[#allocation3 + $0x1a8] sm:$0xff] %v3288
        %3297 = vst [vmem:[#allocation3 + $0x1b0] sm:$0xff] %v3289
        %3298 = vst [vmem:[#allocation3 + $0x1b8] sm:$0xff] %v3290
        %3299 = vrot.lane.b32.xlu0 %v2951, 112
        %v3300 = vpop.permute.xlu0 %3299
        %3301 = vrot.lane.b32.xlu0 %v2953, 112
        %v3302 = vpop.permute.xlu0 %3301
        %3303 = vrot.lane.b32.xlu0 %v2955, 112
        %v3304 = vpop.permute.xlu0 %3303
        %3305 = vrot.lane.b32.xlu0 %v2957, 112
        %v3306 = vpop.permute.xlu0 %3305
        %3307 = vrot.lane.b32.xlu0 %v2952, 112
        %v3308 = vpop.permute.xlu0 %3307
        %3309 = vrot.lane.b32.xlu0 %v2954, 112
        %v3310 = vpop.permute.xlu0 %3309
        %3311 = vrot.lane.b32.xlu0 %v2956, 112
        %v3312 = vpop.permute.xlu0 %3311
        %3313 = vrot.lane.b32.xlu0 %v2958, 112
        %v3314 = vpop.permute.xlu0 %3313
        %v3315 = vsel %vm588, %v3300, %v3308
        %v3316 = vsel %vm588, %v3302, %v3310
        %v3317 = vsel %vm588, %v3304, %v3312
        %v3318 = vsel %vm588, %v3306, %v3314
        %v3319 = vsel %vm588, %v3308, %v3300
        %v3320 = vsel %vm588, %v3310, %v3302
        %v3321 = vsel %vm588, %v3312, %v3304
        %v3322 = vsel %vm588, %v3314, %v3306
        %v3323 = vld [vmem:[%s591] ss:$8 sm:$0x3]
        %v3325 = vlaneseq
        %v3326 = vshrl.u32 %v3325, 7
        %v3327 = vsub.s32 0, %v3326
        %v3328 = vrot.slane %v3323, %v3327
        %v3329 = vlaneseq
        %v3330 = vshrl.u32 %v3329, 7
        %v3331 = vsub.s32 1, %v3330
        %v3332 = vrot.slane %v3323, %v3331
        %v3335 = vmul.f32 %v3315, %v3328
        %v3336 = vmul.f32 %v3319, %v3332
        %v3337 = vmul.f32 %v3316, %v3328
        %v3338 = vmul.f32 %v3320, %v3332
        %v3339 = vmul.f32 %v3317, %v3328
        %v3340 = vmul.f32 %v3321, %v3332
        %v3341 = vmul.f32 %v3318, %v3328
        %v3342 = vmul.f32 %v3322, %v3332
        %3343 = vst [vmem:[#allocation3 + $0x1c0] sm:$0xff] %v3335
        %3344 = vst [vmem:[#allocation3 + $0x1c8] sm:$0xff] %v3336
        %3345 = vst [vmem:[#allocation3 + $0x1d0] sm:$0xff] %v3337
        %3346 = vst [vmem:[#allocation3 + $0x1d8] sm:$0xff] %v3338
        %3347 = vst [vmem:[#allocation3 + $0x1e0] sm:$0xff] %v3339
        %3348 = vst [vmem:[#allocation3 + $0x1e8] sm:$0xff] %v3340
        %3349 = vst [vmem:[#allocation3 + $0x1f0] sm:$0xff] %v3341
        %3350 = vst [vmem:[#allocation3 + $0x1f8] sm:$0xff] %v3342
        %3351 = vrot.lane.b32.xlu0 %v2951, 111
        %v3352 = vpop.permute.xlu0 %3351
        %3353 = vrot.lane.b32.xlu0 %v2953, 111
        %v3354 = vpop.permute.xlu0 %3353
        %3355 = vrot.lane.b32.xlu0 %v2955, 111
        %v3356 = vpop.permute.xlu0 %3355
        %3357 = vrot.lane.b32.xlu0 %v2957, 111
        %v3358 = vpop.permute.xlu0 %3357
        %3359 = vrot.lane.b32.xlu0 %v2952, 111
        %v3360 = vpop.permute.xlu0 %3359
        %3361 = vrot.lane.b32.xlu0 %v2954, 111
        %v3362 = vpop.permute.xlu0 %3361
        %3363 = vrot.lane.b32.xlu0 %v2956, 111
        %v3364 = vpop.permute.xlu0 %3363
        %3365 = vrot.lane.b32.xlu0 %v2958, 111
        %v3366 = vpop.permute.xlu0 %3365
        %v3367 = vsel %vm618, %v3352, %v3360
        %v3368 = vsel %vm618, %v3354, %v3362
        %v3369 = vsel %vm618, %v3356, %v3364
        %v3370 = vsel %vm618, %v3358, %v3366
        %v3371 = vsel %vm618, %v3360, %v3352
        %v3372 = vsel %vm618, %v3362, %v3354
        %v3373 = vsel %vm618, %v3364, %v3356
        %v3374 = vsel %vm618, %v3366, %v3358
        %v3375 = vld [vmem:[%s621] ss:$8 sm:$0x3]
        %v3377 = vlaneseq
        %v3378 = vshrl.u32 %v3377, 7
        %v3379 = vsub.s32 0, %v3378
        %v3380 = vrot.slane %v3375, %v3379
        %v3381 = vlaneseq
        %v3382 = vshrl.u32 %v3381, 7
        %v3383 = vsub.s32 1, %v3382
        %v3384 = vrot.slane %v3375, %v3383
        %v3387 = vmul.f32 %v3367, %v3380
        %v3388 = vmul.f32 %v3371, %v3384
        %v3389 = vmul.f32 %v3368, %v3380
        %v3390 = vmul.f32 %v3372, %v3384
        %v3391 = vmul.f32 %v3369, %v3380
        %v3392 = vmul.f32 %v3373, %v3384
        %v3393 = vmul.f32 %v3370, %v3380
        %v3394 = vmul.f32 %v3374, %v3384
        %3395 = vst [vmem:[#allocation3 + $0x200] sm:$0xff] %v3387
        %3396 = vst [vmem:[#allocation3 + $0x208] sm:$0xff] %v3388
        %3397 = vst [vmem:[#allocation3 + $0x210] sm:$0xff] %v3389
        %3398 = vst [vmem:[#allocation3 + $0x218] sm:$0xff] %v3390
        %3399 = vst [vmem:[#allocation3 + $0x220] sm:$0xff] %v3391
        %3400 = vst [vmem:[#allocation3 + $0x228] sm:$0xff] %v3392
        %3401 = vst [vmem:[#allocation3 + $0x230] sm:$0xff] %v3393
        %3402 = vst [vmem:[#allocation3 + $0x238] sm:$0xff] %v3394
        %v3403 = vld [vmem:[%s5] sm:$0x3f]
        %v3404 = vld [vmem:[#allocation3] sm:$0xff]
        %v3405 = vld [vmem:[#allocation3 + $0x8] sm:$0xff]
        %v3406 = vld [vmem:[#allocation3 + $0x10] sm:$0xff]
        %v3407 = vld [vmem:[#allocation3 + $0x18] sm:$0xff]
        %v3408 = vld [vmem:[#allocation3 + $0x20] sm:$0xff]
        %v3409 = vld [vmem:[#allocation3 + $0x28] sm:$0xff]
        %v3410 = vld [vmem:[#allocation3 + $0x30] sm:$0xff]
        %v3411 = vld [vmem:[#allocation3 + $0x38] sm:$0xff]
        %v3412 = vld [vmem:[#allocation3 + $0x40] sm:$0xff]
        %v3413 = vld [vmem:[#allocation3 + $0x48] sm:$0xff]
        %v3414 = vld [vmem:[#allocation3 + $0x50] sm:$0xff]
        %v3415 = vld [vmem:[#allocation3 + $0x58] sm:$0xff]
        %v3416 = vld [vmem:[#allocation3 + $0x60] sm:$0xff]
        %v3417 = vld [vmem:[#allocation3 + $0x68] sm:$0xff]
        %v3418 = vld [vmem:[#allocation3 + $0x70] sm:$0xff]
        %v3419 = vld [vmem:[#allocation3 + $0x78] sm:$0xff]
        %v3420 = vld [vmem:[#allocation3 + $0x80] sm:$0xff]
        %v3421 = vld [vmem:[#allocation3 + $0x88] sm:$0xff]
        %v3422 = vld [vmem:[#allocation3 + $0x90] sm:$0xff]
        %v3423 = vld [vmem:[#allocation3 + $0x98] sm:$0xff]
        %v3424 = vld [vmem:[#allocation3 + $0xa0] sm:$0xff]
        %v3425 = vld [vmem:[#allocation3 + $0xa8] sm:$0xff]
        %v3426 = vld [vmem:[#allocation3 + $0xb0] sm:$0xff]
        %v3427 = vld [vmem:[#allocation3 + $0xb8] sm:$0xff]
        %v3428 = vld [vmem:[#allocation3 + $0xc0] sm:$0xff]
        %v3429 = vld [vmem:[#allocation3 + $0xc8] sm:$0xff]
        %v3430 = vld [vmem:[#allocation3 + $0xd0] sm:$0xff]
        %v3431 = vld [vmem:[#allocation3 + $0xd8] sm:$0xff]
        %v3432 = vld [vmem:[#allocation3 + $0xe0] sm:$0xff]
        %v3433 = vld [vmem:[#allocation3 + $0xe8] sm:$0xff]
        %v3434 = vld [vmem:[#allocation3 + $0xf0] sm:$0xff]
        %v3435 = vld [vmem:[#allocation3 + $0xf8] sm:$0xff]
        %v3436 = vld [vmem:[#allocation3 + $0x100] sm:$0xff]
        %v3437 = vld [vmem:[#allocation3 + $0x108] sm:$0xff]
        %v3438 = vld [vmem:[#allocation3 + $0x110] sm:$0xff]
        %v3439 = vld [vmem:[#allocation3 + $0x118] sm:$0xff]
        %v3440 = vld [vmem:[#allocation3 + $0x120] sm:$0xff]
        %v3441 = vld [vmem:[#allocation3 + $0x128] sm:$0xff]
        %v3442 = vld [vmem:[#allocation3 + $0x130] sm:$0xff]
        %v3443 = vld [vmem:[#allocation3 + $0x138] sm:$0xff]
        %v3444 = vld [vmem:[#allocation3 + $0x140] sm:$0xff]
        %v3445 = vld [vmem:[#allocation3 + $0x148] sm:$0xff]
        %v3446 = vld [vmem:[#allocation3 + $0x150] sm:$0xff]
        %v3447 = vld [vmem:[#allocation3 + $0x158] sm:$0xff]
        %v3448 = vld [vmem:[#allocation3 + $0x160] sm:$0xff]
        %v3449 = vld [vmem:[#allocation3 + $0x168] sm:$0xff]
        %v3450 = vld [vmem:[#allocation3 + $0x170] sm:$0xff]
        %v3451 = vld [vmem:[#allocation3 + $0x178] sm:$0xff]
        %v3452 = vld [vmem:[#allocation3 + $0x180] sm:$0xff]
        %v3453 = vld [vmem:[#allocation3 + $0x188] sm:$0xff]
        %v3454 = vld [vmem:[#allocation3 + $0x190] sm:$0xff]
        %v3455 = vld [vmem:[#allocation3 + $0x198] sm:$0xff]
        %v3456 = vld [vmem:[#allocation3 + $0x1a0] sm:$0xff]
        %v3457 = vld [vmem:[#allocation3 + $0x1a8] sm:$0xff]
        %v3458 = vld [vmem:[#allocation3 + $0x1b0] sm:$0xff]
        %v3459 = vld [vmem:[#allocation3 + $0x1b8] sm:$0xff]
        %v3460 = vld [vmem:[#allocation3 + $0x1c0] sm:$0xff]
        %v3461 = vld [vmem:[#allocation3 + $0x1c8] sm:$0xff]
        %v3462 = vld [vmem:[#allocation3 + $0x1d0] sm:$0xff]
        %v3463 = vld [vmem:[#allocation3 + $0x1d8] sm:$0xff]
        %v3464 = vld [vmem:[#allocation3 + $0x1e0] sm:$0xff]
        %v3465 = vld [vmem:[#allocation3 + $0x1e8] sm:$0xff]
        %v3466 = vld [vmem:[#allocation3 + $0x1f0] sm:$0xff]
        %v3467 = vld [vmem:[#allocation3 + $0x1f8] sm:$0xff]
        %v3468 = vld [vmem:[#allocation3 + $0x200] sm:$0xff]
        %v3469 = vld [vmem:[#allocation3 + $0x208] sm:$0xff]
        %v3470 = vld [vmem:[#allocation3 + $0x210] sm:$0xff]
        %v3471 = vld [vmem:[#allocation3 + $0x218] sm:$0xff]
        %v3472 = vld [vmem:[#allocation3 + $0x220] sm:$0xff]
        %v3473 = vld [vmem:[#allocation3 + $0x228] sm:$0xff]
        %v3474 = vld [vmem:[#allocation3 + $0x230] sm:$0xff]
        %v3475 = vld [vmem:[#allocation3 + $0x238] sm:$0xff]
        %v3476 = vpack.c.bf16 %v3406, %v3404
        %v3477 = vpack.c.bf16 %v3407, %v3405
        %v3478 = vpack.c.bf16 %v3410, %v3408
        %v3479 = vpack.c.bf16 %v3411, %v3409
        %v3480 = vpack.c.bf16 %v3414, %v3412
        %v3481 = vpack.c.bf16 %v3415, %v3413
        %v3482 = vpack.c.bf16 %v3418, %v3416
        %v3483 = vpack.c.bf16 %v3419, %v3417
        %v3484 = vpack.c.bf16 %v3422, %v3420
        %v3485 = vpack.c.bf16 %v3423, %v3421
        %v3486 = vpack.c.bf16 %v3426, %v3424
        %v3487 = vpack.c.bf16 %v3427, %v3425
        %v3488 = vpack.c.bf16 %v3430, %v3428
        %v3489 = vpack.c.bf16 %v3431, %v3429
        %v3490 = vpack.c.bf16 %v3434, %v3432
        %v3491 = vpack.c.bf16 %v3435, %v3433
        %v3492 = vpack.c.bf16 %v3438, %v3436
        %v3493 = vpack.c.bf16 %v3439, %v3437
        %v3494 = vpack.c.bf16 %v3442, %v3440
        %v3495 = vpack.c.bf16 %v3443, %v3441
        %v3496 = vpack.c.bf16 %v3446, %v3444
        %v3497 = vpack.c.bf16 %v3447, %v3445
        %v3498 = vpack.c.bf16 %v3450, %v3448
        %v3499 = vpack.c.bf16 %v3451, %v3449
        %v3500 = vpack.c.bf16 %v3454, %v3452
        %v3501 = vpack.c.bf16 %v3455, %v3453
        %v3502 = vpack.c.bf16 %v3458, %v3456
        %v3503 = vpack.c.bf16 %v3459, %v3457
        %v3504 = vpack.c.bf16 %v3462, %v3460
        %v3505 = vpack.c.bf16 %v3463, %v3461
        %v3506 = vpack.c.bf16 %v3466, %v3464
        %v3507 = vpack.c.bf16 %v3467, %v3465
        %v3508 = vpack.c.bf16 %v3470, %v3468
        %v3509 = vpack.c.bf16 %v3471, %v3469
        %v3510 = vpack.c.bf16 %v3474, %v3472
        %v3511 = vpack.c.bf16 %v3475, %v3473
        %v3512 = vld [vmem:[%s6] sm:$0xf]
        %3514 = vset.pattern.permute.xlu0 0
        %3515 = vperm.xlu0 %3514, %v3512
        %v3516 = vpop.permute.xlu0 %3515
        %v3519 = vcombine.high %v3403, %v3403
        %v3521 = vunpack.c.l.s4 1983009808
        %v3522 = vunpack.c.0.s8 %v3521
        %v3523 = vlaneseq
        %v3524 = vshrl.u32 %v3523, 7
        %v3525 = vsub.s32 %v3522, %v3524
        %v3526 = vrot.slane %v3403, %v3525
        %v3528 = vunpack.c.l.s4 1983009808
        %v3529 = vunpack.c.0.s8 %v3528
        %v3530 = vlaneseq
        %v3531 = vshrl.u32 %v3530, 7
        %v3532 = vsub.s32 %v3529, %v3531
        %v3533 = vrot.slane %v3519, %v3532
        %v3534 = vcombine.high %v3526, %v3526
        %v3538 = vsel %vm1393, %v3533, 0
        %3540 = vmatprep.subr.bf16.mxu0 %v3477
        %3541 = vmatpush1.bf16.msra.mxu0 %v3476
        %3542 = vmatprep.subr.bf16.mxu0 %v3479
        %3543 = vmatpush1.bf16.msra.mxu0 %v3478
        %3544 = vmatprep.subr.bf16.mxu0 %v3481
        %3545 = vmatpush1.bf16.msra.mxu0 %v3480
        %3546 = vmatprep.subr.bf16.mxu0 %v3483
        %3547 = vmatpush1.bf16.msra.mxu0 %v3482
        %3548 = vmatprep.subr.bf16.mxu0 %v3485
        %3549 = vmatpush1.bf16.msra.mxu0 %v3484
        %3550 = vmatprep.subr.bf16.mxu0 %v3487
        %3551 = vmatpush1.bf16.msra.mxu0 %v3486
        %3552 = vmatprep.subr.bf16.mxu0 %v3489
        %3553 = vmatpush1.bf16.msra.mxu0 %v3488
        %3554 = vmatprep.subr.bf16.mxu0 %v3491
        %3555 = vmatpush1.bf16.msra.mxu0 %v3490
        %3556 = vmatprep.subr.bf16.mxu0 %v3493
        %3557 = vmatpush1.bf16.msra.mxu0 %v3492
        %3558 = vmatprep.subr.bf16.mxu0 %v3495
        %3559 = vmatpush1.bf16.msra.mxu0 %v3494
        %3560 = vmatprep.subr.bf16.mxu0 %v3497
        %3561 = vmatpush1.bf16.msra.mxu0 %v3496
        %3562 = vmatprep.subr.bf16.mxu0 %v3499
        %3563 = vmatpush1.bf16.msra.mxu0 %v3498
        %3564 = vmatprep.subr.bf16.mxu0 %v3501
        %3565 = vmatpush1.bf16.msra.mxu0 %v3500
        %3566 = vmatprep.subr.bf16.mxu0 %v3503
        %3567 = vmatpush1.bf16.msra.mxu0 %v3502
        %3568 = vmatprep.subr.bf16.mxu0 %v3505
        %3569 = vmatpush1.bf16.msra.mxu0 %v3504
        %3570 = vmatprep.subr.bf16.mxu0 %v3507
        %3571 = vmatpush1.bf16.msra.mxu0 %v3506
        %3572 = vmatprep.mubr.bf16.mxu0 %v3534
        %3573 = vmatmul.mubr.bf16.gmra.mrb[0].mxu0 %v3526
        %v3574 = vpop.f32.mrb[0].mxu0
        %v3575 = vadd.f32 %v3516, %v3574
        %v3576 = vpop.f32.mrb[0].mxu0
        %v3577 = vadd.f32 %v3516, %v3576
        %v3578 = vpop.f32.mrb[0].mxu0
        %v3579 = vpop.f32.mrb[0].mxu0
        %3580 = vdwg.mxu0
        %3581 = vmatprep.subr.bf16.mxu0 %v3509
        %3582 = vmatpush1.bf16.msra.mxu0 %v3508
        %3583 = vmatprep.subr.bf16.mxu0 %v3511
        %3584 = vmatpush1.bf16.msra.mxu0 %v3510
        %3585 = vmatprep.subr.bf16.mxu0 0
        %3586 = vmatpush1.bf16.msra.mxu0 0
        %3587 = vmatprep.subr.bf16.mxu0 0
        %3588 = vmatpush1.bf16.msra.mxu0 0
        %3589 = vmatprep.subr.bf16.mxu0 0
        %3590 = vmatpush1.bf16.msra.mxu0 0
        %3591 = vmatprep.subr.bf16.mxu0 0
        %3592 = vmatpush1.bf16.msra.mxu0 0
        %3593 = vmatprep.subr.bf16.mxu0 0
        %3594 = vmatpush1.bf16.msra.mxu0 0
        %3595 = vmatprep.subr.bf16.mxu0 0
        %3596 = vmatpush1.bf16.msra.mxu0 0
        %3597 = vmatprep.subr.bf16.mxu0 0
        %3598 = vmatpush1.bf16.msra.mxu0 0
        %3599 = vmatprep.subr.bf16.mxu0 0
        %3600 = vmatpush1.bf16.msra.mxu0 0
        %3601 = vmatprep.subr.bf16.mxu0 0
        %3602 = vmatpush1.bf16.msra.mxu0 0
        %3603 = vmatprep.subr.bf16.mxu0 0
        %3604 = vmatpush1.bf16.msra.mxu0 0
        %3605 = vmatprep.subr.bf16.mxu0 0
        %3606 = vmatpush1.bf16.msra.mxu0 0
        %3607 = vmatprep.subr.bf16.mxu0 0
        %3608 = vmatpush1.bf16.msra.mxu0 0
        %3609 = vmatprep.subr.bf16.mxu0 0
        %3610 = vmatpush1.bf16.msra.mxu0 0
        %3611 = vmatprep.subr.bf16.mxu0 0
        %3612 = vmatpush1.bf16.msra.mxu0 0
        %3613 = vmatprep.mubr.bf16.mxu0 0
        %3614 = vmatmul.mubr.bf16.gmra.mrb[0].mxu0 %v3538
        %v3615 = vpop.f32.mrb[0].mxu0
        %v3616 = vadd.f32 %v3575, %v3615
        %v3617 = vpop.f32.mrb[0].mxu0
        %v3618 = vadd.f32 %v3577, %v3617
        %v3619 = vpop.f32.mrb[0].mxu0
        %v3620 = vpop.f32.mrb[0].mxu0
        %3621 = vdwg.mxu0
        %v3622 = vmul.f32 %v3616, 0.03248819
        %v3623 = vmul.f32 %v3618, 0.03248819
        %v3626 = vcombine.low %v3622, %v3623
        %v3628 = vsub.f32 %v2561, %v3626
        %v3629 = vmul.f32 %v3628, 1.0005742
        %s3630 = scalar_lea.vmem %s340, 16 [#allocation4]
        %v3631 = vld [vmem:[%s3630] sm:$0xff]
        %v3632 = vmul.f32 %v3631, 0.009591225
        %v3633 = vadd.f32 %v3629, %v3632
        %v3635 = vcombine.high %v3633, %v3633
        %3637 = vrot.lane.b32.xlu0 %v3633, 17
        %v3638 = vpop.permute.xlu0 %3637
        %3639 = vrot.lane.b32.xlu0 %v3635, 17
        %v3640 = vpop.permute.xlu0 %3639
        %v3641 = vsel %vm408, %v3638, %v3640
        %v3642 = vsel %vm408, %v3640, %v3638
        %v3643 = vld [vmem:[%s7] ss:$8 sm:$0x3]
        %v3645 = vlaneseq
        %v3646 = vshrl.u32 %v3645, 7
        %v3647 = vsub.s32 0, %v3646
        %v3648 = vrot.slane %v3643, %v3647
        %v3649 = vlaneseq
        %v3650 = vshrl.u32 %v3649, 7
        %v3651 = vsub.s32 1, %v3650
        %v3652 = vrot.slane %v3643, %v3651
        %v3655 = vmul.f32 %v3642, %v3648
        %v3656 = vmul.f32 %v3641, %v3652
        %3657 = vst [vmem:[#allocation2] sm:$0xf] %v3655
        %3658 = vst [vmem:[#allocation2 + $0x8] sm:$0xf] %v3656
        %3659 = vrot.lane.b32.xlu0 %v3633, 16
        %v3660 = vpop.permute.xlu0 %3659
        %3661 = vrot.lane.b32.xlu0 %v3635, 16
        %v3662 = vpop.permute.xlu0 %3661
        %v3663 = vsel %vm431, %v3660, %v3662
        %v3664 = vsel %vm431, %v3662, %v3660
        %v3665 = vld [vmem:[%s434] ss:$8 sm:$0x3]
        %v3667 = vlaneseq
        %v3668 = vshrl.u32 %v3667, 7
        %v3669 = vsub.s32 0, %v3668
        %v3670 = vrot.slane %v3665, %v3669
        %v3671 = vlaneseq
        %v3672 = vshrl.u32 %v3671, 7
        %v3673 = vsub.s32 1, %v3672
        %v3674 = vrot.slane %v3665, %v3673
        %v3677 = vmul.f32 %v3664, %v3670
        %v3678 = vmul.f32 %v3663, %v3674
        %v3681 = vrot.slane %v3677, 4
        %v3682 = vrot.slane %v3678, 4
        %3685 = vst [vmem:[#allocation2] sm:$0xf0] %v3681
        %3686 = vst [vmem:[#allocation2 + $0x8] sm:$0xf0] %v3682
        %3687 = vrot.lane.b32.xlu0 %v3633, 15
        %v3688 = vpop.permute.xlu0 %3687
        %3689 = vrot.lane.b32.xlu0 %v3635, 15
        %v3690 = vpop.permute.xlu0 %3689
        %v3691 = vsel %vm461, %v3688, %v3690
        %v3692 = vsel %vm461, %v3690, %v3688
        %v3693 = vld [vmem:[%s464] ss:$8 sm:$0x3]
        %v3695 = vlaneseq
        %v3696 = vshrl.u32 %v3695, 7
        %v3697 = vsub.s32 0, %v3696
        %v3698 = vrot.slane %v3693, %v3697
        %v3699 = vlaneseq
        %v3700 = vshrl.u32 %v3699, 7
        %v3701 = vsub.s32 1, %v3700
        %v3702 = vrot.slane %v3693, %v3701
        %v3705 = vmul.f32 %v3692, %v3698
        %v3706 = vmul.f32 %v3691, %v3702
        %3707 = vst [vmem:[#allocation2 + $0x10] sm:$0xf] %v3705
        %3708 = vst [vmem:[#allocation2 + $0x18] sm:$0xf] %v3706
        %3709 = vrot.lane.b32.xlu0 %v3633, 1
        %v3710 = vpop.permute.xlu0 %3709
        %3711 = vrot.lane.b32.xlu0 %v3635, 1
        %v3712 = vpop.permute.xlu0 %3711
        %v3713 = vsel %vm485, %v3710, %v3712
        %v3714 = vsel %vm485, %v3712, %v3710
        %v3715 = vld [vmem:[%s488] ss:$8 sm:$0x3]
        %v3717 = vlaneseq
        %v3718 = vshrl.u32 %v3717, 7
        %v3719 = vsub.s32 0, %v3718
        %v3720 = vrot.slane %v3715, %v3719
        %v3721 = vlaneseq
        %v3722 = vshrl.u32 %v3721, 7
        %v3723 = vsub.s32 1, %v3722
        %v3724 = vrot.slane %v3715, %v3723
        %v3727 = vmul.f32 %v3714, %v3720
        %v3728 = vmul.f32 %v3713, %v3724
        %v3731 = vrot.slane %v3727, 4
        %v3732 = vrot.slane %v3728, 4
        %3735 = vst [vmem:[#allocation2 + $0x10] sm:$0xf0] %v3731
        %3736 = vst [vmem:[#allocation2 + $0x18] sm:$0xf0] %v3732
        %v3737 = vld [vmem:[%s511] ss:$8 sm:$0x3]
        %v3739 = vlaneseq
        %v3740 = vshrl.u32 %v3739, 7
        %v3741 = vsub.s32 0, %v3740
        %v3742 = vrot.slane %v3737, %v3741
        %v3743 = vlaneseq
        %v3744 = vshrl.u32 %v3743, 7
        %v3745 = vsub.s32 1, %v3744
        %v3746 = vrot.slane %v3737, %v3745
        %v3747 = vcombine.low %v3742, %v3746
        %v3749 = vmul.f32 %v3633, %v3747
        %v3751 = vcombine.high %v3749, %v3749
        %3753 = vst [vmem:[#allocation2 + $0x20] sm:$0xf] %v3749
        %3754 = vst [vmem:[#allocation2 + $0x28] sm:$0xf] %v3751
        %3755 = vrot.lane.b32.xlu0 %v3633, 127
        %v3756 = vpop.permute.xlu0 %3755
        %3757 = vrot.lane.b32.xlu0 %v3635, 127
        %v3758 = vpop.permute.xlu0 %3757
        %v3759 = vsel %vm534, %v3756, %v3758
        %v3760 = vsel %vm534, %v3758, %v3756
        %v3761 = vld [vmem:[%s537] ss:$8 sm:$0x3]
        %v3763 = vlaneseq
        %v3764 = vshrl.u32 %v3763, 7
        %v3765 = vsub.s32 0, %v3764
        %v3766 = vrot.slane %v3761, %v3765
        %v3767 = vlaneseq
        %v3768 = vshrl.u32 %v3767, 7
        %v3769 = vsub.s32 1, %v3768
        %v3770 = vrot.slane %v3761, %v3769
        %v3773 = vmul.f32 %v3759, %v3766
        %v3774 = vmul.f32 %v3760, %v3770
        %v3777 = vrot.slane %v3773, 4
        %v3778 = vrot.slane %v3774, 4
        %3781 = vst [vmem:[#allocation2 + $0x20] sm:$0xf0] %v3777
        %3782 = vst [vmem:[#allocation2 + $0x28] sm:$0xf0] %v3778
        %3783 = vrot.lane.b32.xlu0 %v3633, 113
        %v3784 = vpop.permute.xlu0 %3783
        %3785 = vrot.lane.b32.xlu0 %v3635, 113
        %v3786 = vpop.permute.xlu0 %3785
        %v3787 = vsel %vm564, %v3784, %v3786
        %v3788 = vsel %vm564, %v3786, %v3784
        %v3789 = vld [vmem:[%s567] ss:$8 sm:$0x3]
        %v3791 = vlaneseq
        %v3792 = vshrl.u32 %v3791, 7
        %v3793 = vsub.s32 0, %v3792
        %v3794 = vrot.slane %v3789, %v3793
        %v3795 = vlaneseq
        %v3796 = vshrl.u32 %v3795, 7
        %v3797 = vsub.s32 1, %v3796
        %v3798 = vrot.slane %v3789, %v3797
        %v3801 = vmul.f32 %v3787, %v3794
        %v3802 = vmul.f32 %v3788, %v3798
        %3803 = vst [vmem:[#allocation2 + $0x30] sm:$0xf] %v3801
        %3804 = vst [vmem:[#allocation2 + $0x38] sm:$0xf] %v3802
        %3805 = vrot.lane.b32.xlu0 %v3633, 112
        %v3806 = vpop.permute.xlu0 %3805
        %3807 = vrot.lane.b32.xlu0 %v3635, 112
        %v3808 = vpop.permute.xlu0 %3807
        %v3809 = vsel %vm588, %v3806, %v3808
        %v3810 = vsel %vm588, %v3808, %v3806
        %v3811 = vld [vmem:[%s591] ss:$8 sm:$0x3]
        %v3813 = vlaneseq
        %v3814 = vshrl.u32 %v3813, 7
        %v3815 = vsub.s32 0, %v3814
        %v3816 = vrot.slane %v3811, %v3815
        %v3817 = vlaneseq
        %v3818 = vshrl.u32 %v3817, 7
        %v3819 = vsub.s32 1, %v3818
        %v3820 = vrot.slane %v3811, %v3819
        %v3823 = vmul.f32 %v3809, %v3816
        %v3824 = vmul.f32 %v3810, %v3820
        %v3827 = vrot.slane %v3823, 4
        %v3828 = vrot.slane %v3824, 4
        %3831 = vst [vmem:[#allocation2 + $0x30] sm:$0xf0] %v3827
        %3832 = vst [vmem:[#allocation2 + $0x38] sm:$0xf0] %v3828
        %3833 = vrot.lane.b32.xlu0 %v3633, 111
        %v3834 = vpop.permute.xlu0 %3833
        %3835 = vrot.lane.b32.xlu0 %v3635, 111
        %v3836 = vpop.permute.xlu0 %3835
        %v3837 = vsel %vm618, %v3834, %v3836
        %v3838 = vsel %vm618, %v3836, %v3834
        %v3839 = vld [vmem:[%s621] ss:$8 sm:$0x3]
        %v3841 = vlaneseq
        %v3842 = vshrl.u32 %v3841, 7
        %v3843 = vsub.s32 0, %v3842
        %v3844 = vrot.slane %v3839, %v3843
        %v3845 = vlaneseq
        %v3846 = vshrl.u32 %v3845, 7
        %v3847 = vsub.s32 1, %v3846
        %v3848 = vrot.slane %v3839, %v3847
        %v3851 = vmul.f32 %v3837, %v3844
        %v3852 = vmul.f32 %v3838, %v3848
        %3853 = vst [vmem:[#allocation2 + $0x40] sm:$0xf] %v3851
        %3854 = vst [vmem:[#allocation2 + $0x48] sm:$0xf] %v3852
        %v3855 = vld [vmem:[%s3] sm:$0xf]
        %v3856 = vld [vmem:[%s3 + $0x4] sm:$0xf]
        %v3857 = vld [vmem:[%s3 + $0x8] sm:$0xf]
        %v3858 = vld [vmem:[%s3 + $0xc] sm:$0xf]
        %v3859 = vld [vmem:[#allocation2] sm:$0xff]
        %v3860 = vld [vmem:[#allocation2 + $0x8] sm:$0xff]
        %v3861 = vld [vmem:[#allocation2 + $0x10] sm:$0xff]
        %v3862 = vld [vmem:[#allocation2 + $0x18] sm:$0xff]
        %v3863 = vld [vmem:[#allocation2 + $0x20] sm:$0xff]
        %v3864 = vld [vmem:[#allocation2 + $0x28] sm:$0xff]
        %v3865 = vld [vmem:[#allocation2 + $0x30] sm:$0xff]
        %v3866 = vld [vmem:[#allocation2 + $0x38] sm:$0xff]
        %v3867 = vld [vmem:[#allocation2 + $0x40] sm:$0xf]
        %v3868 = vld [vmem:[#allocation2 + $0x48] sm:$0xf]
        %v3869 = vpack.c.bf16 %v3861, %v3859
        %v3870 = vpack.c.bf16 %v3862, %v3860
        %v3871 = vpack.c.bf16 %v3865, %v3863
        %v3872 = vpack.c.bf16 %v3866, %v3864
        %v3873 = vpack.c.bf16 %v3867, %v3867
        %v3874 = vpack.c.bf16 %v3868, %v3868
        %s3875 = scalar_lea.vmem %s4, 96
        %v3876 = vld [vmem:[%s3875] sm:$0xff]
        %v3877 = vld [vmem:[%s3875 + $0x8] sm:$0xff]
        %v3878 = vld [vmem:[%s3875 + $0x10] sm:$0xff]
        %v3879 = vld [vmem:[%s3875 + $0x18] sm:$0xff]
        %3881 = vset.pattern.permute.xlu0 0
        %3882 = vperm.xlu0 %3881, %v3876
        %v3883 = vpop.permute.xlu0 %3882
        %3886 = vset.pattern.permute.xlu0 0
        %3887 = vperm.xlu0 %3886, %v3877
        %v3888 = vpop.permute.xlu0 %3887
        %3891 = vset.pattern.permute.xlu0 0
        %3892 = vperm.xlu0 %3891, %v3878
        %v3893 = vpop.permute.xlu0 %3892
        %3896 = vset.pattern.permute.xlu0 0
        %3897 = vperm.xlu0 %3896, %v3879
        %v3898 = vpop.permute.xlu0 %3897
        %v3904 = vunpack.c.l.b16 %v3855
        %v3905 = vunpack.c.l.b16 %v3856
        %v3906 = vunpack.c.l.b16 %v3857
        %v3907 = vunpack.c.l.b16 %v3858
        %v3908 = vpack.c.b16 %v3905, %v3904
        %v3909 = vpack.c.b16 %v3907, %v3906
        %v3911 = vsel %vm692, %v3908, 0
        %v3914 = vsel %vm692, %v3909, 0
        %v3917 = vsel %vm699, %v3873, 0
        %v3920 = vsel %vm699, %v3874, 0
        %3922 = vmatprep.subr.bf16.mxu0 %v3870
        %3923 = vmatpush1.bf16.msra.mxu0 %v3869
        %3924 = vmatprep.subr.bf16.mxu0 %v3872
        %3925 = vmatpush1.bf16.msra.mxu0 %v3871
        %3926 = vmatprep.subr.bf16.mxu0 %v3920
        %3927 = vmatpush1.bf16.msra.mxu0 %v3917
        %3928 = vmatprep.subr.bf16.mxu0 0
        %3929 = vmatpush1.bf16.msra.mxu0 0
        %3930 = vmatprep.subr.bf16.mxu0 0
        %3931 = vmatpush1.bf16.msra.mxu0 0
        %3932 = vmatprep.subr.bf16.mxu0 0
        %3933 = vmatpush1.bf16.msra.mxu0 0
        %3934 = vmatprep.subr.bf16.mxu0 0
        %3935 = vmatpush1.bf16.msra.mxu0 0
        %3936 = vmatprep.subr.bf16.mxu0 0
        %3937 = vmatpush1.bf16.msra.mxu0 0
        %3938 = vmatprep.subr.bf16.mxu0 0
        %3939 = vmatpush1.bf16.msra.mxu0 0
        %3940 = vmatprep.subr.bf16.mxu0 0
        %3941 = vmatpush1.bf16.msra.mxu0 0
        %3942 = vmatprep.subr.bf16.mxu0 0
        %3943 = vmatpush1.bf16.msra.mxu0 0
        %3944 = vmatprep.subr.bf16.mxu0 0
        %3945 = vmatpush1.bf16.msra.mxu0 0
        %3946 = vmatprep.subr.bf16.mxu0 0
        %3947 = vmatpush1.bf16.msra.mxu0 0
        %3948 = vmatprep.subr.bf16.mxu0 0
        %3949 = vmatpush1.bf16.msra.mxu0 0
        %3950 = vmatprep.subr.bf16.mxu0 0
        %3951 = vmatpush1.bf16.msra.mxu0 0
        %3952 = vmatprep.subr.bf16.mxu0 0
        %3953 = vmatpush1.bf16.msra.mxu0 0
        %3954 = vmatprep.mubr.bf16.mxu0 0
        %3955 = vmatmul.mubr.bf16.gmra.mrb[0].mxu0 %v3911
        %v3956 = vpop.f32.mrb[0].mxu0
        %v3957 = vadd.f32 %v3883, %v3956
        %v3958 = vpop.f32.mrb[0].mxu0
        %v3959 = vadd.f32 %v3883, %v3958
        %v3960 = vpop.f32.mrb[0].mxu0
        %v3961 = vadd.f32 %v3888, %v3960
        %v3962 = vpop.f32.mrb[0].mxu0
        %v3963 = vadd.f32 %v3888, %v3962
        %3964 = vmatprep.mubr.bf16.mxu0 0
        %3965 = vmatmul.mubr.bf16.gmra.mrb[0].mxu0 %v3914
        %v3966 = vpop.f32.mrb[0].mxu0
        %v3967 = vadd.f32 %v3893, %v3966
        %v3968 = vpop.f32.mrb[0].mxu0
        %v3969 = vadd.f32 %v3893, %v3968
        %v3970 = vpop.f32.mrb[0].mxu0
        %v3971 = vadd.f32 %v3898, %v3970
        %v3972 = vpop.f32.mrb[0].mxu0
        %v3973 = vadd.f32 %v3898, %v3972
        %3974 = vdwg.mxu0
        %v3975 = vxor.u32 %v3957, 2147483648
        %v3976 = vxor.u32 %v3959, 2147483648
        %v3977 = vxor.u32 %v3961, 2147483648
        %v3978 = vxor.u32 %v3963, 2147483648
        %v3979 = vxor.u32 %v3967, 2147483648
        %v3980 = vxor.u32 %v3969, 2147483648
        %v3981 = vxor.u32 %v3971, 2147483648
        %v3982 = vxor.u32 %v3973, 2147483648
        %v3983 = vmul.f32 %v3975, 1.442695
        %v3984 = vpow.pop %v3983
        %v3985 = vmul.f32 %v3976, 1.442695
        %v3986 = vpow.pop %v3985
        %v3987 = vmul.f32 %v3977, 1.442695
        %v3988 = vpow.pop %v3987
        %v3989 = vmul.f32 %v3978, 1.442695
        %v3990 = vpow.pop %v3989
        %v3991 = vmul.f32 %v3979, 1.442695
        %v3992 = vpow.pop %v3991
        %v3993 = vmul.f32 %v3980, 1.442695
        %v3994 = vpow.pop %v3993
        %v3995 = vmul.f32 %v3981, 1.442695
        %v3996 = vpow.pop %v3995
        %v3997 = vmul.f32 %v3982, 1.442695
        %v3998 = vpow.pop %v3997
        %v3999 = vadd.f32 %v3984, 1.0
        %v4000 = vadd.f32 %v3986, 1.0
        %v4001 = vadd.f32 %v3988, 1.0
        %v4002 = vadd.f32 %v3990, 1.0
        %v4003 = vadd.f32 %v3992, 1.0
        %v4004 = vadd.f32 %v3994, 1.0
        %v4005 = vadd.f32 %v3996, 1.0
        %v4006 = vadd.f32 %v3998, 1.0
        %v4007 = vrcp.pop %v3999
        %v4008 = vmul.f32 1.0, %v4007
        %v4009 = vrcp.pop %v4000
        %v4010 = vmul.f32 1.0, %v4009
        %v4011 = vrcp.pop %v4001
        %v4012 = vmul.f32 1.0, %v4011
        %v4013 = vrcp.pop %v4002
        %v4014 = vmul.f32 1.0, %v4013
        %v4015 = vrcp.pop %v4003
        %v4016 = vmul.f32 1.0, %v4015
        %v4017 = vrcp.pop %v4004
        %v4018 = vmul.f32 1.0, %v4017
        %v4019 = vrcp.pop %v4005
        %v4020 = vmul.f32 1.0, %v4019
        %v4021 = vrcp.pop %v4006
        %v4022 = vmul.f32 1.0, %v4021
        %v4023 = vmul.f32 %v3957, %v4008
        %v4024 = vmul.f32 %v3959, %v4010
        %v4025 = vmul.f32 %v3961, %v4012
        %v4026 = vmul.f32 %v3963, %v4014
        %v4027 = vmul.f32 %v3967, %v4016
        %v4028 = vmul.f32 %v3969, %v4018
        %v4029 = vmul.f32 %v3971, %v4020
        %v4030 = vmul.f32 %v3973, %v4022
        %4031 = vrot.lane.b32.xlu0 %v4023, 17
        %v4032 = vpop.permute.xlu0 %4031
        %4033 = vrot.lane.b32.xlu0 %v4025, 17
        %v4034 = vpop.permute.xlu0 %4033
        %4035 = vrot.lane.b32.xlu0 %v4027, 17
        %v4036 = vpop.permute.xlu0 %4035
        %4037 = vrot.lane.b32.xlu0 %v4029, 17
        %v4038 = vpop.permute.xlu0 %4037
        %4039 = vrot.lane.b32.xlu0 %v4024, 17
        %v4040 = vpop.permute.xlu0 %4039
        %4041 = vrot.lane.b32.xlu0 %v4026, 17
        %v4042 = vpop.permute.xlu0 %4041
        %4043 = vrot.lane.b32.xlu0 %v4028, 17
        %v4044 = vpop.permute.xlu0 %4043
        %4045 = vrot.lane.b32.xlu0 %v4030, 17
        %v4046 = vpop.permute.xlu0 %4045
        %v4047 = vsel %vm408, %v4032, %v4040
        %v4048 = vsel %vm408, %v4034, %v4042
        %v4049 = vsel %vm408, %v4036, %v4044
        %v4050 = vsel %vm408, %v4038, %v4046
        %v4051 = vsel %vm408, %v4040, %v4032
        %v4052 = vsel %vm408, %v4042, %v4034
        %v4053 = vsel %vm408, %v4044, %v4036
        %v4054 = vsel %vm408, %v4046, %v4038
        %v4055 = vld [vmem:[%s7] ss:$8 sm:$0x3]
        %v4057 = vlaneseq
        %v4058 = vshrl.u32 %v4057, 7
        %v4059 = vsub.s32 0, %v4058
        %v4060 = vrot.slane %v4055, %v4059
        %v4061 = vlaneseq
        %v4062 = vshrl.u32 %v4061, 7
        %v4063 = vsub.s32 1, %v4062
        %v4064 = vrot.slane %v4055, %v4063
        %v4067 = vmul.f32 %v4051, %v4060
        %v4068 = vmul.f32 %v4047, %v4064
        %v4069 = vmul.f32 %v4052, %v4060
        %v4070 = vmul.f32 %v4048, %v4064
        %v4071 = vmul.f32 %v4053, %v4060
        %v4072 = vmul.f32 %v4049, %v4064
        %v4073 = vmul.f32 %v4054, %v4060
        %v4074 = vmul.f32 %v4050, %v4064
        %4075 = vst [vmem:[#allocation3] sm:$0xff] %v4067
        %4076 = vst [vmem:[#allocation3 + $0x8] sm:$0xff] %v4068
        %4077 = vst [vmem:[#allocation3 + $0x10] sm:$0xff] %v4069
        %4078 = vst [vmem:[#allocation3 + $0x18] sm:$0xff] %v4070
        %4079 = vst [vmem:[#allocation3 + $0x20] sm:$0xff] %v4071
        %4080 = vst [vmem:[#allocation3 + $0x28] sm:$0xff] %v4072
        %4081 = vst [vmem:[#allocation3 + $0x30] sm:$0xff] %v4073
        %4082 = vst [vmem:[#allocation3 + $0x38] sm:$0xff] %v4074
        %4083 = vrot.lane.b32.xlu0 %v4023, 16
        %v4084 = vpop.permute.xlu0 %4083
        %4085 = vrot.lane.b32.xlu0 %v4025, 16
        %v4086 = vpop.permute.xlu0 %4085
        %4087 = vrot.lane.b32.xlu0 %v4027, 16
        %v4088 = vpop.permute.xlu0 %4087
        %4089 = vrot.lane.b32.xlu0 %v4029, 16
        %v4090 = vpop.permute.xlu0 %4089
        %4091 = vrot.lane.b32.xlu0 %v4024, 16
        %v4092 = vpop.permute.xlu0 %4091
        %4093 = vrot.lane.b32.xlu0 %v4026, 16
        %v4094 = vpop.permute.xlu0 %4093
        %4095 = vrot.lane.b32.xlu0 %v4028, 16
        %v4096 = vpop.permute.xlu0 %4095
        %4097 = vrot.lane.b32.xlu0 %v4030, 16
        %v4098 = vpop.permute.xlu0 %4097
        %v4099 = vsel %vm431, %v4084, %v4092
        %v4100 = vsel %vm431, %v4086, %v4094
        %v4101 = vsel %vm431, %v4088, %v4096
        %v4102 = vsel %vm431, %v4090, %v4098
        %v4103 = vsel %vm431, %v4092, %v4084
        %v4104 = vsel %vm431, %v4094, %v4086
        %v4105 = vsel %vm431, %v4096, %v4088
        %v4106 = vsel %vm431, %v4098, %v4090
        %v4107 = vld [vmem:[%s434] ss:$8 sm:$0x3]
        %v4109 = vlaneseq
        %v4110 = vshrl.u32 %v4109, 7
        %v4111 = vsub.s32 0, %v4110
        %v4112 = vrot.slane %v4107, %v4111
        %v4113 = vlaneseq
        %v4114 = vshrl.u32 %v4113, 7
        %v4115 = vsub.s32 1, %v4114
        %v4116 = vrot.slane %v4107, %v4115
        %v4119 = vmul.f32 %v4103, %v4112
        %v4120 = vmul.f32 %v4099, %v4116
        %v4121 = vmul.f32 %v4104, %v4112
        %v4122 = vmul.f32 %v4100, %v4116
        %v4123 = vmul.f32 %v4105, %v4112
        %v4124 = vmul.f32 %v4101, %v4116
        %v4125 = vmul.f32 %v4106, %v4112
        %v4126 = vmul.f32 %v4102, %v4116
        %4127 = vst [vmem:[#allocation3 + $0x40] sm:$0xff] %v4119
        %4128 = vst [vmem:[#allocation3 + $0x48] sm:$0xff] %v4120
        %4129 = vst [vmem:[#allocation3 + $0x50] sm:$0xff] %v4121
        %4130 = vst [vmem:[#allocation3 + $0x58] sm:$0xff] %v4122
        %4131 = vst [vmem:[#allocation3 + $0x60] sm:$0xff] %v4123
        %4132 = vst [vmem:[#allocation3 + $0x68] sm:$0xff] %v4124
        %4133 = vst [vmem:[#allocation3 + $0x70] sm:$0xff] %v4125
        %4134 = vst [vmem:[#allocation3 + $0x78] sm:$0xff] %v4126
        %4135 = vrot.lane.b32.xlu0 %v4023, 15
        %v4136 = vpop.permute.xlu0 %4135
        %4137 = vrot.lane.b32.xlu0 %v4025, 15
        %v4138 = vpop.permute.xlu0 %4137
        %4139 = vrot.lane.b32.xlu0 %v4027, 15
        %v4140 = vpop.permute.xlu0 %4139
        %4141 = vrot.lane.b32.xlu0 %v4029, 15
        %v4142 = vpop.permute.xlu0 %4141
        %4143 = vrot.lane.b32.xlu0 %v4024, 15
        %v4144 = vpop.permute.xlu0 %4143
        %4145 = vrot.lane.b32.xlu0 %v4026, 15
        %v4146 = vpop.permute.xlu0 %4145
        %4147 = vrot.lane.b32.xlu0 %v4028, 15
        %v4148 = vpop.permute.xlu0 %4147
        %4149 = vrot.lane.b32.xlu0 %v4030, 15
        %v4150 = vpop.permute.xlu0 %4149
        %v4151 = vsel %vm461, %v4136, %v4144
        %v4152 = vsel %vm461, %v4138, %v4146
        %v4153 = vsel %vm461, %v4140, %v4148
        %v4154 = vsel %vm461, %v4142, %v4150
        %v4155 = vsel %vm461, %v4144, %v4136
        %v4156 = vsel %vm461, %v4146, %v4138
        %v4157 = vsel %vm461, %v4148, %v4140
        %v4158 = vsel %vm461, %v4150, %v4142
        %v4159 = vld [vmem:[%s464] ss:$8 sm:$0x3]
        %v4161 = vlaneseq
        %v4162 = vshrl.u32 %v4161, 7
        %v4163 = vsub.s32 0, %v4162
        %v4164 = vrot.slane %v4159, %v4163
        %v4165 = vlaneseq
        %v4166 = vshrl.u32 %v4165, 7
        %v4167 = vsub.s32 1, %v4166
        %v4168 = vrot.slane %v4159, %v4167
        %v4171 = vmul.f32 %v4155, %v4164
        %v4172 = vmul.f32 %v4151, %v4168
        %v4173 = vmul.f32 %v4156, %v4164
        %v4174 = vmul.f32 %v4152, %v4168
        %v4175 = vmul.f32 %v4157, %v4164
        %v4176 = vmul.f32 %v4153, %v4168
        %v4177 = vmul.f32 %v4158, %v4164
        %v4178 = vmul.f32 %v4154, %v4168
        %4179 = vst [vmem:[#allocation3 + $0x80] sm:$0xff] %v4171
        %4180 = vst [vmem:[#allocation3 + $0x88] sm:$0xff] %v4172
        %4181 = vst [vmem:[#allocation3 + $0x90] sm:$0xff] %v4173
        %4182 = vst [vmem:[#allocation3 + $0x98] sm:$0xff] %v4174
        %4183 = vst [vmem:[#allocation3 + $0xa0] sm:$0xff] %v4175
        %4184 = vst [vmem:[#allocation3 + $0xa8] sm:$0xff] %v4176
        %4185 = vst [vmem:[#allocation3 + $0xb0] sm:$0xff] %v4177
        %4186 = vst [vmem:[#allocation3 + $0xb8] sm:$0xff] %v4178
        %4187 = vrot.lane.b32.xlu0 %v4023, 1
        %v4188 = vpop.permute.xlu0 %4187
        %4189 = vrot.lane.b32.xlu0 %v4025, 1
        %v4190 = vpop.permute.xlu0 %4189
        %4191 = vrot.lane.b32.xlu0 %v4027, 1
        %v4192 = vpop.permute.xlu0 %4191
        %4193 = vrot.lane.b32.xlu0 %v4029, 1
        %v4194 = vpop.permute.xlu0 %4193
        %4195 = vrot.lane.b32.xlu0 %v4024, 1
        %v4196 = vpop.permute.xlu0 %4195
        %4197 = vrot.lane.b32.xlu0 %v4026, 1
        %v4198 = vpop.permute.xlu0 %4197
        %4199 = vrot.lane.b32.xlu0 %v4028, 1
        %v4200 = vpop.permute.xlu0 %4199
        %4201 = vrot.lane.b32.xlu0 %v4030, 1
        %v4202 = vpop.permute.xlu0 %4201
        %v4203 = vsel %vm485, %v4188, %v4196
        %v4204 = vsel %vm485, %v4190, %v4198
        %v4205 = vsel %vm485, %v4192, %v4200
        %v4206 = vsel %vm485, %v4194, %v4202
        %v4207 = vsel %vm485, %v4196, %v4188
        %v4208 = vsel %vm485, %v4198, %v4190
        %v4209 = vsel %vm485, %v4200, %v4192
        %v4210 = vsel %vm485, %v4202, %v4194
        %v4211 = vld [vmem:[%s488] ss:$8 sm:$0x3]
        %v4213 = vlaneseq
        %v4214 = vshrl.u32 %v4213, 7
        %v4215 = vsub.s32 0, %v4214
        %v4216 = vrot.slane %v4211, %v4215
        %v4217 = vlaneseq
        %v4218 = vshrl.u32 %v4217, 7
        %v4219 = vsub.s32 1, %v4218
        %v4220 = vrot.slane %v4211, %v4219
        %v4223 = vmul.f32 %v4207, %v4216
        %v4224 = vmul.f32 %v4203, %v4220
        %v4225 = vmul.f32 %v4208, %v4216
        %v4226 = vmul.f32 %v4204, %v4220
        %v4227 = vmul.f32 %v4209, %v4216
        %v4228 = vmul.f32 %v4205, %v4220
        %v4229 = vmul.f32 %v4210, %v4216
        %v4230 = vmul.f32 %v4206, %v4220
        %4231 = vst [vmem:[#allocation3 + $0xc0] sm:$0xff] %v4223
        %4232 = vst [vmem:[#allocation3 + $0xc8] sm:$0xff] %v4224
        %4233 = vst [vmem:[#allocation3 + $0xd0] sm:$0xff] %v4225
        %4234 = vst [vmem:[#allocation3 + $0xd8] sm:$0xff] %v4226
        %4235 = vst [vmem:[#allocation3 + $0xe0] sm:$0xff] %v4227
        %4236 = vst [vmem:[#allocation3 + $0xe8] sm:$0xff] %v4228
        %4237 = vst [vmem:[#allocation3 + $0xf0] sm:$0xff] %v4229
        %4238 = vst [vmem:[#allocation3 + $0xf8] sm:$0xff] %v4230
        %v4239 = vld [vmem:[%s511] ss:$8 sm:$0x3]
        %v4241 = vlaneseq
        %v4242 = vshrl.u32 %v4241, 7
        %v4243 = vsub.s32 0, %v4242
        %v4244 = vrot.slane %v4239, %v4243
        %v4245 = vlaneseq
        %v4246 = vshrl.u32 %v4245, 7
        %v4247 = vsub.s32 1, %v4246
        %v4248 = vrot.slane %v4239, %v4247
        %v4251 = vmul.f32 %v4023, %v4244
        %v4252 = vmul.f32 %v4024, %v4248
        %v4253 = vmul.f32 %v4025, %v4244
        %v4254 = vmul.f32 %v4026, %v4248
        %v4255 = vmul.f32 %v4027, %v4244
        %v4256 = vmul.f32 %v4028, %v4248
        %v4257 = vmul.f32 %v4029, %v4244
        %v4258 = vmul.f32 %v4030, %v4248
        %4259 = vst [vmem:[#allocation3 + $0x100] sm:$0xff] %v4251
        %4260 = vst [vmem:[#allocation3 + $0x108] sm:$0xff] %v4252
        %4261 = vst [vmem:[#allocation3 + $0x110] sm:$0xff] %v4253
        %4262 = vst [vmem:[#allocation3 + $0x118] sm:$0xff] %v4254
        %4263 = vst [vmem:[#allocation3 + $0x120] sm:$0xff] %v4255
        %4264 = vst [vmem:[#allocation3 + $0x128] sm:$0xff] %v4256
        %4265 = vst [vmem:[#allocation3 + $0x130] sm:$0xff] %v4257
        %4266 = vst [vmem:[#allocation3 + $0x138] sm:$0xff] %v4258
        %4267 = vrot.lane.b32.xlu0 %v4023, 127
        %v4268 = vpop.permute.xlu0 %4267
        %4269 = vrot.lane.b32.xlu0 %v4025, 127
        %v4270 = vpop.permute.xlu0 %4269
        %4271 = vrot.lane.b32.xlu0 %v4027, 127
        %v4272 = vpop.permute.xlu0 %4271
        %4273 = vrot.lane.b32.xlu0 %v4029, 127
        %v4274 = vpop.permute.xlu0 %4273
        %4275 = vrot.lane.b32.xlu0 %v4024, 127
        %v4276 = vpop.permute.xlu0 %4275
        %4277 = vrot.lane.b32.xlu0 %v4026, 127
        %v4278 = vpop.permute.xlu0 %4277
        %4279 = vrot.lane.b32.xlu0 %v4028, 127
        %v4280 = vpop.permute.xlu0 %4279
        %4281 = vrot.lane.b32.xlu0 %v4030, 127
        %v4282 = vpop.permute.xlu0 %4281
        %v4283 = vsel %vm534, %v4268, %v4276
        %v4284 = vsel %vm534, %v4270, %v4278
        %v4285 = vsel %vm534, %v4272, %v4280
        %v4286 = vsel %vm534, %v4274, %v4282
        %v4287 = vsel %vm534, %v4276, %v4268
        %v4288 = vsel %vm534, %v4278, %v4270
        %v4289 = vsel %vm534, %v4280, %v4272
        %v4290 = vsel %vm534, %v4282, %v4274
        %v4291 = vld [vmem:[%s537] ss:$8 sm:$0x3]
        %v4293 = vlaneseq
        %v4294 = vshrl.u32 %v4293, 7
        %v4295 = vsub.s32 0, %v4294
        %v4296 = vrot.slane %v4291, %v4295
        %v4297 = vlaneseq
        %v4298 = vshrl.u32 %v4297, 7
        %v4299 = vsub.s32 1, %v4298
        %v4300 = vrot.slane %v4291, %v4299
        %v4303 = vmul.f32 %v4283, %v4296
        %v4304 = vmul.f32 %v4287, %v4300
        %v4305 = vmul.f32 %v4284, %v4296
        %v4306 = vmul.f32 %v4288, %v4300
        %v4307 = vmul.f32 %v4285, %v4296
        %v4308 = vmul.f32 %v4289, %v4300
        %v4309 = vmul.f32 %v4286, %v4296
        %v4310 = vmul.f32 %v4290, %v4300
        %4311 = vst [vmem:[#allocation3 + $0x140] sm:$0xff] %v4303
        %4312 = vst [vmem:[#allocation3 + $0x148] sm:$0xff] %v4304
        %4313 = vst [vmem:[#allocation3 + $0x150] sm:$0xff] %v4305
        %4314 = vst [vmem:[#allocation3 + $0x158] sm:$0xff] %v4306
        %4315 = vst [vmem:[#allocation3 + $0x160] sm:$0xff] %v4307
        %4316 = vst [vmem:[#allocation3 + $0x168] sm:$0xff] %v4308
        %4317 = vst [vmem:[#allocation3 + $0x170] sm:$0xff] %v4309
        %4318 = vst [vmem:[#allocation3 + $0x178] sm:$0xff] %v4310
        %4319 = vrot.lane.b32.xlu0 %v4023, 113
        %v4320 = vpop.permute.xlu0 %4319
        %4321 = vrot.lane.b32.xlu0 %v4025, 113
        %v4322 = vpop.permute.xlu0 %4321
        %4323 = vrot.lane.b32.xlu0 %v4027, 113
        %v4324 = vpop.permute.xlu0 %4323
        %4325 = vrot.lane.b32.xlu0 %v4029, 113
        %v4326 = vpop.permute.xlu0 %4325
        %4327 = vrot.lane.b32.xlu0 %v4024, 113
        %v4328 = vpop.permute.xlu0 %4327
        %4329 = vrot.lane.b32.xlu0 %v4026, 113
        %v4330 = vpop.permute.xlu0 %4329
        %4331 = vrot.lane.b32.xlu0 %v4028, 113
        %v4332 = vpop.permute.xlu0 %4331
        %4333 = vrot.lane.b32.xlu0 %v4030, 113
        %v4334 = vpop.permute.xlu0 %4333
        %v4335 = vsel %vm564, %v4320, %v4328
        %v4336 = vsel %vm564, %v4322, %v4330
        %v4337 = vsel %vm564, %v4324, %v4332
        %v4338 = vsel %vm564, %v4326, %v4334
        %v4339 = vsel %vm564, %v4328, %v4320
        %v4340 = vsel %vm564, %v4330, %v4322
        %v4341 = vsel %vm564, %v4332, %v4324
        %v4342 = vsel %vm564, %v4334, %v4326
        %v4343 = vld [vmem:[%s567] ss:$8 sm:$0x3]
        %v4345 = vlaneseq
        %v4346 = vshrl.u32 %v4345, 7
        %v4347 = vsub.s32 0, %v4346
        %v4348 = vrot.slane %v4343, %v4347
        %v4349 = vlaneseq
        %v4350 = vshrl.u32 %v4349, 7
        %v4351 = vsub.s32 1, %v4350
        %v4352 = vrot.slane %v4343, %v4351
        %v4355 = vmul.f32 %v4335, %v4348
        %v4356 = vmul.f32 %v4339, %v4352
        %v4357 = vmul.f32 %v4336, %v4348
        %v4358 = vmul.f32 %v4340, %v4352
        %v4359 = vmul.f32 %v4337, %v4348
        %v4360 = vmul.f32 %v4341, %v4352
        %v4361 = vmul.f32 %v4338, %v4348
        %v4362 = vmul.f32 %v4342, %v4352
        %4363 = vst [vmem:[#allocation3 + $0x180] sm:$0xff] %v4355
        %4364 = vst [vmem:[#allocation3 + $0x188] sm:$0xff] %v4356
        %4365 = vst [vmem:[#allocation3 + $0x190] sm:$0xff] %v4357
        %4366 = vst [vmem:[#allocation3 + $0x198] sm:$0xff] %v4358
        %4367 = vst [vmem:[#allocation3 + $0x1a0] sm:$0xff] %v4359
        %4368 = vst [vmem:[#allocation3 + $0x1a8] sm:$0xff] %v4360
        %4369 = vst [vmem:[#allocation3 + $0x1b0] sm:$0xff] %v4361
        %4370 = vst [vmem:[#allocation3 + $0x1b8] sm:$0xff] %v4362
        %4371 = vrot.lane.b32.xlu0 %v4023, 112
        %v4372 = vpop.permute.xlu0 %4371
        %4373 = vrot.lane.b32.xlu0 %v4025, 112
        %v4374 = vpop.permute.xlu0 %4373
        %4375 = vrot.lane.b32.xlu0 %v4027, 112
        %v4376 = vpop.permute.xlu0 %4375
        %4377 = vrot.lane.b32.xlu0 %v4029, 112
        %v4378 = vpop.permute.xlu0 %4377
        %4379 = vrot.lane.b32.xlu0 %v4024, 112
        %v4380 = vpop.permute.xlu0 %4379
        %4381 = vrot.lane.b32.xlu0 %v4026, 112
        %v4382 = vpop.permute.xlu0 %4381
        %4383 = vrot.lane.b32.xlu0 %v4028, 112
        %v4384 = vpop.permute.xlu0 %4383
        %4385 = vrot.lane.b32.xlu0 %v4030, 112
        %v4386 = vpop.permute.xlu0 %4385
        %v4387 = vsel %vm588, %v4372, %v4380
        %v4388 = vsel %vm588, %v4374, %v4382
        %v4389 = vsel %vm588, %v4376, %v4384
        %v4390 = vsel %vm588, %v4378, %v4386
        %v4391 = vsel %vm588, %v4380, %v4372
        %v4392 = vsel %vm588, %v4382, %v4374
        %v4393 = vsel %vm588, %v4384, %v4376
        %v4394 = vsel %vm588, %v4386, %v4378
        %v4395 = vld [vmem:[%s591] ss:$8 sm:$0x3]
        %v4397 = vlaneseq
        %v4398 = vshrl.u32 %v4397, 7
        %v4399 = vsub.s32 0, %v4398
        %v4400 = vrot.slane %v4395, %v4399
        %v4401 = vlaneseq
        %v4402 = vshrl.u32 %v4401, 7
        %v4403 = vsub.s32 1, %v4402
        %v4404 = vrot.slane %v4395, %v4403
        %v4407 = vmul.f32 %v4387, %v4400
        %v4408 = vmul.f32 %v4391, %v4404
        %v4409 = vmul.f32 %v4388, %v4400
        %v4410 = vmul.f32 %v4392, %v4404
        %v4411 = vmul.f32 %v4389, %v4400
        %v4412 = vmul.f32 %v4393, %v4404
        %v4413 = vmul.f32 %v4390, %v4400
        %v4414 = vmul.f32 %v4394, %v4404
        %4415 = vst [vmem:[#allocation3 + $0x1c0] sm:$0xff] %v4407
        %4416 = vst [vmem:[#allocation3 + $0x1c8] sm:$0xff] %v4408
        %4417 = vst [vmem:[#allocation3 + $0x1d0] sm:$0xff] %v4409
        %4418 = vst [vmem:[#allocation3 + $0x1d8] sm:$0xff] %v4410
        %4419 = vst [vmem:[#allocation3 + $0x1e0] sm:$0xff] %v4411
        %4420 = vst [vmem:[#allocation3 + $0x1e8] sm:$0xff] %v4412
        %4421 = vst [vmem:[#allocation3 + $0x1f0] sm:$0xff] %v4413
        %4422 = vst [vmem:[#allocation3 + $0x1f8] sm:$0xff] %v4414
        %4423 = vrot.lane.b32.xlu0 %v4023, 111
        %v4424 = vpop.permute.xlu0 %4423
        %4425 = vrot.lane.b32.xlu0 %v4025, 111
        %v4426 = vpop.permute.xlu0 %4425
        %4427 = vrot.lane.b32.xlu0 %v4027, 111
        %v4428 = vpop.permute.xlu0 %4427
        %4429 = vrot.lane.b32.xlu0 %v4029, 111
        %v4430 = vpop.permute.xlu0 %4429
        %4431 = vrot.lane.b32.xlu0 %v4024, 111
        %v4432 = vpop.permute.xlu0 %4431
        %4433 = vrot.lane.b32.xlu0 %v4026, 111
        %v4434 = vpop.permute.xlu0 %4433
        %4435 = vrot.lane.b32.xlu0 %v4028, 111
        %v4436 = vpop.permute.xlu0 %4435
        %4437 = vrot.lane.b32.xlu0 %v4030, 111
        %v4438 = vpop.permute.xlu0 %4437
        %v4439 = vsel %vm618, %v4424, %v4432
        %v4440 = vsel %vm618, %v4426, %v4434
        %v4441 = vsel %vm618, %v4428, %v4436
        %v4442 = vsel %vm618, %v4430, %v4438
        %v4443 = vsel %vm618, %v4432, %v4424
        %v4444 = vsel %vm618, %v4434, %v4426
        %v4445 = vsel %vm618, %v4436, %v4428
        %v4446 = vsel %vm618, %v4438, %v4430
        %v4447 = vld [vmem:[%s621] ss:$8 sm:$0x3]
        %v4449 = vlaneseq
        %v4450 = vshrl.u32 %v4449, 7
        %v4451 = vsub.s32 0, %v4450
        %v4452 = vrot.slane %v4447, %v4451
        %v4453 = vlaneseq
        %v4454 = vshrl.u32 %v4453, 7
        %v4455 = vsub.s32 1, %v4454
        %v4456 = vrot.slane %v4447, %v4455
        %v4459 = vmul.f32 %v4439, %v4452
        %v4460 = vmul.f32 %v4443, %v4456
        %v4461 = vmul.f32 %v4440, %v4452
        %v4462 = vmul.f32 %v4444, %v4456
        %v4463 = vmul.f32 %v4441, %v4452
        %v4464 = vmul.f32 %v4445, %v4456
        %v4465 = vmul.f32 %v4442, %v4452
        %v4466 = vmul.f32 %v4446, %v4456
        %4467 = vst [vmem:[#allocation3 + $0x200] sm:$0xff] %v4459
        %4468 = vst [vmem:[#allocation3 + $0x208] sm:$0xff] %v4460
        %4469 = vst [vmem:[#allocation3 + $0x210] sm:$0xff] %v4461
        %4470 = vst [vmem:[#allocation3 + $0x218] sm:$0xff] %v4462
        %4471 = vst [vmem:[#allocation3 + $0x220] sm:$0xff] %v4463
        %4472 = vst [vmem:[#allocation3 + $0x228] sm:$0xff] %v4464
        %4473 = vst [vmem:[#allocation3 + $0x230] sm:$0xff] %v4465
        %4474 = vst [vmem:[#allocation3 + $0x238] sm:$0xff] %v4466
        %v4475 = vld [vmem:[%s5] sm:$0x3f]
        %v4476 = vld [vmem:[#allocation3] sm:$0xff]
        %v4477 = vld [vmem:[#allocation3 + $0x8] sm:$0xff]
        %v4478 = vld [vmem:[#allocation3 + $0x10] sm:$0xff]
        %v4479 = vld [vmem:[#allocation3 + $0x18] sm:$0xff]
        %v4480 = vld [vmem:[#allocation3 + $0x20] sm:$0xff]
        %v4481 = vld [vmem:[#allocation3 + $0x28] sm:$0xff]
        %v4482 = vld [vmem:[#allocation3 + $0x30] sm:$0xff]
        %v4483 = vld [vmem:[#allocation3 + $0x38] sm:$0xff]
        %v4484 = vld [vmem:[#allocation3 + $0x40] sm:$0xff]
        %v4485 = vld [vmem:[#allocation3 + $0x48] sm:$0xff]
        %v4486 = vld [vmem:[#allocation3 + $0x50] sm:$0xff]
        %v4487 = vld [vmem:[#allocation3 + $0x58] sm:$0xff]
        %v4488 = vld [vmem:[#allocation3 + $0x60] sm:$0xff]
        %v4489 = vld [vmem:[#allocation3 + $0x68] sm:$0xff]
        %v4490 = vld [vmem:[#allocation3 + $0x70] sm:$0xff]
        %v4491 = vld [vmem:[#allocation3 + $0x78] sm:$0xff]
        %v4492 = vld [vmem:[#allocation3 + $0x80] sm:$0xff]
        %v4493 = vld [vmem:[#allocation3 + $0x88] sm:$0xff]
        %v4494 = vld [vmem:[#allocation3 + $0x90] sm:$0xff]
        %v4495 = vld [vmem:[#allocation3 + $0x98] sm:$0xff]
        %v4496 = vld [vmem:[#allocation3 + $0xa0] sm:$0xff]
        %v4497 = vld [vmem:[#allocation3 + $0xa8] sm:$0xff]
        %v4498 = vld [vmem:[#allocation3 + $0xb0] sm:$0xff]
        %v4499 = vld [vmem:[#allocation3 + $0xb8] sm:$0xff]
        %v4500 = vld [vmem:[#allocation3 + $0xc0] sm:$0xff]
        %v4501 = vld [vmem:[#allocation3 + $0xc8] sm:$0xff]
        %v4502 = vld [vmem:[#allocation3 + $0xd0] sm:$0xff]
        %v4503 = vld [vmem:[#allocation3 + $0xd8] sm:$0xff]
        %v4504 = vld [vmem:[#allocation3 + $0xe0] sm:$0xff]
        %v4505 = vld [vmem:[#allocation3 + $0xe8] sm:$0xff]
        %v4506 = vld [vmem:[#allocation3 + $0xf0] sm:$0xff]
        %v4507 = vld [vmem:[#allocation3 + $0xf8] sm:$0xff]
        %v4508 = vld [vmem:[#allocation3 + $0x100] sm:$0xff]
        %v4509 = vld [vmem:[#allocation3 + $0x108] sm:$0xff]
        %v4510 = vld [vmem:[#allocation3 + $0x110] sm:$0xff]
        %v4511 = vld [vmem:[#allocation3 + $0x118] sm:$0xff]
        %v4512 = vld [vmem:[#allocation3 + $0x120] sm:$0xff]
        %v4513 = vld [vmem:[#allocation3 + $0x128] sm:$0xff]
        %v4514 = vld [vmem:[#allocation3 + $0x130] sm:$0xff]
        %v4515 = vld [vmem:[#allocation3 + $0x138] sm:$0xff]
        %v4516 = vld [vmem:[#allocation3 + $0x140] sm:$0xff]
        %v4517 = vld [vmem:[#allocation3 + $0x148] sm:$0xff]
        %v4518 = vld [vmem:[#allocation3 + $0x150] sm:$0xff]
        %v4519 = vld [vmem:[#allocation3 + $0x158] sm:$0xff]
        %v4520 = vld [vmem:[#allocation3 + $0x160] sm:$0xff]
        %v4521 = vld [vmem:[#allocation3 + $0x168] sm:$0xff]
        %v4522 = vld [vmem:[#allocation3 + $0x170] sm:$0xff]
        %v4523 = vld [vmem:[#allocation3 + $0x178] sm:$0xff]
        %v4524 = vld [vmem:[#allocation3 + $0x180] sm:$0xff]
        %v4525 = vld [vmem:[#allocation3 + $0x188] sm:$0xff]
        %v4526 = vld [vmem:[#allocation3 + $0x190] sm:$0xff]
        %v4527 = vld [vmem:[#allocation3 + $0x198] sm:$0xff]
        %v4528 = vld [vmem:[#allocation3 + $0x1a0] sm:$0xff]
        %v4529 = vld [vmem:[#allocation3 + $0x1a8] sm:$0xff]
        %v4530 = vld [vmem:[#allocation3 + $0x1b0] sm:$0xff]
        %v4531 = vld [vmem:[#allocation3 + $0x1b8] sm:$0xff]
        %v4532 = vld [vmem:[#allocation3 + $0x1c0] sm:$0xff]
        %v4533 = vld [vmem:[#allocation3 + $0x1c8] sm:$0xff]
        %v4534 = vld [vmem:[#allocation3 + $0x1d0] sm:$0xff]
        %v4535 = vld [vmem:[#allocation3 + $0x1d8] sm:$0xff]
        %v4536 = vld [vmem:[#allocation3 + $0x1e0] sm:$0xff]
        %v4537 = vld [vmem:[#allocation3 + $0x1e8] sm:$0xff]
        %v4538 = vld [vmem:[#allocation3 + $0x1f0] sm:$0xff]
        %v4539 = vld [vmem:[#allocation3 + $0x1f8] sm:$0xff]
        %v4540 = vld [vmem:[#allocation3 + $0x200] sm:$0xff]
        %v4541 = vld [vmem:[#allocation3 + $0x208] sm:$0xff]
        %v4542 = vld [vmem:[#allocation3 + $0x210] sm:$0xff]
        %v4543 = vld [vmem:[#allocation3 + $0x218] sm:$0xff]
        %v4544 = vld [vmem:[#allocation3 + $0x220] sm:$0xff]
        %v4545 = vld [vmem:[#allocation3 + $0x228] sm:$0xff]
        %v4546 = vld [vmem:[#allocation3 + $0x230] sm:$0xff]
        %v4547 = vld [vmem:[#allocation3 + $0x238] sm:$0xff]
        %v4548 = vpack.c.bf16 %v4478, %v4476
        %v4549 = vpack.c.bf16 %v4479, %v4477
        %v4550 = vpack.c.bf16 %v4482, %v4480
        %v4551 = vpack.c.bf16 %v4483, %v4481
        %v4552 = vpack.c.bf16 %v4486, %v4484
        %v4553 = vpack.c.bf16 %v4487, %v4485
        %v4554 = vpack.c.bf16 %v4490, %v4488
        %v4555 = vpack.c.bf16 %v4491, %v4489
        %v4556 = vpack.c.bf16 %v4494, %v4492
        %v4557 = vpack.c.bf16 %v4495, %v4493
        %v4558 = vpack.c.bf16 %v4498, %v4496
        %v4559 = vpack.c.bf16 %v4499, %v4497
        %v4560 = vpack.c.bf16 %v4502, %v4500
        %v4561 = vpack.c.bf16 %v4503, %v4501
        %v4562 = vpack.c.bf16 %v4506, %v4504
        %v4563 = vpack.c.bf16 %v4507, %v4505
        %v4564 = vpack.c.bf16 %v4510, %v4508
        %v4565 = vpack.c.bf16 %v4511, %v4509
        %v4566 = vpack.c.bf16 %v4514, %v4512
        %v4567 = vpack.c.bf16 %v4515, %v4513
        %v4568 = vpack.c.bf16 %v4518, %v4516
        %v4569 = vpack.c.bf16 %v4519, %v4517
        %v4570 = vpack.c.bf16 %v4522, %v4520
        %v4571 = vpack.c.bf16 %v4523, %v4521
        %v4572 = vpack.c.bf16 %v4526, %v4524
        %v4573 = vpack.c.bf16 %v4527, %v4525
        %v4574 = vpack.c.bf16 %v4530, %v4528
        %v4575 = vpack.c.bf16 %v4531, %v4529
        %v4576 = vpack.c.bf16 %v4534, %v4532
        %v4577 = vpack.c.bf16 %v4535, %v4533
        %v4578 = vpack.c.bf16 %v4538, %v4536
        %v4579 = vpack.c.bf16 %v4539, %v4537
        %v4580 = vpack.c.bf16 %v4542, %v4540
        %v4581 = vpack.c.bf16 %v4543, %v4541
        %v4582 = vpack.c.bf16 %v4546, %v4544
        %v4583 = vpack.c.bf16 %v4547, %v4545
        %v4584 = vld [vmem:[%s6] sm:$0xf]
        %4586 = vset.pattern.permute.xlu0 0
        %4587 = vperm.xlu0 %4586, %v4584
        %v4588 = vpop.permute.xlu0 %4587
        %v4591 = vcombine.high %v4475, %v4475
        %v4593 = vunpack.c.l.s4 1983009808
        %v4594 = vunpack.c.0.s8 %v4593
        %v4595 = vlaneseq
        %v4596 = vshrl.u32 %v4595, 7
        %v4597 = vsub.s32 %v4594, %v4596
        %v4598 = vrot.slane %v4475, %v4597
        %v4600 = vunpack.c.l.s4 1983009808
        %v4601 = vunpack.c.0.s8 %v4600
        %v4602 = vlaneseq
        %v4603 = vshrl.u32 %v4602, 7
        %v4604 = vsub.s32 %v4601, %v4603
        %v4605 = vrot.slane %v4591, %v4604
        %v4606 = vcombine.high %v4598, %v4598
        %v4610 = vsel %vm1393, %v4605, 0
        %4612 = vmatprep.subr.bf16.mxu0 %v4549
        %4613 = vmatpush1.bf16.msra.mxu0 %v4548
        %4614 = vmatprep.subr.bf16.mxu0 %v4551
        %4615 = vmatpush1.bf16.msra.mxu0 %v4550
        %4616 = vmatprep.subr.bf16.mxu0 %v4553
        %4617 = vmatpush1.bf16.msra.mxu0 %v4552
        %4618 = vmatprep.subr.bf16.mxu0 %v4555
        %4619 = vmatpush1.bf16.msra.mxu0 %v4554
        %4620 = vmatprep.subr.bf16.mxu0 %v4557
        %4621 = vmatpush1.bf16.msra.mxu0 %v4556
        %4622 = vmatprep.subr.bf16.mxu0 %v4559
        %4623 = vmatpush1.bf16.msra.mxu0 %v4558
        %4624 = vmatprep.subr.bf16.mxu0 %v4561
        %4625 = vmatpush1.bf16.msra.mxu0 %v4560
        %4626 = vmatprep.subr.bf16.mxu0 %v4563
        %4627 = vmatpush1.bf16.msra.mxu0 %v4562
        %4628 = vmatprep.subr.bf16.mxu0 %v4565
        %4629 = vmatpush1.bf16.msra.mxu0 %v4564
        %4630 = vmatprep.subr.bf16.mxu0 %v4567
        %4631 = vmatpush1.bf16.msra.mxu0 %v4566
        %4632 = vmatprep.subr.bf16.mxu0 %v4569
        %4633 = vmatpush1.bf16.msra.mxu0 %v4568
        %4634 = vmatprep.subr.bf16.mxu0 %v4571
        %4635 = vmatpush1.bf16.msra.mxu0 %v4570
        %4636 = vmatprep.subr.bf16.mxu0 %v4573
        %4637 = vmatpush1.bf16.msra.mxu0 %v4572
        %4638 = vmatprep.subr.bf16.mxu0 %v4575
        %4639 = vmatpush1.bf16.msra.mxu0 %v4574
        %4640 = vmatprep.subr.bf16.mxu0 %v4577
        %4641 = vmatpush1.bf16.msra.mxu0 %v4576
        %4642 = vmatprep.subr.bf16.mxu0 %v4579
        %4643 = vmatpush1.bf16.msra.mxu0 %v4578
        %4644 = vmatprep.mubr.bf16.mxu0 %v4606
        %4645 = vmatmul.mubr.bf16.gmra.mrb[0].mxu0 %v4598
        %v4646 = vpop.f32.mrb[0].mxu0
        %v4647 = vadd.f32 %v4588, %v4646
        %v4648 = vpop.f32.mrb[0].mxu0
        %v4649 = vadd.f32 %v4588, %v4648
        %v4650 = vpop.f32.mrb[0].mxu0
        %v4651 = vpop.f32.mrb[0].mxu0
        %4652 = vdwg.mxu0
        %4653 = vmatprep.subr.bf16.mxu0 %v4581
        %4654 = vmatpush1.bf16.msra.mxu0 %v4580
        %4655 = vmatprep.subr.bf16.mxu0 %v4583
        %4656 = vmatpush1.bf16.msra.mxu0 %v4582
        %4657 = vmatprep.subr.bf16.mxu0 0
        %4658 = vmatpush1.bf16.msra.mxu0 0
        %4659 = vmatprep.subr.bf16.mxu0 0
        %4660 = vmatpush1.bf16.msra.mxu0 0
        %4661 = vmatprep.subr.bf16.mxu0 0
        %4662 = vmatpush1.bf16.msra.mxu0 0
        %4663 = vmatprep.subr.bf16.mxu0 0
        %4664 = vmatpush1.bf16.msra.mxu0 0
        %4665 = vmatprep.subr.bf16.mxu0 0
        %4666 = vmatpush1.bf16.msra.mxu0 0
        %4667 = vmatprep.subr.bf16.mxu0 0
        %4668 = vmatpush1.bf16.msra.mxu0 0
        %4669 = vmatprep.subr.bf16.mxu0 0
        %4670 = vmatpush1.bf16.msra.mxu0 0
        %4671 = vmatprep.subr.bf16.mxu0 0
        %4672 = vmatpush1.bf16.msra.mxu0 0
        %4673 = vmatprep.subr.bf16.mxu0 0
        %4674 = vmatpush1.bf16.msra.mxu0 0
        %4675 = vmatprep.subr.bf16.mxu0 0
        %4676 = vmatpush1.bf16.msra.mxu0 0
        %4677 = vmatprep.subr.bf16.mxu0 0
        %4678 = vmatpush1.bf16.msra.mxu0 0
        %4679 = vmatprep.subr.bf16.mxu0 0
        %4680 = vmatpush1.bf16.msra.mxu0 0
        %4681 = vmatprep.subr.bf16.mxu0 0
        %4682 = vmatpush1.bf16.msra.mxu0 0
        %4683 = vmatprep.subr.bf16.mxu0 0
        %4684 = vmatpush1.bf16.msra.mxu0 0
        %4685 = vmatprep.mubr.bf16.mxu0 0
        %4686 = vmatmul.mubr.bf16.gmra.mrb[0].mxu0 %v4610
        %v4687 = vpop.f32.mrb[0].mxu0
        %v4688 = vadd.f32 %v4647, %v4687
        %v4689 = vpop.f32.mrb[0].mxu0
        %v4690 = vadd.f32 %v4649, %v4689
        %v4691 = vpop.f32.mrb[0].mxu0
        %v4692 = vpop.f32.mrb[0].mxu0
        %4693 = vdwg.mxu0
        %v4694 = vmul.f32 %v4688, 0.01
        %v4695 = vmul.f32 %v4690, 0.01
        %v4698 = vcombine.low %v4694, %v4695
        %v4700 = vsub.f32 %v3633, %v4698
        %v4701 = vmul.f32 %v4700, 1.00005
        %v4702 = vmul.f32 %v4701, 0.5
        %v4703 = vadd.f32 %v4702, 0.5
        %4704 = vst [vmem:[%s380] sm:$0xff] %v4703
        %s4705 = sand.u32 %s213, 1
        %s4706 = scalar_lea.sflag [#allocation6], %s4705
        %s4707 = sand.u32 %s213, 1
        %s4708 = smul.addr %s4707, 8
        %s4709 = scalar_lea.vmem [#allocation5], %s4708
        // Predicated region
        $region91: #{tpu_custom_call.1} parent=85 // pred_check
          %p4710 = pneg %p223
        $region92: #{tpu_custom_call.1} parent=85 // pred_check_branch
          %4712 = sbr.rel (%p4710) target = $region94
        $region93: #{tpu_custom_call.1} parent=85 // pred_region
          %s4714 = ssub.s32 128, 128
          %4715 = vsyncadd %s4706, %s4714
          %s4716 = smul.addr %s22, 2
          %s4717 = smul.addr %s4716, 64
          %s4718 = scalar_lea.hbm %s8, %s4717
          %s4720 = sshll.u32 %s4709, 4
          %s4721 = int_to_ptr.vmem [resolvable:$true] %s4720
          %4723 = dma.vmem_to_hbm [thread:$0]  %s4721, 128, %s4718, %s4706
        $region94: #{tpu_custom_call.1} parent=85 // pred_fallthru
          _
      $region86: #{tpu_custom_call.1} parent=5 // pred_fallthru
        _
      %p4724 = scmp.le.s32.totalorder 2, %s17
      // Predicated region
      $region95: #{tpu_custom_call.1} parent=5 // pred_check
        %p4725 = pneg %p4724
      $region96: #{tpu_custom_call.1} parent=5 // pred_check_branch
        %4727 = sbr.rel (%p4725) target = $region98
      $region97: #{tpu_custom_call.1} parent=5 // pred_region
        %s4728 = ssub.s32 %s17, 2
        // Predicated region
        $region99: #{tpu_custom_call.1} parent=97 // pred_check
          %p4729 = pneg %p229
        $region100: #{tpu_custom_call.1} parent=97 // pred_check_branch
          %4731 = sbr.rel (%p4729) target = $region102
        $region101: #{tpu_custom_call.1} parent=97 // pred_region
          %s4732 = sand.u32 %s214, 1
          %s4733 = scalar_lea.sflag [#allocation6], %s4732
          %s4734 = sand.u32 %s214, 1
          %s4735 = smul.addr %s4734, 8
          %s4736 = scalar_lea.vmem [#allocation5], %s4735
          %4737 = dma.done %s4733, 128
        $region102: #{tpu_custom_call.1} parent=97 // pred_fallthru
          _
      $region98: #{tpu_custom_call.1} parent=5 // pred_fallthru
        _
    $region6: #{tpu_custom_call.1} parent=1 // loop_footer
      %s21 = sadd.s32 1, %s17
    $region7: #{tpu_custom_call.1} parent=1 // loop_footer_branch
      %16 = sbr.rel target = $region3
    $region8: #{tpu_custom_call.1} parent=1 // loop_exit
      _
    %4738 = vsyncpa [#allocation6], 1
    %s4739 = scalar_lea.sflag [#allocation6], 1
    %4740 = vsyncpa %s4739, 1

</llo_original>
